<compile_context>
chip_gen: v7x
topology: tpu7x:2x2x1
jax: 0.10.0
libtpu: 0.0.40
codegen_flags: <defaults>
</compile_context>

<pallas_src>
import functools

import jax
import jax.numpy as jnp
import numpy as np
from jax import lax
from jax.experimental import pallas as pl
from jax.experimental.pallas import tpu as pltpu


def _pick_tile_h(H, W, c_max, p, budget_bytes=8 << 20):
    """Largest divisor TH of H (TH >= p) whose f32 working set fits the budget."""
    c_pad = max(((c_max + 127) // 128) * 128, 128)
    best = H
    for th in range(H, 0, -1):
        if H % th or (th < p and th != H):
            continue
        best = th
        if 6 * (th + 2 * p) * W * c_pad * 4 <= budget_bytes:
            break
    return best


# ---------------------------------------------------------------------------
# Fused block kernel. One (image b, row-tile t) per grid step.
# ---------------------------------------------------------------------------
def _block_kernel(*refs, H, W, TH, k, dil, bf, first):
    p = (k - 1) // 2 * dil
    HE = TH + 2 * p            # tile rows + depthwise halo
    N = TH * W                 # output rows (flattened over H, W)
    NE = HE * W                # extended rows (flattened)

    if first:
        (x_ref, rmask_ref, cmask_ref,
         w1_ref, s1_ref, h1_ref,          # branch2: 1x1 + BN (+ReLU)
         dw2_ref, s2_ref, h2_ref,         # branch2: depthwise + BN
         w3_ref, s3_ref, h3_ref,          # branch2: 1x1 + BN (+ReLU)
         dw1_ref, s4_ref, h4_ref,         # branch1: depthwise + BN
         w5_ref, s5_ref, h5_ref,          # branch1: 1x1 + BN (+ReLU)
         out_ref) = refs
    else:
        (x_ref, rmask_ref, cmask_ref,
         w1_ref, s1_ref, h1_ref,
         dw2_ref, s2_ref, h2_ref,
         w3_ref, s3_ref, h3_ref,
         out_ref) = refs

    t = pl.program_id(1)
    row0 = pl.multiple_of(t * TH, TH)

    # Rows [row0 - p, row0 + TH + p) of the image. Out-of-image halo rows are loaded
    # from a clamped (valid but arbitrary) offset and zeroed via the row mask below.
    if p > 0:
        top = jnp.maximum(row0 - p, 0)
        bot = jnp.minimum(row0 + TH, H - p)
        x_ext3 = jnp.concatenate(
            [x_ref[pl.ds(top, p)], x_ref[pl.ds(row0, TH)], x_ref[pl.ds(bot, p)]],
            axis=0)                                           # (HE, W, C)
    else:
        x_ext3 = x_ref[pl.ds(row0, TH)]
    c_in = x_ext3.shape[-1]
    x_ext = x_ext3.astype(jnp.float32).reshape(NE, c_in)

    rmask = rmask_ref[...]          # (NE, 1) 1.0 inside image, 0.0 out-of-image halo
    cmask = cmask_ref[...]          # (NE, k) W-boundary ('same' padding) mask per tap

    def depthwise_bn(src, dw_ref, s_ref, h_ref):
        """k x k depthwise conv (stride 1, dilation dil, zero 'same' pad) + BN."""
        c = src.shape[-1]
        dw = dw_ref[...]                                       # (k*k, c)
        taps = [dw[idx:idx + 1, :] for idx in range(k * k)]    # hoisted (1, c) rows
        acc = jnp.zeros((N, c), jnp.float32)
        for j in range(k):
            sw = j * dil - p                                   # static W shift
            if sw == 0:
                z = src
            else:
                # z[r] = src[r + sw]; wrapped / cross-row entries masked to zero.
                z = pltpu.roll(src, (-sw) % NE, axis=0) * cmask[:, j:j + 1]
            for i in range(k):
                lo = i * dil * W                               # static row offset
                acc = acc + z[lo:lo + N, :] * taps[i * k + j]
        return acc * s_ref[...] + h_ref[...]

    # ----- branch2: 1x1 conv + BN + ReLU -> depthwise + BN -> 1x1 conv + BN + ReLU
    t2 = jnp.dot(x_ext, w1_ref[...], preferred_element_type=jnp.float32,
                 precision=lax.Precision.HIGHEST)
    t2 = jnp.maximum(t2 * s1_ref[...] + h1_ref[...], 0.0) * rmask   # zero halo rows
    d2 = depthwise_bn(t2, dw2_ref, s2_ref, h2_ref)
    y2 = jnp.dot(d2, w3_ref[...], preferred_element_type=jnp.float32,
                 precision=lax.Precision.HIGHEST)
    y2 = jnp.maximum(y2 * s3_ref[...] + h3_ref[...], 0.0)           # (N, bf)

    if first:
        # ----- branch1: depthwise + BN -> 1x1 conv + BN + ReLU (on the raw input)
        d1 = depthwise_bn(x_ext * rmask, dw1_ref, s4_ref, h4_ref)
        y1 = jnp.dot(d1, w5_ref[...], preferred_element_type=jnp.float32,
                     precision=lax.Precision.HIGHEST)
        left = jnp.maximum(y1 * s5_ref[...] + h5_ref[...], 0.0)     # (N, bf)
    else:
        # passthrough half x1: interior rows, first bf channels
        left = x_ext[p * W:p * W + N, :bf]

    out = jnp.concatenate([left, y2], axis=-1)                      # (N, 2*bf)
    out_ref[...] = out.reshape(TH, W, 2 * bf).astype(out_ref.dtype)


def _inverted_residual_block(x_nhwc, weights, *, bf, first, k, dil, tile_h=None):
    B, H, W, C = x_nhwc.shape
    assert k % 2 == 1, "only odd kernel sizes supported"
    p = (k - 1) // 2 * dil
    assert p <= H, "spatial extent smaller than the conv padding"
    TH = tile_h if tile_h is not None else _pick_tile_h(H, W, max(C, 2 * bf), p)
    assert H % TH == 0 and (TH >= p or H == TH)
    n_t = H // TH
    HE = TH + 2 * p
    NE = HE * W

    # Host-side constant masks (avoids in-kernel integer div/mod on vectors).
    q = np.arange(HE)
    row_ok = np.zeros((n_t, HE), np.float32)
    for ti in range(n_t):
        img_row = ti * TH - p + q
        row_ok[ti] = ((img_row >= 0) & (img_row < H)).astype(np.float32)
    row_mask = jnp.asarray(np.repeat(row_ok, W, axis=1).reshape(n_t, NE, 1))

    w_idx = np.tile(np.arange(W), HE)
    col_mask = np.zeros((NE, k), np.float32)
    for j in range(k):
        sw = j * dil - p
        col_mask[:, j] = ((w_idx + sw >= 0) & (w_idx + sw < W)).astype(np.float32)
    col_mask = jnp.asarray(col_mask)

    def _resident(a):
        return pl.BlockSpec(a.shape, lambda b, t: (0,) * a.ndim)

    in_specs = [
        pl.BlockSpec((None, H, W, C), lambda b, t: (b, 0, 0, 0)),  # image, resident per b
        pl.BlockSpec((None, NE, 1), lambda b, t: (t, 0, 0)),       # per-tile row mask
        _resident(col_mask),
    ]
    inputs = [x_nhwc, row_mask, col_mask]
    for wgt in weights:
        in_specs.append(_resident(wgt))
        inputs.append(wgt)

    out_spec = pl.BlockSpec((None, TH, W, 2 * bf), lambda b, t: (b, t, 0, 0))

    kernel = functools.partial(_block_kernel, H=H, W=W, TH=TH, k=k, dil=dil,
                               bf=bf, first=first)

    flops = 2 * B * H * W * (C * bf + k * k * bf + bf * bf)
    if first:
        flops += 2 * B * H * W * (k * k * C + C * bf)
    bytes_accessed = int(x_nhwc.dtype.itemsize) * (int(x_nhwc.size) + B * H * W * 2 * bf) \
        + 4 * sum(int(a.size) for a in inputs[1:])

    c_pad = ((max(C, 2 * bf) + 127) // 128) * 128
    itemsize = int(x_nhwc.dtype.itemsize)
    need = (2 * H * W * c_pad * itemsize           # double-buffered resident input image
            + 2 * TH * W * c_pad * itemsize        # double-buffered output tile
            + 10 * NE * c_pad * 4                  # f32 intermediates / spills
            + 4 * sum(int(a.size) for a in inputs[1:]))
    try:
        cap = int(pltpu.get_tpu_info().vmem_capacity_bytes)
    except Exception:                              # pragma: no cover
        cap = 64 << 20
    vmem_limit = int(min(max(2 * need, 32 << 20), (3 * cap) // 4))

    return pl.pallas_call(
        kernel,
        out_shape=jax.ShapeDtypeStruct((B, H, W, 2 * bf), x_nhwc.dtype),
        grid_spec=pltpu.PrefetchScalarGridSpec(
            num_scalar_prefetch=0,
            grid=(B, n_t),
            in_specs=in_specs,
            out_specs=out_spec),
        compiler_params=pltpu.CompilerParams(
            dimension_semantics=("parallel", "parallel"),
            vmem_limit_bytes=vmem_limit),
        cost_estimate=pl.CostEstimate(flops=int(flops), transcendentals=0,
                                      bytes_accessed=int(bytes_accessed)),
    )(*inputs)


# ---------------------------------------------------------------------------
# Full forward (chunk / branches / concat / channel_shuffle).
# ---------------------------------------------------------------------------
@functools.partial(jax.jit, static_argnames=("first_in_stage", "kernel_size",
                                             "dilation", "tile_h"))
def inverted_residual_k_forward(x, params, *, first_in_stage, kernel_size,
                                dilation, tile_h=None):
    B, C, H, W = x.shape
    bf = params["b2_w3"].shape[1]                 # branch_features = oup // 2
    x_nhwc = jnp.transpose(x, (0, 2, 3, 1))       # NCHW -> NHWC (channels in lanes)

    def vec(v):
        return v.reshape(1, -1)

    if first_in_stage:
        w1 = params["b2_w1"]                                      # (inp, bf)
    else:
        # branch2 consumes x2 = channels [bf:2bf); fold the chunk into the 1x1 weight.
        assert C == 2 * bf
        w1 = jnp.concatenate(
            [jnp.zeros((bf, bf), params["b2_w1"].dtype), params["b2_w1"]], axis=0)

    weights = [w1, vec(params["b2_s1"]), vec(params["b2_h1"]),
               params["b2_dw"], vec(params["b2_s2"]), vec(params["b2_h2"]),
               params["b2_w3"], vec(params["b2_s3"]), vec(params["b2_h3"])]
    if first_in_stage:
        weights += [params["b1_dw"], vec(params["b1_s1"]), vec(params["b1_h1"]),
                    params["b1_w2"], vec(params["b1_s2"]), vec(params["b1_h2"])]

    out_nhwc = _inverted_residual_block(
        x_nhwc, weights, bf=bf, first=first_in_stage, k=kernel_size,
        dil=dilation, tile_h=tile_h)

    # channel_shuffle(cat([left, right]), 2) fused into the NHWC->NCHW transpose:
    # output channel 2c (2c+1) is left (right) channel c.
    out = out_nhwc.reshape(B, H, W, 2, bf)
    out = jnp.transpose(out, (0, 4, 3, 1, 2)).reshape(B, 2 * bf, H, W)
    return out


class InvertedResidualKPallas:
    """Pallas/TPU mirror of openpifpaf's InvertedResidualK (stride == 1)."""

    def __init__(self, inp, oup, first_in_stage, *, stride=1, dilation=1,
                 kernel_size=3, key=None):
        assert (stride != 1 or dilation != 1 or inp != oup) or not first_in_stage
        if stride != 1:
            # TODO(synk): stride > 1 (strided depthwise conv / spatial downsampling)
            # is not implemented in the fused Pallas kernel.
            raise NotImplementedError("stride > 1 not supported in Pallas port")
        self.first_in_stage = first_in_stage
        self.kernel_size = kernel_size
        self.dilation = dilation
        bf = oup // 2
        if key is None:
            key = jax.random.PRNGKey(0)
        keys = jax.random.split(key, 15)

        def w_init(kk, shape, fan_in):
            return (jax.random.normal(kk, shape, jnp.float32)
                    / jnp.sqrt(jnp.float32(fan_in)))

        def bn_init(k1, k2, c):
            scale = 1.0 + 0.1 * jax.random.normal(k1, (c,), jnp.float32)
            shift = 0.1 * jax.random.normal(k2, (c,), jnp.float32)
            return scale, shift

        cin2 = inp if first_in_stage else bf
        kk = kernel_size * kernel_size
        p = {}
        p["b2_w1"] = w_init(keys[0], (cin2, bf), cin2)
        p["b2_s1"], p["b2_h1"] = bn_init(keys[1], keys[2], bf)
        p["b2_dw"] = w_init(keys[3], (kk, bf), kk)
        p["b2_s2"], p["b2_h2"] = bn_init(keys[4], keys[5], bf)
        p["b2_w3"] = w_init(keys[6], (bf, bf), bf)
        p["b2_s3"], p["b2_h3"] = bn_init(keys[7], keys[8], bf)
        if first_in_stage:
            p["b1_dw"] = w_init(keys[9], (kk, inp), kk)
            p["b1_s1"], p["b1_h1"] = bn_init(keys[10], keys[11], inp)
            p["b1_w2"] = w_init(keys[12], (inp, bf), inp)
            p["b1_s2"], p["b1_h2"] = bn_init(keys[13], keys[14], bf)
        self.params = p

    def __call__(self, x, *, tile_h=None):
        return inverted_residual_k_forward(
            x, self.params, first_in_stage=self.first_in_stage,
            kernel_size=self.kernel_size, dilation=self.dilation, tile_h=tile_h)


# ---------------------------------------------------------------------------
# Pure-JAX reference (independent of the kernel path) for validation.
# ---------------------------------------------------------------------------
def _ref_pointwise(x, w, scale, shift, relu):
    y = jnp.einsum("bhwc,cd->bhwd", x, w, precision=lax.Precision.HIGHEST)
    y = y * scale + shift
    return jnp.maximum(y, 0.0) if relu else y


def _ref_depthwise(x, dw_w, k, dil):
    C = x.shape[-1]
    w = dw_w.reshape(k, k, 1, C)
    p = (k - 1) // 2 * dil
    return lax.conv_general_dilated(
        x, w, window_strides=(1, 1), padding=[(p, p), (p, p)],
        rhs_dilation=(dil, dil),
        dimension_numbers=("NHWC", "HWIO", "NHWC"),
        feature_group_count=C, precision=lax.Precision.HIGHEST)


def _ref_channel_shuffle_nchw(x, groups):
    B, C, H, W = x.shape
    x = x.reshape(B, groups, C // groups, H, W)
    x = jnp.transpose(x, (0, 2, 1, 3, 4))
    return x.reshape(B, C, H, W)


def reference_forward(x, params, *, first_in_stage, kernel_size, dilation):
    k, dil = kernel_size, dilation
    x_nhwc = jnp.transpose(x, (0, 2, 3, 1))
    bf = params["b2_w3"].shape[1]

    def branch2(z):
        t = _ref_pointwise(z, params["b2_w1"], params["b2_s1"], params["b2_h1"], True)
        t = _ref_depthwise(t, params["b2_dw"], k, dil)
        t = t * params["b2_s2"] + params["b2_h2"]
        return _ref_pointwise(t, params["b2_w3"], params["b2_s3"], params["b2_h3"], True)

    if not first_in_stage:
        cat = jnp.concatenate([x_nhwc[..., :bf], branch2(x_nhwc[..., bf:])], axis=-1)
    else:
        t = _ref_depthwise(x_nhwc, params["b1_dw"], k, dil)
        t = t * params["b1_s1"] + params["b1_h1"]
        y1 = _ref_pointwise(t, params["b1_w2"], params["b1_s2"], params["b1_h2"], True)
        cat = jnp.concatenate([y1, branch2(x_nhwc)], axis=-1)

    return _ref_channel_shuffle_nchw(jnp.transpose(cat, (0, 3, 1, 2)), 2)


if __name__ == "__main__":
    key = jax.random.PRNGKey(0)
    k_x1, k_x2, k_p1, k_p2 = jax.random.split(key, 4)

    # Case A: not first in stage (inp == oup, stride 1): chunk + branch2 + shuffle.
    B, C, H, W = 2, 64, 16, 16
    xa = jax.random.normal(k_x1, (B, C, H, W), jnp.float32)
    mod_a = InvertedResidualKPallas(C, C, False, key=k_p1)
    ra = reference_forward(xa, mod_a.params, first_in_stage=False,
                           kernel_size=3, dilation=1)
    for th in (8, None):                 # multi-tile (halo) path and single-tile path
        ya = jax.block_until_ready(mod_a(xa, tile_h=th))
        assert ya.shape == (B, C, H, W), ya.shape
        err = float(jnp.max(jnp.abs(ya - ra)))
        assert err < 3e-3, f"case A (tile_h={th}) max abs err {err}"

    # Case B: first in stage (inp != oup, stride 1): branch1 + branch2 + shuffle.
    inp, oup = 32, 64
    xb = jax.random.normal(k_x2, (B, inp, H, W), jnp.float32)
    mod_b = InvertedResidualKPallas(inp, oup, True, key=k_p2)
    rb = reference_forward(xb, mod_b.params, first_in_stage=True,
                           kernel_size=3, dilation=1)
    yb = jax.block_until_ready(mod_b(xb, tile_h=8))
    assert yb.shape == (B, oup, H, W), yb.shape
    err = float(jnp.max(jnp.abs(yb - rb)))
    assert err < 3e-3, f"case B max abs err {err}"

    print("KERNEL_OK")
</pallas_src>

<mosaic_0001>
module attributes {stable_mosaic.version = 11 : i64} {
  func.func @_block_kernel(%arg0: i32, %arg1: i32, %arg2: memref<1x16x16x64xf32, #tpu.memory_space<vmem>>, %arg3: memref<1x160x1xf32, #tpu.memory_space<vmem>>, %arg4: memref<160x3xf32, #tpu.memory_space<vmem>>, %arg5: memref<64x32xf32, #tpu.memory_space<vmem>>, %arg6: memref<1x32xf32, #tpu.memory_space<vmem>>, %arg7: memref<1x32xf32, #tpu.memory_space<vmem>>, %arg8: memref<9x32xf32, #tpu.memory_space<vmem>>, %arg9: memref<1x32xf32, #tpu.memory_space<vmem>>, %arg10: memref<1x32xf32, #tpu.memory_space<vmem>>, %arg11: memref<32x32xf32, #tpu.memory_space<vmem>>, %arg12: memref<1x32xf32, #tpu.memory_space<vmem>>, %arg13: memref<1x32xf32, #tpu.memory_space<vmem>>, %arg14: memref<1x8x16x64xf32, #tpu.memory_space<vmem>>) attributes {dimension_semantics = [#tpu.dimension_semantics<parallel>, #tpu.dimension_semantics<parallel>], iteration_bounds = array<i64: 2, 2>, scalar_prefetch = 0 : i64, scratch_operands = 0 : i64, tpu.core_type = #tpu.core_type<tc>, window_params = [{transform_indices = @transform_0, window_bounds = array<i64: 1, 16, 16, 64>}, {transform_indices = @transform_1, window_bounds = array<i64: 1, 160, 1>}, {pipeline_mode = #tpu.pipeline_mode<synchronous>, transform_indices = @transform_2, window_bounds = array<i64: 160, 3>}, {pipeline_mode = #tpu.pipeline_mode<synchronous>, transform_indices = @transform_3, window_bounds = array<i64: 64, 32>}, {pipeline_mode = #tpu.pipeline_mode<synchronous>, transform_indices = @transform_4, window_bounds = array<i64: 1, 32>}, {pipeline_mode = #tpu.pipeline_mode<synchronous>, transform_indices = @transform_5, window_bounds = array<i64: 1, 32>}, {pipeline_mode = #tpu.pipeline_mode<synchronous>, transform_indices = @transform_6, window_bounds = array<i64: 9, 32>}, {pipeline_mode = #tpu.pipeline_mode<synchronous>, transform_indices = @transform_7, window_bounds = array<i64: 1, 32>}, {pipeline_mode = #tpu.pipeline_mode<synchronous>, transform_indices = @transform_8, window_bounds = array<i64: 1, 32>}, {pipeline_mode = #tpu.pipeline_mode<synchronous>, transform_indices = @transform_9, window_bounds = array<i64: 32, 32>}, {pipeline_mode = #tpu.pipeline_mode<synchronous>, transform_indices = @transform_10, window_bounds = array<i64: 1, 32>}, {pipeline_mode = #tpu.pipeline_mode<synchronous>, transform_indices = @transform_11, window_bounds = array<i64: 1, 32>}, {transform_indices = @transform_12, window_bounds = array<i64: 1, 8, 16, 64>}]} {
    %c8_i32 = arith.constant 8 : i32
    %0 = arith.muli %arg1, %c8_i32 : i32
    %1 = tpu.assume_multiple %0, 8 : i32
    %c1_i32 = arith.constant 1 : i32
    %2 = arith.subi %1, %c1_i32 : i32
    %c0_i32 = arith.constant 0 : i32
    %3 = arith.maxsi %2, %c0_i32 : i32
    %c8_i32_0 = arith.constant 8 : i32
    %4 = arith.addi %1, %c8_i32_0 : i32
    %c15_i32 = arith.constant 15 : i32
    %5 = arith.minsi %4, %c15_i32 : i32
    %c0 = arith.constant 0 : index
    %6 = arith.index_cast %3 : i32 to index
    %c0_1 = arith.constant 0 : index
    %c0_2 = arith.constant 0 : index
    %7 = vector.load %arg2[%c0, %6, %c0_1, %c0_2] : memref<1x16x16x64xf32, #tpu.memory_space<vmem>>, vector<1x1x16x64xf32>
    %8 = vector.shape_cast %7 : vector<1x1x16x64xf32> to vector<1x16x64xf32>
    %c0_3 = arith.constant 0 : index
    %9 = arith.index_cast %1 : i32 to index
    %c0_4 = arith.constant 0 : index
    %c0_5 = arith.constant 0 : index
    %10 = vector.load %arg2[%c0_3, %9, %c0_4, %c0_5] : memref<1x16x16x64xf32, #tpu.memory_space<vmem>>, vector<1x8x16x64xf32>
    %11 = vector.shape_cast %10 : vector<1x8x16x64xf32> to vector<8x16x64xf32>
    %c0_6 = arith.constant 0 : index
    %12 = arith.index_cast %5 : i32 to index
    %c0_7 = arith.constant 0 : index
    %c0_8 = arith.constant 0 : index
    %13 = vector.load %arg2[%c0_6, %12, %c0_7, %c0_8] : memref<1x16x16x64xf32, #tpu.memory_space<vmem>>, vector<1x1x16x64xf32>
    %14 = vector.shape_cast %13 : vector<1x1x16x64xf32> to vector<1x16x64xf32>
    %15 = tpu.concatenate %8, %11, %14 in 0 : vector<1x16x64xf32>, vector<8x16x64xf32>, vector<1x16x64xf32> -> vector<10x16x64xf32>
    %16 = vector.shape_cast %15 : vector<10x16x64xf32> to vector<160x64xf32>
    %c0_9 = arith.constant 0 : index
    %c0_10 = arith.constant 0 : index
    %c0_11 = arith.constant 0 : index
    %17 = vector.load %arg3[%c0_9, %c0_10, %c0_11] : memref<1x160x1xf32, #tpu.memory_space<vmem>>, vector<1x160x1xf32>
    %18 = vector.shape_cast %17 : vector<1x160x1xf32> to vector<160x1xf32>
    %c0_12 = arith.constant 0 : index
    %c0_13 = arith.constant 0 : index
    %19 = vector.load %arg4[%c0_12, %c0_13] : memref<160x3xf32, #tpu.memory_space<vmem>>, vector<160x3xf32>
    %c0_14 = arith.constant 0 : index
    %c0_15 = arith.constant 0 : index
    %20 = vector.load %arg5[%c0_14, %c0_15] : memref<64x32xf32, #tpu.memory_space<vmem>>, vector<64x32xf32>
    %cst = arith.constant dense<0.000000e+00> : vector<160x32xf32>
    %21 = tpu.matmul %16, %20, %cst {dimension_numbers = #tpu.dot_dimension_numbers<[1], [0], [0], [1], [0, 0, 1, 1], [], []>, precision = #tpu.contract_precision<fp32>} : vector<160x64xf32>, vector<64x32xf32>, vector<160x32xf32> -> vector<160x32xf32>
    %c0_16 = arith.constant 0 : index
    %c0_17 = arith.constant 0 : index
    %22 = vector.load %arg6[%c0_16, %c0_17] : memref<1x32xf32, #tpu.memory_space<vmem>>, vector<1x32xf32>
    %23 = vector.broadcast %22 : vector<1x32xf32> to vector<160x32xf32>
    %24 = arith.mulf %21, %23 : vector<160x32xf32>
    %c0_18 = arith.constant 0 : index
    %c0_19 = arith.constant 0 : index
    %25 = vector.load %arg7[%c0_18, %c0_19] : memref<1x32xf32, #tpu.memory_space<vmem>>, vector<1x32xf32>
    %26 = vector.broadcast %25 : vector<1x32xf32> to vector<160x32xf32>
    %27 = arith.addf %24, %26 : vector<160x32xf32>
    %cst_20 = arith.constant 0.000000e+00 : f32
    %28 = vector.broadcast %cst_20 : f32 to vector<160x32xf32>
    %29 = arith.maximumf %27, %28 : vector<160x32xf32>
    %30 = vector.broadcast %18 : vector<160x1xf32> to vector<160x32xf32>
    %31 = arith.mulf %29, %30 : vector<160x32xf32>
    %c0_21 = arith.constant 0 : index
    %c0_22 = arith.constant 0 : index
    %32 = vector.load %arg8[%c0_21, %c0_22] : memref<9x32xf32, #tpu.memory_space<vmem>>, vector<9x32xf32>
    %33 = vector.extract_strided_slice %32 {offsets = [0, 0], sizes = [1, 32], strides = [1, 1]} : vector<9x32xf32> to vector<1x32xf32>
    %34 = vector.extract_strided_slice %32 {offsets = [1, 0], sizes = [1, 32], strides = [1, 1]} : vector<9x32xf32> to vector<1x32xf32>
    %35 = vector.extract_strided_slice %32 {offsets = [2, 0], sizes = [1, 32], strides = [1, 1]} : vector<9x32xf32> to vector<1x32xf32>
    %36 = vector.extract_strided_slice %32 {offsets = [3, 0], sizes = [1, 32], strides = [1, 1]} : vector<9x32xf32> to vector<1x32xf32>
    %37 = vector.extract_strided_slice %32 {offsets = [4, 0], sizes = [1, 32], strides = [1, 1]} : vector<9x32xf32> to vector<1x32xf32>
    %38 = vector.extract_strided_slice %32 {offsets = [5, 0], sizes = [1, 32], strides = [1, 1]} : vector<9x32xf32> to vector<1x32xf32>
    %39 = vector.extract_strided_slice %32 {offsets = [6, 0], sizes = [1, 32], strides = [1, 1]} : vector<9x32xf32> to vector<1x32xf32>
    %40 = vector.extract_strided_slice %32 {offsets = [7, 0], sizes = [1, 32], strides = [1, 1]} : vector<9x32xf32> to vector<1x32xf32>
    %41 = vector.extract_strided_slice %32 {offsets = [8, 0], sizes = [1, 32], strides = [1, 1]} : vector<9x32xf32> to vector<1x32xf32>
    %cst_23 = arith.constant 0.000000e+00 : f32
    %42 = vector.broadcast %cst_23 : f32 to vector<128x32xf32>
    %c1_i32_24 = arith.constant 1 : i32
    %43 = tpu.dynamic_rotate %31 by %c1_i32_24 dim 0 : vector<160x32xf32>, i32 -> vector<160x32xf32>
    %44 = vector.extract_strided_slice %19 {offsets = [0, 0], sizes = [160, 1], strides = [1, 1]} : vector<160x3xf32> to vector<160x1xf32>
    %45 = vector.broadcast %44 : vector<160x1xf32> to vector<160x32xf32>
    %46 = arith.mulf %43, %45 : vector<160x32xf32>
    %47 = vector.extract_strided_slice %46 {offsets = [0, 0], sizes = [128, 32], strides = [1, 1]} : vector<160x32xf32> to vector<128x32xf32>
    %48 = vector.broadcast %33 : vector<1x32xf32> to vector<128x32xf32>
    %49 = arith.mulf %47, %48 : vector<128x32xf32>
    %50 = arith.addf %42, %49 : vector<128x32xf32>
    %51 = vector.extract_strided_slice %46 {offsets = [16, 0], sizes = [128, 32], strides = [1, 1]} : vector<160x32xf32> to vector<128x32xf32>
    %52 = vector.broadcast %36 : vector<1x32xf32> to vector<128x32xf32>
    %53 = arith.mulf %51, %52 : vector<128x32xf32>
    %54 = arith.addf %50, %53 : vector<128x32xf32>
    %55 = vector.extract_strided_slice %46 {offsets = [32, 0], sizes = [128, 32], strides = [1, 1]} : vector<160x32xf32> to vector<128x32xf32>
    %56 = vector.broadcast %39 : vector<1x32xf32> to vector<128x32xf32>
    %57 = arith.mulf %55, %56 : vector<128x32xf32>
    %58 = arith.addf %54, %57 : vector<128x32xf32>
    %59 = vector.extract_strided_slice %31 {offsets = [0, 0], sizes = [128, 32], strides = [1, 1]} : vector<160x32xf32> to vector<128x32xf32>
    %60 = vector.broadcast %34 : vector<1x32xf32> to vector<128x32xf32>
    %61 = arith.mulf %59, %60 : vector<128x32xf32>
    %62 = arith.addf %58, %61 : vector<128x32xf32>
    %63 = vector.extract_strided_slice %31 {offsets = [16, 0], sizes = [128, 32], strides = [1, 1]} : vector<160x32xf32> to vector<128x32xf32>
    %64 = vector.broadcast %37 : vector<1x32xf32> to vector<128x32xf32>
    %65 = arith.mulf %63, %64 : vector<128x32xf32>
    %66 = arith.addf %62, %65 : vector<128x32xf32>
    %67 = vector.extract_strided_slice %31 {offsets = [32, 0], sizes = [128, 32], strides = [1, 1]} : vector<160x32xf32> to vector<128x32xf32>
    %68 = vector.broadcast %40 : vector<1x32xf32> to vector<128x32xf32>
    %69 = arith.mulf %67, %68 : vector<128x32xf32>
    %70 = arith.addf %66, %69 : vector<128x32xf32>
    %c159_i32 = arith.constant 159 : i32
    %71 = tpu.dynamic_rotate %31 by %c159_i32 dim 0 : vector<160x32xf32>, i32 -> vector<160x32xf32>
    %72 = vector.extract_strided_slice %19 {offsets = [0, 2], sizes = [160, 1], strides = [1, 1]} : vector<160x3xf32> to vector<160x1xf32>
    %73 = vector.broadcast %72 : vector<160x1xf32> to vector<160x32xf32>
    %74 = arith.mulf %71, %73 : vector<160x32xf32>
    %75 = vector.extract_strided_slice %74 {offsets = [0, 0], sizes = [128, 32], strides = [1, 1]} : vector<160x32xf32> to vector<128x32xf32>
    %76 = vector.broadcast %35 : vector<1x32xf32> to vector<128x32xf32>
    %77 = arith.mulf %75, %76 : vector<128x32xf32>
    %78 = arith.addf %70, %77 : vector<128x32xf32>
    %79 = vector.extract_strided_slice %74 {offsets = [16, 0], sizes = [128, 32], strides = [1, 1]} : vector<160x32xf32> to vector<128x32xf32>
    %80 = vector.broadcast %38 : vector<1x32xf32> to vector<128x32xf32>
    %81 = arith.mulf %79, %80 : vector<128x32xf32>
    %82 = arith.addf %78, %81 : vector<128x32xf32>
    %83 = vector.extract_strided_slice %74 {offsets = [32, 0], sizes = [128, 32], strides = [1, 1]} : vector<160x32xf32> to vector<128x32xf32>
    %84 = vector.broadcast %41 : vector<1x32xf32> to vector<128x32xf32>
    %85 = arith.mulf %83, %84 : vector<128x32xf32>
    %86 = arith.addf %82, %85 : vector<128x32xf32>
    %c0_25 = arith.constant 0 : index
    %c0_26 = arith.constant 0 : index
    %87 = vector.load %arg9[%c0_25, %c0_26] : memref<1x32xf32, #tpu.memory_space<vmem>>, vector<1x32xf32>
    %88 = vector.broadcast %87 : vector<1x32xf32> to vector<128x32xf32>
    %89 = arith.mulf %86, %88 : vector<128x32xf32>
    %c0_27 = arith.constant 0 : index
    %c0_28 = arith.constant 0 : index
    %90 = vector.load %arg10[%c0_27, %c0_28] : memref<1x32xf32, #tpu.memory_space<vmem>>, vector<1x32xf32>
    %91 = vector.broadcast %90 : vector<1x32xf32> to vector<128x32xf32>
    %92 = arith.addf %89, %91 : vector<128x32xf32>
    %c0_29 = arith.constant 0 : index
    %c0_30 = arith.constant 0 : index
    %93 = vector.load %arg11[%c0_29, %c0_30] : memref<32x32xf32, #tpu.memory_space<vmem>>, vector<32x32xf32>
    %cst_31 = arith.constant dense<0.000000e+00> : vector<128x32xf32>
    %94 = tpu.matmul %92, %93, %cst_31 {dimension_numbers = #tpu.dot_dimension_numbers<[1], [0], [0], [1], [0, 0, 1, 1], [], []>, precision = #tpu.contract_precision<fp32>} : vector<128x32xf32>, vector<32x32xf32>, vector<128x32xf32> -> vector<128x32xf32>
    %c0_32 = arith.constant 0 : index
    %c0_33 = arith.constant 0 : index
    %95 = vector.load %arg12[%c0_32, %c0_33] : memref<1x32xf32, #tpu.memory_space<vmem>>, vector<1x32xf32>
    %96 = vector.broadcast %95 : vector<1x32xf32> to vector<128x32xf32>
    %97 = arith.mulf %94, %96 : vector<128x32xf32>
    %c0_34 = arith.constant 0 : index
    %c0_35 = arith.constant 0 : index
    %98 = vector.load %arg13[%c0_34, %c0_35] : memref<1x32xf32, #tpu.memory_space<vmem>>, vector<1x32xf32>
    %99 = vector.broadcast %98 : vector<1x32xf32> to vector<128x32xf32>
    %100 = arith.addf %97, %99 : vector<128x32xf32>
    %cst_36 = arith.constant 0.000000e+00 : f32
    %101 = vector.broadcast %cst_36 : f32 to vector<128x32xf32>
    %102 = arith.maximumf %100, %101 : vector<128x32xf32>
    %103 = vector.extract_strided_slice %16 {offsets = [16, 0], sizes = [128, 32], strides = [1, 1]} : vector<160x64xf32> to vector<128x32xf32>
    %104 = tpu.concatenate %103, %102 in 1 : vector<128x32xf32>, vector<128x32xf32> -> vector<128x64xf32>
    %105 = vector.shape_cast %104 : vector<128x64xf32> to vector<8x16x64xf32>
    %c0_37 = arith.constant 0 : index
    %c0_38 = arith.constant 0 : index
    %c0_39 = arith.constant 0 : index
    %c0_40 = arith.constant 0 : index
    %106 = vector.load %arg14[%c0_37, %c0_38, %c0_39, %c0_40] : memref<1x8x16x64xf32, #tpu.memory_space<vmem>>, vector<1x8x16x64xf32>
    %107 = vector.shape_cast %106 : vector<1x8x16x64xf32> to vector<8x16x64xf32>
    %108 = vector.shape_cast %105 : vector<8x16x64xf32> to vector<1x8x16x64xf32>
    tpu.vector_store %arg14[%c0_37, %c0_38, %c0_39, %c0_40], %108 {strides = array<i32>} : memref<1x8x16x64xf32, #tpu.memory_space<vmem>>, vector<1x8x16x64xf32>,
    return
  }
  func.func @transform_0(%arg0: i32, %arg1: i32) -> (i32, i32, i32, i32) {
    %c0_i32 = arith.constant 0 : i32
    %c0_i32_0 = arith.constant 0 : i32
    %c0_i32_1 = arith.constant 0 : i32
    %c0_i32_2 = arith.constant 0 : i32
    return %arg0, %c0_i32, %c0_i32_0, %c0_i32_1 : i32, i32, i32, i32
  }
  func.func @transform_1(%arg0: i32, %arg1: i32) -> (i32, i32, i32) {
    %c0_i32 = arith.constant 0 : i32
    %c0_i32_0 = arith.constant 0 : i32
    %c0_i32_1 = arith.constant 0 : i32
    return %arg1, %c0_i32, %c0_i32_0 : i32, i32, i32
  }
  func.func @transform_2(%arg0: i32, %arg1: i32) -> (i32, i32) {
    %c0_i32 = arith.constant 0 : i32
    %c0_i32_0 = arith.constant 0 : i32
    %c0_i32_1 = arith.constant 0 : i32
    return %c0_i32, %c0_i32_0 : i32, i32
  }
  func.func @transform_3(%arg0: i32, %arg1: i32) -> (i32, i32) {
    %c0_i32 = arith.constant 0 : i32
    %c0_i32_0 = arith.constant 0 : i32
    %c0_i32_1 = arith.constant 0 : i32
    return %c0_i32, %c0_i32_0 : i32, i32
  }
  func.func @transform_4(%arg0: i32, %arg1: i32) -> (i32, i32) {
    %c0_i32 = arith.constant 0 : i32
    %c0_i32_0 = arith.constant 0 : i32
    %c0_i32_1 = arith.constant 0 : i32
    return %c0_i32, %c0_i32_0 : i32, i32
  }
  func.func @transform_5(%arg0: i32, %arg1: i32) -> (i32, i32) {
    %c0_i32 = arith.constant 0 : i32
    %c0_i32_0 = arith.constant 0 : i32
    %c0_i32_1 = arith.constant 0 : i32
    return %c0_i32, %c0_i32_0 : i32, i32
  }
  func.func @transform_6(%arg0: i32, %arg1: i32) -> (i32, i32) {
    %c0_i32 = arith.constant 0 : i32
    %c0_i32_0 = arith.constant 0 : i32
    %c0_i32_1 = arith.constant 0 : i32
    return %c0_i32, %c0_i32_0 : i32, i32
  }
  func.func @transform_7(%arg0: i32, %arg1: i32) -> (i32, i32) {
    %c0_i32 = arith.constant 0 : i32
    %c0_i32_0 = arith.constant 0 : i32
    %c0_i32_1 = arith.constant 0 : i32
    return %c0_i32, %c0_i32_0 : i32, i32
  }
  func.func @transform_8(%arg0: i32, %arg1: i32) -> (i32, i32) {
    %c0_i32 = arith.constant 0 : i32
    %c0_i32_0 = arith.constant 0 : i32
    %c0_i32_1 = arith.constant 0 : i32
    return %c0_i32, %c0_i32_0 : i32, i32
  }
  func.func @transform_9(%arg0: i32, %arg1: i32) -> (i32, i32) {
    %c0_i32 = arith.constant 0 : i32
    %c0_i32_0 = arith.constant 0 : i32
    %c0_i32_1 = arith.constant 0 : i32
    return %c0_i32, %c0_i32_0 : i32, i32
  }
  func.func @transform_10(%arg0: i32, %arg1: i32) -> (i32, i32) {
    %c0_i32 = arith.constant 0 : i32
    %c0_i32_0 = arith.constant 0 : i32
    %c0_i32_1 = arith.constant 0 : i32
    return %c0_i32, %c0_i32_0 : i32, i32
  }
  func.func @transform_11(%arg0: i32, %arg1: i32) -> (i32, i32) {
    %c0_i32 = arith.constant 0 : i32
    %c0_i32_0 = arith.constant 0 : i32
    %c0_i32_1 = arith.constant 0 : i32
    return %c0_i32, %c0_i32_0 : i32, i32
  }
  func.func @transform_12(%arg0: i32, %arg1: i32) -> (i32, i32, i32, i32) {
    %c0_i32 = arith.constant 0 : i32
    %c0_i32_0 = arith.constant 0 : i32
    %c0_i32_1 = arith.constant 0 : i32
    return %arg0, %arg1, %c0_i32, %c0_i32_0 : i32, i32, i32, i32
  }
}

</mosaic_0001>

<llo_original>
// kernel: inverted_residual_k_forward.1
$region0: #{inverted_residual_k_forward.1}
  #allocation0 [shape = 'u32[]', space=smem, size = 0x4, offset = 0x4, fixed_abs, tag = 'smem constant byte address 0x4 - core index']
  #allocation1 [shape = 'u32[144,128]{1,0:T(1,128)}', space=vmem, size = 0x12000, scoped, tag = 'internal scratch']
  %s0 = inlined_call_operand.hbm [shape: f32[2,16,16,64], index: 0, kind: input, shape index: {}]
  %s1 = inlined_call_operand.hbm [shape: f32[2,160,1], index: 1, kind: input, shape index: {}]
  %s2 = inlined_call_operand.vmem [shape: f32[160,3], index: 2, kind: input, shape index: {}]
  %s3 = inlined_call_operand.vmem [shape: f32[64,32], index: 3, kind: input, shape index: {}]
  %s4 = inlined_call_operand.vmem [shape: f32[1,32], index: 4, kind: input, shape index: {}]
  %s5 = inlined_call_operand.vmem [shape: f32[1,32], index: 5, kind: input, shape index: {}]
  %s6 = inlined_call_operand.hbm [shape: f32[9,32], index: 6, kind: input, shape index: {}]
  %s7 = inlined_call_operand.vmem [shape: f32[1,32], index: 7, kind: input, shape index: {}]
  %s8 = inlined_call_operand.vmem [shape: f32[1,32], index: 8, kind: input, shape index: {}]
  %s9 = inlined_call_operand.hbm [shape: f32[32,32], index: 9, kind: input, shape index: {}]
  %s10 = inlined_call_operand.vmem [shape: f32[1,32], index: 10, kind: input, shape index: {}]
  %s11 = inlined_call_operand.hbm [shape: f32[1,32], index: 11, kind: input, shape index: {}]
  %s12 = inlined_call_operand.vmem [shape: f32[2,16,16,64], index: 12, kind: output, shape index: {}]
  %s13 = sld [smem:[#allocation0]]
  $region101: #{inverted_residual_k_forward.1} parent=0
    _
  %s15 = ssub.s32 1, %s13
  %s16 = scalar_select 0, %s15, %s13
  $region1: #{inverted_residual_k_forward.1} parent=0
    #allocation2 [shape = 'u8[262144]{0}', space=vmem, size = 0x40000, scoped, tag = 'input window, operand 0']
    #allocation3 [shape = 's32[2]{0}', space=sflag, size = 0x8, scoped, tag = 'scoped memory for inverted_residual_k_forward.1']
    #allocation4 [shape = 'u8[163840]{0}', space=vmem, size = 0x28000, scoped, tag = 'input window, operand 1']
    #allocation5 [shape = 's32[2]{0}', space=sflag, size = 0x8, scoped, tag = 'scoped memory for inverted_residual_k_forward.1']
    #allocation6 [shape = 'u8[8192]{0}', space=vmem, size = 0x2000, scoped, tag = 'input window, operand 6, single buffered']
    #allocation7 [shape = 'u8[16384]{0}', space=vmem, size = 0x4000, scoped, tag = 'input window, operand 9, single buffered']
    #allocation8 [shape = 's32[1]{0}', space=sflag, size = 0x4, scoped, tag = 'scoped memory for inverted_residual_k_forward.1']
    #allocation9 [shape = 'u8[512]{0}', space=vmem, size = 0x400, scoped, tag = 'input window, operand 11, single buffered']
    %17 = vsyncpa [#allocation3], 0
    %s18 = scalar_lea.sflag [#allocation3], 1
    %19 = vsyncpa %s18, 0
    %20 = vsyncpa [#allocation5], 0
    %s21 = scalar_lea.sflag [#allocation5], 1
    %22 = vsyncpa %s21, 0
    %23 = vsyncpa [#allocation8], 0
    loop: start=0, step=1, limit=6
    $region2: #{inverted_residual_k_forward.1} parent=1 // loop_pre_header
      _
    $region3: #{inverted_residual_k_forward.1} parent=1 // loop_header
      %s25 = sphi 0, %s29
      %p26 = scmp.ge.s32.totalorder %s25, 6
      %s32 = sphi 0, %s44
      %s33 = sphi 0, %s40
      %s34 = sphi 0, %s32
      %s35 = sphi 0, %s33
      %s36 = sphi 0, %s34
      %s37 = sphi 0, %s35
      %s47 = sphi 0, %s49
      %s50 = sphi 0, %s47
      %s51 = sphi 0, %s50
      %s67 = sphi 0, %s51
      %s73 = sphi 0, %s75
      %s76 = sphi 0, %s73
      %s77 = sphi 0, %s76
      %s93 = sphi 0, %s77
      %s97 = sphi 0, %s97
      %s99 = sphi 0, %s97
      %s100 = sphi 0, %s99
      %s114 = sphi 0, %s100
      %s118 = sphi 0, %s118
      %s120 = sphi 0, %s118
      %s121 = sphi 0, %s120
      %s135 = sphi 0, %s121
      %s139 = sphi 0, %s139
      %s141 = sphi 0, %s139
      %s142 = sphi 0, %s141
      %s156 = sphi 0, %s142
      %s160 = sphi 0, %s160
      %s162 = sphi 0, %s160
      %s163 = sphi 0, %s162
      %s177 = sphi 0, %s163
      %s181 = sphi 0, %s181
      %s183 = sphi 0, %s181
      %s184 = sphi 0, %s183
      %s198 = sphi 0, %s184
      %s202 = sphi 0, %s202
      %s204 = sphi 0, %s202
      %s205 = sphi 0, %s204
      %s219 = sphi 0, %s205
      %s223 = sphi 0, %s223
      %s225 = sphi 0, %s223
      %s226 = sphi 0, %s225
      %s240 = sphi 0, %s226
      %s244 = sphi 0, %s244
      %s246 = sphi 0, %s244
      %s247 = sphi 0, %s246
      %s261 = sphi 0, %s247
      %s265 = sphi 0, %s265
      %s267 = sphi 0, %s265
      %s268 = sphi 0, %s267
      %s282 = sphi 0, %s268
      %s286 = sphi 0, %s286
      %s288 = sphi 0, %s286
      %s289 = sphi 0, %s288
      %s303 = sphi 0, %s289
      %s311 = sphi 0, %s313
      %s314 = sphi 0, %s311
      %s315 = sphi 0, %s314
      %s331 = sphi 0, %s315
    $region4: #{inverted_residual_k_forward.1} parent=1 // loop_header_branch
      %28 = sbr.rel (%p26) target = $region8
    $region5: #{inverted_residual_k_forward.1} parent=1 // loop_body
      %s30 = ssub.s32 %s25, 1
      %s31 = ssub.s32 %s25, 2
      %s38 = sadd.s32 1, %s33
      %p39 = scmp.ge.s32.totalorder %s38, 2
      %s40 = scalar_select %p39, 0, %s38
      %s41 = sadd.s32 1, %s32
      %s42 = scalar_select %p39, %s41, %s32
      %p43 = scmp.ge.s32.totalorder %s42, 2
      %s44 = scalar_select %p43, 0, %s42
      %s45 = ssub.s32 %s32, %s44
      %p46 = scmp.eq.s32.totalorder %s45, 0
      %s48 = sadd.s32 %s47, 1
      %s49 = scalar_select %p46, %s47, %s48
      %p52 = pneg %p46
      %p53 = scmp.eq.s32.totalorder %s25, 3
      %p54 = por %p52, %p53
      %p55 = scmp.ne.s32.totalorder %s47, %s50
      %p56 = scmp.eq.s32.totalorder %s25, 0
      %p57 = por %p55, %p56
      %p58 = scmp.ne.s32.totalorder %s47, %s50
      %p59 = scmp.eq.s32.totalorder %s30, 3
      %p60 = por %p58, %p59
      %p61 = scmp.ne.s32.totalorder %s50, %s51
      %p62 = scmp.eq.s32.totalorder %s30, 0
      %p63 = por %p61, %p62
      %p64 = scmp.ne.s32.totalorder %s50, %s51
      %p65 = scmp.eq.s32.totalorder %s31, 3
      %p66 = por %p64, %p65
      %p68 = scmp.ne.s32.totalorder %s51, %s67
      %p69 = scmp.eq.s32.totalorder %s31, 0
      %p70 = por %p68, %p69
      %s71 = ssub.s32 %s33, %s40
      %p72 = scmp.eq.s32.totalorder %s71, 0
      %s74 = sadd.s32 %s73, 1
      %s75 = scalar_select %p72, %s73, %s74
      %p78 = pneg %p72
      %p79 = scmp.eq.s32.totalorder %s25, 3
      %p80 = por %p78, %p79
      %p81 = scmp.ne.s32.totalorder %s73, %s76
      %p82 = scmp.eq.s32.totalorder %s25, 0
      %p83 = por %p81, %p82
      %p84 = scmp.ne.s32.totalorder %s73, %s76
      %p85 = scmp.eq.s32.totalorder %s30, 3
      %p86 = por %p84, %p85
      %p87 = scmp.ne.s32.totalorder %s76, %s77
      %p88 = scmp.eq.s32.totalorder %s30, 0
      %p89 = por %p87, %p88
      %p90 = scmp.ne.s32.totalorder %s76, %s77
      %p91 = scmp.eq.s32.totalorder %s31, 3
      %p92 = por %p90, %p91
      %p94 = scmp.ne.s32.totalorder %s77, %s93
      %p95 = scmp.eq.s32.totalorder %s31, 0
      %p96 = por %p94, %p95
      %s98 = sadd.s32 %s97, 1
      %p101 = scmp.eq.s32.totalorder %s25, 3
      %p102 = scmp.ne.s32.totalorder %s97, %s99
      %p103 = scmp.eq.s32.totalorder %s25, 0
      %p104 = por %p102, %p103
      %p105 = scmp.ne.s32.totalorder %s97, %s99
      %p106 = scmp.eq.s32.totalorder %s30, 3
      %p107 = por %p105, %p106
      %p108 = scmp.ne.s32.totalorder %s99, %s100
      %p109 = scmp.eq.s32.totalorder %s30, 0
      %p110 = por %p108, %p109
      %p111 = scmp.ne.s32.totalorder %s99, %s100
      %p112 = scmp.eq.s32.totalorder %s31, 3
      %p113 = por %p111, %p112
      %p115 = scmp.ne.s32.totalorder %s100, %s114
      %p116 = scmp.eq.s32.totalorder %s31, 0
      %p117 = por %p115, %p116
      %s119 = sadd.s32 %s118, 1
      %p122 = scmp.eq.s32.totalorder %s25, 3
      %p123 = scmp.ne.s32.totalorder %s118, %s120
      %p124 = scmp.eq.s32.totalorder %s25, 0
      %p125 = por %p123, %p124
      %p126 = scmp.ne.s32.totalorder %s118, %s120
      %p127 = scmp.eq.s32.totalorder %s30, 3
      %p128 = por %p126, %p127
      %p129 = scmp.ne.s32.totalorder %s120, %s121
      %p130 = scmp.eq.s32.totalorder %s30, 0
      %p131 = por %p129, %p130
      %p132 = scmp.ne.s32.totalorder %s120, %s121
      %p133 = scmp.eq.s32.totalorder %s31, 3
      %p134 = por %p132, %p133
      %p136 = scmp.ne.s32.totalorder %s121, %s135
      %p137 = scmp.eq.s32.totalorder %s31, 0
      %p138 = por %p136, %p137
      %s140 = sadd.s32 %s139, 1
      %p143 = scmp.eq.s32.totalorder %s25, 3
      %p144 = scmp.ne.s32.totalorder %s139, %s141
      %p145 = scmp.eq.s32.totalorder %s25, 0
      %p146 = por %p144, %p145
      %p147 = scmp.ne.s32.totalorder %s139, %s141
      %p148 = scmp.eq.s32.totalorder %s30, 3
      %p149 = por %p147, %p148
      %p150 = scmp.ne.s32.totalorder %s141, %s142
      %p151 = scmp.eq.s32.totalorder %s30, 0
      %p152 = por %p150, %p151
      %p153 = scmp.ne.s32.totalorder %s141, %s142
      %p154 = scmp.eq.s32.totalorder %s31, 3
      %p155 = por %p153, %p154
      %p157 = scmp.ne.s32.totalorder %s142, %s156
      %p158 = scmp.eq.s32.totalorder %s31, 0
      %p159 = por %p157, %p158
      %s161 = sadd.s32 %s160, 1
      %p164 = scmp.eq.s32.totalorder %s25, 3
      %p165 = scmp.ne.s32.totalorder %s160, %s162
      %p166 = scmp.eq.s32.totalorder %s25, 0
      %p167 = por %p165, %p166
      %p168 = scmp.ne.s32.totalorder %s160, %s162
      %p169 = scmp.eq.s32.totalorder %s30, 3
      %p170 = por %p168, %p169
      %p171 = scmp.ne.s32.totalorder %s162, %s163
      %p172 = scmp.eq.s32.totalorder %s30, 0
      %p173 = por %p171, %p172
      %p174 = scmp.ne.s32.totalorder %s162, %s163
      %p175 = scmp.eq.s32.totalorder %s31, 3
      %p176 = por %p174, %p175
      %p178 = scmp.ne.s32.totalorder %s163, %s177
      %p179 = scmp.eq.s32.totalorder %s31, 0
      %p180 = por %p178, %p179
      %s182 = sadd.s32 %s181, 1
      %p185 = scmp.eq.s32.totalorder %s25, 3
      %p186 = scmp.ne.s32.totalorder %s181, %s183
      %p187 = scmp.eq.s32.totalorder %s25, 0
      %p188 = por %p186, %p187
      %p189 = scmp.ne.s32.totalorder %s181, %s183
      %p190 = scmp.eq.s32.totalorder %s30, 3
      %p191 = por %p189, %p190
      %p192 = scmp.ne.s32.totalorder %s183, %s184
      %p193 = scmp.eq.s32.totalorder %s30, 0
      %p194 = por %p192, %p193
      %p195 = scmp.ne.s32.totalorder %s183, %s184
      %p196 = scmp.eq.s32.totalorder %s31, 3
      %p197 = por %p195, %p196
      %p199 = scmp.ne.s32.totalorder %s184, %s198
      %p200 = scmp.eq.s32.totalorder %s31, 0
      %p201 = por %p199, %p200
      %s203 = sadd.s32 %s202, 1
      %p206 = scmp.eq.s32.totalorder %s25, 3
      %p207 = scmp.ne.s32.totalorder %s202, %s204
      %p208 = scmp.eq.s32.totalorder %s25, 0
      %p209 = por %p207, %p208
      %p210 = scmp.ne.s32.totalorder %s202, %s204
      %p211 = scmp.eq.s32.totalorder %s30, 3
      %p212 = por %p210, %p211
      %p213 = scmp.ne.s32.totalorder %s204, %s205
      %p214 = scmp.eq.s32.totalorder %s30, 0
      %p215 = por %p213, %p214
      %p216 = scmp.ne.s32.totalorder %s204, %s205
      %p217 = scmp.eq.s32.totalorder %s31, 3
      %p218 = por %p216, %p217
      %p220 = scmp.ne.s32.totalorder %s205, %s219
      %p221 = scmp.eq.s32.totalorder %s31, 0
      %p222 = por %p220, %p221
      %s224 = sadd.s32 %s223, 1
      %p227 = scmp.eq.s32.totalorder %s25, 3
      %p228 = scmp.ne.s32.totalorder %s223, %s225
      %p229 = scmp.eq.s32.totalorder %s25, 0
      %p230 = por %p228, %p229
      %p231 = scmp.ne.s32.totalorder %s223, %s225
      %p232 = scmp.eq.s32.totalorder %s30, 3
      %p233 = por %p231, %p232
      %p234 = scmp.ne.s32.totalorder %s225, %s226
      %p235 = scmp.eq.s32.totalorder %s30, 0
      %p236 = por %p234, %p235
      %p237 = scmp.ne.s32.totalorder %s225, %s226
      %p238 = scmp.eq.s32.totalorder %s31, 3
      %p239 = por %p237, %p238
      %p241 = scmp.ne.s32.totalorder %s226, %s240
      %p242 = scmp.eq.s32.totalorder %s31, 0
      %p243 = por %p241, %p242
      %s245 = sadd.s32 %s244, 1
      %p248 = scmp.eq.s32.totalorder %s25, 3
      %p249 = scmp.ne.s32.totalorder %s244, %s246
      %p250 = scmp.eq.s32.totalorder %s25, 0
      %p251 = por %p249, %p250
      %p252 = scmp.ne.s32.totalorder %s244, %s246
      %p253 = scmp.eq.s32.totalorder %s30, 3
      %p254 = por %p252, %p253
      %p255 = scmp.ne.s32.totalorder %s246, %s247
      %p256 = scmp.eq.s32.totalorder %s30, 0
      %p257 = por %p255, %p256
      %p258 = scmp.ne.s32.totalorder %s246, %s247
      %p259 = scmp.eq.s32.totalorder %s31, 3
      %p260 = por %p258, %p259
      %p262 = scmp.ne.s32.totalorder %s247, %s261
      %p263 = scmp.eq.s32.totalorder %s31, 0
      %p264 = por %p262, %p263
      %s266 = sadd.s32 %s265, 1
      %p269 = scmp.eq.s32.totalorder %s25, 3
      %p270 = scmp.ne.s32.totalorder %s265, %s267
      %p271 = scmp.eq.s32.totalorder %s25, 0
      %p272 = por %p270, %p271
      %p273 = scmp.ne.s32.totalorder %s265, %s267
      %p274 = scmp.eq.s32.totalorder %s30, 3
      %p275 = por %p273, %p274
      %p276 = scmp.ne.s32.totalorder %s267, %s268
      %p277 = scmp.eq.s32.totalorder %s30, 0
      %p278 = por %p276, %p277
      %p279 = scmp.ne.s32.totalorder %s267, %s268
      %p280 = scmp.eq.s32.totalorder %s31, 3
      %p281 = por %p279, %p280
      %p283 = scmp.ne.s32.totalorder %s268, %s282
      %p284 = scmp.eq.s32.totalorder %s31, 0
      %p285 = por %p283, %p284
      %s287 = sadd.s32 %s286, 1
      %p290 = scmp.eq.s32.totalorder %s25, 3
      %p291 = scmp.ne.s32.totalorder %s286, %s288
      %p292 = scmp.eq.s32.totalorder %s25, 0
      %p293 = por %p291, %p292
      %p294 = scmp.ne.s32.totalorder %s286, %s288
      %p295 = scmp.eq.s32.totalorder %s30, 3
      %p296 = por %p294, %p295
      %p297 = scmp.ne.s32.totalorder %s288, %s289
      %p298 = scmp.eq.s32.totalorder %s30, 0
      %p299 = por %p297, %p298
      %p300 = scmp.ne.s32.totalorder %s288, %s289
      %p301 = scmp.eq.s32.totalorder %s31, 3
      %p302 = por %p300, %p301
      %p304 = scmp.ne.s32.totalorder %s289, %s303
      %p305 = scmp.eq.s32.totalorder %s31, 0
      %p306 = por %p304, %p305
      %s307 = ssub.s32 %s32, %s44
      %s308 = ssub.s32 %s33, %s40
      %s309 = sor.u32 %s307, %s308
      %p310 = scmp.eq.s32.totalorder %s309, 0
      %s312 = sadd.s32 %s311, 1
      %s313 = scalar_select %p310, %s311, %s312
      %p316 = pneg %p310
      %p317 = scmp.eq.s32.totalorder %s25, 3
      %p318 = por %p316, %p317
      %p319 = scmp.ne.s32.totalorder %s311, %s314
      %p320 = scmp.eq.s32.totalorder %s25, 0
      %p321 = por %p319, %p320
      %p322 = scmp.ne.s32.totalorder %s311, %s314
      %p323 = scmp.eq.s32.totalorder %s30, 3
      %p324 = por %p322, %p323
      %p325 = scmp.ne.s32.totalorder %s314, %s315
      %p326 = scmp.eq.s32.totalorder %s30, 0
      %p327 = por %p325, %p326
      %p328 = scmp.ne.s32.totalorder %s314, %s315
      %p329 = scmp.eq.s32.totalorder %s31, 3
      %p330 = por %p328, %p329
      %p332 = scmp.ne.s32.totalorder %s315, %s331
      %p333 = scmp.eq.s32.totalorder %s31, 0
      %p334 = por %p332, %p333
      %p335 = scmp.le.s32.totalorder 1, %s25
      %p336 = scmp.lt.s32.totalorder %s25, 5
      %p337 = pnand %p335, %p336
      %p338 = pneg %p337
      // Predicated region
      $region9: #{inverted_residual_k_forward.1} parent=5 // pred_check
        _
      $region10: #{inverted_residual_k_forward.1} parent=5 // pred_check_branch
        %340 = sbr.rel (%p337) target = $region12
      $region11: #{inverted_residual_k_forward.1} parent=5 // pred_region
        %s341 = ssub.s32 %s25, 1
        // Predicated region
        $region13: #{inverted_residual_k_forward.1} parent=11 // pred_check
          %p342 = pneg %p110
        $region14: #{inverted_residual_k_forward.1} parent=11 // pred_check_branch
          %344 = sbr.rel (%p342) target = $region16
        $region15: #{inverted_residual_k_forward.1} parent=11 // pred_region
          _
        $region16: #{inverted_residual_k_forward.1} parent=11 // pred_fallthru
          _
        // Predicated region
        $region17: #{inverted_residual_k_forward.1} parent=11 // pred_check
          %p345 = pneg %p131
        $region18: #{inverted_residual_k_forward.1} parent=11 // pred_check_branch
          %347 = sbr.rel (%p345) target = $region20
        $region19: #{inverted_residual_k_forward.1} parent=11 // pred_region
          _
        $region20: #{inverted_residual_k_forward.1} parent=11 // pred_fallthru
          _
        // Predicated region
        $region21: #{inverted_residual_k_forward.1} parent=11 // pred_check
          %p348 = pneg %p152
        $region22: #{inverted_residual_k_forward.1} parent=11 // pred_check_branch
          %350 = sbr.rel (%p348) target = $region24
        $region23: #{inverted_residual_k_forward.1} parent=11 // pred_region
          _
        $region24: #{inverted_residual_k_forward.1} parent=11 // pred_fallthru
          _
        // Predicated region
        $region25: #{inverted_residual_k_forward.1} parent=11 // pred_check
          %p351 = pneg %p173
        $region26: #{inverted_residual_k_forward.1} parent=11 // pred_check_branch
          %353 = sbr.rel (%p351) target = $region28
        $region27: #{inverted_residual_k_forward.1} parent=11 // pred_region
          _
        $region28: #{inverted_residual_k_forward.1} parent=11 // pred_fallthru
          _
        // Predicated region
        $region29: #{inverted_residual_k_forward.1} parent=11 // pred_check
          %p354 = pneg %p194
        $region30: #{inverted_residual_k_forward.1} parent=11 // pred_check_branch
          %356 = sbr.rel (%p354) target = $region32
        $region31: #{inverted_residual_k_forward.1} parent=11 // pred_region
          %s358 = ssub.s32 256, 256
          %359 = vsyncadd [#allocation5], %s358
          %s360 = sshll.u32 [#allocation6], 4
          %s361 = int_to_ptr.vmem [resolvable:$true] %s360
          %366 = dma.hbm_to_vmem [thread:$0]  %s6, 256, %s361, [#allocation5], 128, 128, 8
        $region32: #{inverted_residual_k_forward.1} parent=11 // pred_fallthru
          _
        // Predicated region
        $region33: #{inverted_residual_k_forward.1} parent=11 // pred_check
          %p367 = pneg %p215
        $region34: #{inverted_residual_k_forward.1} parent=11 // pred_check_branch
          %369 = sbr.rel (%p367) target = $region36
        $region35: #{inverted_residual_k_forward.1} parent=11 // pred_region
          _
        $region36: #{inverted_residual_k_forward.1} parent=11 // pred_fallthru
          _
        // Predicated region
        $region37: #{inverted_residual_k_forward.1} parent=11 // pred_check
          %p370 = pneg %p236
        $region38: #{inverted_residual_k_forward.1} parent=11 // pred_check_branch
          %372 = sbr.rel (%p370) target = $region40
        $region39: #{inverted_residual_k_forward.1} parent=11 // pred_region
          _
        $region40: #{inverted_residual_k_forward.1} parent=11 // pred_fallthru
          _
        // Predicated region
        $region41: #{inverted_residual_k_forward.1} parent=11 // pred_check
          %p373 = pneg %p257
        $region42: #{inverted_residual_k_forward.1} parent=11 // pred_check_branch
          %375 = sbr.rel (%p373) target = $region44
        $region43: #{inverted_residual_k_forward.1} parent=11 // pred_region
          %s377 = ssub.s32 512, 512
          %378 = vsyncadd [#allocation8], %s377
          %s379 = sshll.u32 [#allocation7], 4
          %s380 = int_to_ptr.vmem [resolvable:$true] %s379
          %385 = dma.hbm_to_vmem [thread:$0]  %s9, 512, %s380, [#allocation8], 128, 128, 8
        $region44: #{inverted_residual_k_forward.1} parent=11 // pred_fallthru
          _
        // Predicated region
        $region45: #{inverted_residual_k_forward.1} parent=11 // pred_check
          %p386 = pneg %p278
        $region46: #{inverted_residual_k_forward.1} parent=11 // pred_check_branch
          %388 = sbr.rel (%p386) target = $region48
        $region47: #{inverted_residual_k_forward.1} parent=11 // pred_region
          _
        $region48: #{inverted_residual_k_forward.1} parent=11 // pred_fallthru
          _
        // Predicated region
        $region49: #{inverted_residual_k_forward.1} parent=11 // pred_check
          %p389 = pneg %p299
        $region50: #{inverted_residual_k_forward.1} parent=11 // pred_check_branch
          %391 = sbr.rel (%p389) target = $region52
        $region51: #{inverted_residual_k_forward.1} parent=11 // pred_region
          %s393 = ssub.s32 16, 16
          %394 = vsyncadd [#allocation8], %s393
          %s396 = sshll.u32 [#allocation9], 4
          %s397 = int_to_ptr.vmem [resolvable:$true] %s396
          %399 = dma.hbm_to_vmem [thread:$0]  %s11, 16, %s397, [#allocation8]
        $region52: #{inverted_residual_k_forward.1} parent=11 // pred_fallthru
          _
      $region12: #{inverted_residual_k_forward.1} parent=5 // pred_fallthru
        _
      %p400 = scmp.lt.s32.totalorder %s25, 4
      // Predicated region
      $region53: #{inverted_residual_k_forward.1} parent=5 // pred_check
        %p401 = pneg %p400
      $region54: #{inverted_residual_k_forward.1} parent=5 // pred_check_branch
        %403 = sbr.rel (%p401) target = $region56
      $region55: #{inverted_residual_k_forward.1} parent=5 // pred_region
        // Predicated region
        $region57: #{inverted_residual_k_forward.1} parent=55 // pred_check
          %p404 = pneg %p57
        $region58: #{inverted_residual_k_forward.1} parent=55 // pred_check_branch
          %406 = sbr.rel (%p404) target = $region60
        $region59: #{inverted_residual_k_forward.1} parent=55 // pred_region
          %s407 = sand.u32 %s47, 1
          %s408 = scalar_lea.sflag [#allocation3], %s407
          %s409 = sand.u32 %s47, 1
          %s410 = smul.addr %s409, 256
          %s411 = scalar_lea.vmem [#allocation2], %s410
          %s413 = ssub.s32 4096, 4096
          %414 = vsyncadd %s408, %s413
          %s415 = smul.addr %s32, 32
          %s416 = smul.addr %s415, 128
          %s417 = scalar_lea.hbm %s0, %s416
          %s418 = sshll.u32 %s411, 4
          %s419 = int_to_ptr.vmem [resolvable:$true] %s418
          %424 = dma.hbm_to_vmem [thread:$0]  %s417, 4096, %s419, %s408, 128, 128, 8
        $region60: #{inverted_residual_k_forward.1} parent=55 // pred_fallthru
          _
        // Predicated region
        $region61: #{inverted_residual_k_forward.1} parent=55 // pred_check
          %p425 = pneg %p83
        $region62: #{inverted_residual_k_forward.1} parent=55 // pred_check_branch
          %427 = sbr.rel (%p425) target = $region64
        $region63: #{inverted_residual_k_forward.1} parent=55 // pred_region
          %s428 = sand.u32 %s25, 1
          %s429 = scalar_lea.sflag [#allocation5], %s428
          %s430 = sand.u32 %s73, 1
          %s431 = smul.addr %s430, 160
          %s432 = scalar_lea.vmem [#allocation4], %s431
          %s434 = ssub.s32 2560, 2560
          %435 = vsyncadd %s429, %s434
          %s436 = smul.addr %s33, 20
          %s437 = smul.addr %s436, 128
          %s438 = scalar_lea.hbm %s1, %s437
          %s439 = sshll.u32 %s432, 4
          %s440 = int_to_ptr.vmem [resolvable:$true] %s439
          %445 = dma.hbm_to_vmem [thread:$0]  %s438, 2560, %s440, %s429, 128, 128, 8
        $region64: #{inverted_residual_k_forward.1} parent=55 // pred_fallthru
          _
      $region56: #{inverted_residual_k_forward.1} parent=5 // pred_fallthru
        _
      %p446 = scmp.le.s32.totalorder 1, %s25
      %p447 = scmp.lt.s32.totalorder %s25, 5
      %p448 = pnand %p446, %p447
      %p449 = pneg %p448
      // Predicated region
      $region65: #{inverted_residual_k_forward.1} parent=5 // pred_check
        _
      $region66: #{inverted_residual_k_forward.1} parent=5 // pred_check_branch
        %451 = sbr.rel (%p448) target = $region68
      $region67: #{inverted_residual_k_forward.1} parent=5 // pred_region
        %s452 = ssub.s32 %s25, 1
        %s453 = sand.u32 %s50, 1
        %s454 = scalar_lea.sflag [#allocation3], %s453
        %s455 = sand.u32 %s50, 1
        %s456 = smul.addr %s455, 256
        %s457 = scalar_lea.vmem [#allocation2], %s456
        // Predicated region
        $region69: #{inverted_residual_k_forward.1} parent=67 // pred_check
          %p458 = pneg %p63
        $region70: #{inverted_residual_k_forward.1} parent=67 // pred_check_branch
          %460 = sbr.rel (%p458) target = $region72
        $region71: #{inverted_residual_k_forward.1} parent=67 // pred_region
          %461 = dma.done %s454, 4096
        $region72: #{inverted_residual_k_forward.1} parent=67 // pred_fallthru
          _
        %s462 = sand.u32 %s30, 1
        %s463 = scalar_lea.sflag [#allocation5], %s462
        %s464 = sand.u32 %s76, 1
        %s465 = smul.addr %s464, 160
        %s466 = scalar_lea.vmem [#allocation4], %s465
        // Predicated region
        $region73: #{inverted_residual_k_forward.1} parent=67 // pred_check
          %p467 = pneg %p89
        $region74: #{inverted_residual_k_forward.1} parent=67 // pred_check_branch
          %469 = sbr.rel (%p467) target = $region76
        $region75: #{inverted_residual_k_forward.1} parent=67 // pred_region
          %470 = dma.done %s463, 2560
        $region76: #{inverted_residual_k_forward.1} parent=67 // pred_fallthru
          _
        // Predicated region
        $region77: #{inverted_residual_k_forward.1} parent=67 // pred_check
          %p471 = pneg %p194
        $region78: #{inverted_residual_k_forward.1} parent=67 // pred_check_branch
          %473 = sbr.rel (%p471) target = $region80
        $region79: #{inverted_residual_k_forward.1} parent=67 // pred_region
          %474 = dma.done [#allocation5], 256
        $region80: #{inverted_residual_k_forward.1} parent=67 // pred_fallthru
          _
        // Predicated region
        $region81: #{inverted_residual_k_forward.1} parent=67 // pred_check
          %p475 = pneg %p257
        $region82: #{inverted_residual_k_forward.1} parent=67 // pred_check_branch
          %477 = sbr.rel (%p475) target = $region84
        $region83: #{inverted_residual_k_forward.1} parent=67 // pred_region
          %478 = dma.done [#allocation8], 512
        $region84: #{inverted_residual_k_forward.1} parent=67 // pred_fallthru
          _
        // Predicated region
        $region85: #{inverted_residual_k_forward.1} parent=67 // pred_check
          %p479 = pneg %p299
        $region86: #{inverted_residual_k_forward.1} parent=67 // pred_check_branch
          %481 = sbr.rel (%p479) target = $region88
        $region87: #{inverted_residual_k_forward.1} parent=67 // pred_region
          %482 = dma.done [#allocation8], 16
        $region88: #{inverted_residual_k_forward.1} parent=67 // pred_fallthru
          _
        %s483 = sand.u32 %s50, 1
        %s484 = scalar_lea.sflag [#allocation3], %s483
        %s485 = sand.u32 %s50, 1
        %s486 = smul.addr %s485, 256
        %s487 = scalar_lea.vmem [#allocation2], %s486
        %p488 = pneg %p63
        %p489 = pneg %p60
        %s490 = sand.u32 %s30, 1
        %s491 = scalar_lea.sflag [#allocation5], %s490
        %s492 = sand.u32 %s76, 1
        %s493 = smul.addr %s492, 160
        %s494 = scalar_lea.vmem [#allocation4], %s493
        %p495 = pneg %p89
        %p496 = pneg %p86
        %p497 = pneg %p110
        %p498 = pneg %p107
        %p499 = pneg %p131
        %p500 = pneg %p128
        %p501 = pneg %p152
        %p502 = pneg %p149
        %p503 = pneg %p173
        %p504 = pneg %p170
        %p505 = pneg %p194
        %p506 = pneg %p191
        %p507 = pneg %p215
        %p508 = pneg %p212
        %p509 = pneg %p236
        %p510 = pneg %p233
        %p511 = pneg %p257
        %p512 = pneg %p254
        %p513 = pneg %p278
        %p514 = pneg %p275
        %p515 = pneg %p299
        %p516 = pneg %p296
        %p517 = pneg %p327
        %p518 = pneg %p324
        %s519 = smul.u32 8, %s35
        %p520 = scmp.lt.s32.totalorder %s34, 1
        %s521 = scalar_select %p520, %s34, 1
        %p522 = scmp.lt.s32.totalorder %s519, 15
        %s523 = scalar_select %p522, %s519, 15
        %s524 = smul.addr %s523, 2
        %s525 = smul.addr %s521, 32
        %s526 = sadd.s32 %s524, %s525
        %s527 = smul.addr %s526, 8
        %s528 = scalar_lea.vmem %s12, %s527
        %s529 = smul.u32 8, %s35
        %p530 = scmp.lt.s32.totalorder %s34, 1
        %s531 = scalar_select %p530, %s34, 1
        %p532 = scmp.lt.s32.totalorder %s529, 15
        %s533 = scalar_select %p532, %s529, 15
        %s534 = smul.addr %s533, 2
        %s535 = smul.addr %s531, 32
        %s536 = sadd.s32 %s534, %s535
        %s537 = smul.addr %s536, 8
        %s538 = scalar_lea.vmem %s12, %s537
        %s539 = smul.u32 8, %s35
        %s540 = smul.u32 %s35, 8
        %s541 = ssub.s32 %s540, 1
        %p542 = scmp.gt.s32.totalorder %s541, 0
        %s543 = scalar_select %p542, %s541, 0
        %s544 = sadd.s32 %s540, 8
        %p545 = scmp.lt.s32.totalorder %s544, 15
        %s546 = scalar_select %p545, %s544, 15
        %s547 = smul.u32 %s543, 16
        %s548 = scalar_lea.vmem %s457, %s547 [#allocation2]
        %v549 = vld [vmem:[%s548] sm:$0xff]
        %v550 = vld [vmem:[%s548 + $0x8] sm:$0xff]
        %s551 = smul.u32 %s540, 16
        %s552 = scalar_lea.vmem %s457, %s551 [#allocation2]
        %v553 = vld [vmem:[%s552] sm:$0xff]
        %v554 = vld [vmem:[%s552 + $0x8] sm:$0xff]
        %v555 = vld [vmem:[%s552 + $0x10] sm:$0xff]
        %v556 = vld [vmem:[%s552 + $0x18] sm:$0xff]
        %v557 = vld [vmem:[%s552 + $0x20] sm:$0xff]
        %v558 = vld [vmem:[%s552 + $0x28] sm:$0xff]
        %v559 = vld [vmem:[%s552 + $0x30] sm:$0xff]
        %v560 = vld [vmem:[%s552 + $0x38] sm:$0xff]
        %v561 = vld [vmem:[%s552 + $0x40] sm:$0xff]
        %v562 = vld [vmem:[%s552 + $0x48] sm:$0xff]
        %v563 = vld [vmem:[%s552 + $0x50] sm:$0xff]
        %v564 = vld [vmem:[%s552 + $0x58] sm:$0xff]
        %v565 = vld [vmem:[%s552 + $0x60] sm:$0xff]
        %v566 = vld [vmem:[%s552 + $0x68] sm:$0xff]
        %v567 = vld [vmem:[%s552 + $0x70] sm:$0xff]
        %v568 = vld [vmem:[%s552 + $0x78] sm:$0xff]
        %s569 = smul.u32 %s546, 16
        %s570 = scalar_lea.vmem %s457, %s569 [#allocation2]
        %v571 = vld [vmem:[%s570] sm:$0xff]
        %v572 = vld [vmem:[%s570 + $0x8] sm:$0xff]
        %v573 = vld [vmem:[%s466] sm:$0xff]
        %v574 = vld [vmem:[%s466 + $0x8] sm:$0xff]
        %v575 = vld [vmem:[%s466 + $0x10] sm:$0xff]
        %v576 = vld [vmem:[%s466 + $0x18] sm:$0xff]
        %v577 = vld [vmem:[%s466 + $0x20] sm:$0xff]
        %v578 = vld [vmem:[%s466 + $0x28] sm:$0xff]
        %v579 = vld [vmem:[%s466 + $0x30] sm:$0xff]
        %v580 = vld [vmem:[%s466 + $0x38] sm:$0xff]
        %v581 = vld [vmem:[%s466 + $0x40] sm:$0xff]
        %v582 = vld [vmem:[%s466 + $0x48] sm:$0xff]
        %v583 = vld [vmem:[%s466 + $0x50] sm:$0xff]
        %v584 = vld [vmem:[%s466 + $0x58] sm:$0xff]
        %v585 = vld [vmem:[%s466 + $0x60] sm:$0xff]
        %v586 = vld [vmem:[%s466 + $0x68] sm:$0xff]
        %v587 = vld [vmem:[%s466 + $0x70] sm:$0xff]
        %v588 = vld [vmem:[%s466 + $0x78] sm:$0xff]
        %v589 = vld [vmem:[%s466 + $0x80] sm:$0xff]
        %v590 = vld [vmem:[%s466 + $0x88] sm:$0xff]
        %v591 = vld [vmem:[%s466 + $0x90] sm:$0xff]
        %v592 = vld [vmem:[%s466 + $0x98] sm:$0xff]
        %v593 = vld [vmem:[%s2] sm:$0xff]
        %v594 = vld [vmem:[%s2 + $0x8] sm:$0xff]
        %v595 = vld [vmem:[%s2 + $0x10] sm:$0xff]
        %v596 = vld [vmem:[%s2 + $0x18] sm:$0xff]
        %v597 = vld [vmem:[%s2 + $0x20] sm:$0xff]
        %v598 = vld [vmem:[%s2 + $0x28] sm:$0xff]
        %v599 = vld [vmem:[%s2 + $0x30] sm:$0xff]
        %v600 = vld [vmem:[%s2 + $0x38] sm:$0xff]
        %v601 = vld [vmem:[%s2 + $0x40] sm:$0xff]
        %v602 = vld [vmem:[%s2 + $0x48] sm:$0xff]
        %v603 = vld [vmem:[%s2 + $0x50] sm:$0xff]
        %v604 = vld [vmem:[%s2 + $0x58] sm:$0xff]
        %v605 = vld [vmem:[%s2 + $0x60] sm:$0xff]
        %v606 = vld [vmem:[%s2 + $0x68] sm:$0xff]
        %v607 = vld [vmem:[%s2 + $0x70] sm:$0xff]
        %v608 = vld [vmem:[%s2 + $0x78] sm:$0xff]
        %v609 = vld [vmem:[%s2 + $0x80] sm:$0xff]
        %v610 = vld [vmem:[%s2 + $0x88] sm:$0xff]
        %v611 = vld [vmem:[%s2 + $0x90] sm:$0xff]
        %v612 = vld [vmem:[%s2 + $0x98] sm:$0xff]
        %v613 = vld [vmem:[%s3] sm:$0xff]
        %v614 = vld [vmem:[%s3 + $0x8] sm:$0xff]
        %v615 = vld [vmem:[%s3 + $0x10] sm:$0xff]
        %v616 = vld [vmem:[%s3 + $0x18] sm:$0xff]
        %v617 = vld [vmem:[%s3 + $0x20] sm:$0xff]
        %v618 = vld [vmem:[%s3 + $0x28] sm:$0xff]
        %v619 = vld [vmem:[%s3 + $0x30] sm:$0xff]
        %v620 = vld [vmem:[%s3 + $0x38] sm:$0xff]
        %vm621 = vcmask 523264
        %v623 = vsel %vm621, %v549, 0
        %v626 = vsel %vm621, %v550, 0
        %v629 = vsel %vm621, %v553, 0
        %v632 = vsel %vm621, %v554, 0
        %v635 = vsel %vm621, %v555, 0
        %v638 = vsel %vm621, %v556, 0
        %v641 = vsel %vm621, %v557, 0
        %v644 = vsel %vm621, %v558, 0
        %v647 = vsel %vm621, %v559, 0
        %v650 = vsel %vm621, %v560, 0
        %v653 = vsel %vm621, %v561, 0
        %v656 = vsel %vm621, %v562, 0
        %v659 = vsel %vm621, %v563, 0
        %v662 = vsel %vm621, %v564, 0
        %v665 = vsel %vm621, %v565, 0
        %v668 = vsel %vm621, %v566, 0
        %v671 = vsel %vm621, %v567, 0
        %v674 = vsel %vm621, %v568, 0
        %v677 = vsel %vm621, %v571, 0
        %v680 = vsel %vm621, %v572, 0
        %682 = vmatprep.subr.mxu0 0.0
        %v683 = vand.u32 %v613, 4294901760
        %684 = vmatpush1.msra.mxu0 %v683
        %685 = vmatprep.subr.mxu0 0.0
        %v686 = vand.u32 %v614, 4294901760
        %687 = vmatpush1.msra.mxu0 %v686
        %688 = vmatprep.subr.mxu0 0.0
        %v689 = vand.u32 %v615, 4294901760
        %690 = vmatpush1.msra.mxu0 %v689
        %691 = vmatprep.subr.mxu0 0.0
        %v692 = vand.u32 %v616, 4294901760
        %693 = vmatpush1.msra.mxu0 %v692
        %694 = vmatprep.subr.mxu0 0.0
        %v695 = vand.u32 %v617, 4294901760
        %696 = vmatpush1.msra.mxu0 %v695
        %697 = vmatprep.subr.mxu0 0.0
        %v698 = vand.u32 %v618, 4294901760
        %699 = vmatpush1.msra.mxu0 %v698
        %700 = vmatprep.subr.mxu0 0.0
        %v701 = vand.u32 %v619, 4294901760
        %702 = vmatpush1.msra.mxu0 %v701
        %703 = vmatprep.subr.mxu0 0.0
        %v704 = vand.u32 %v620, 4294901760
        %705 = vmatpush1.msra.mxu0 %v704
        %706 = vmatprep.subr.mxu0 0.0
        %707 = vmatpush1.msra.mxu0 0.0
        %708 = vmatprep.subr.mxu0 0.0
        %709 = vmatpush1.msra.mxu0 0.0
        %710 = vmatprep.subr.mxu0 0.0
        %711 = vmatpush1.msra.mxu0 0.0
        %712 = vmatprep.subr.mxu0 0.0
        %713 = vmatpush1.msra.mxu0 0.0
        %714 = vmatprep.subr.mxu0 0.0
        %715 = vmatpush1.msra.mxu0 0.0
        %716 = vmatprep.subr.mxu0 0.0
        %717 = vmatpush1.msra.mxu0 0.0
        %718 = vmatprep.subr.mxu0 0.0
        %719 = vmatpush1.msra.mxu0 0.0
        %720 = vmatprep.subr.mxu0 0.0
        %721 = vmatpush1.msra.mxu0 0.0
        %722 = vmatprep.subr.mxu0 0.0
        %723 = vmatpush1.msra.mxu0 0.0
        %724 = vmatprep.subr.mxu0 0.0
        %725 = vmatpush1.msra.mxu0 0.0
        %726 = vmatprep.subr.mxu0 0.0
        %727 = vmatpush1.msra.mxu0 0.0
        %728 = vmatprep.subr.mxu0 0.0
        %729 = vmatpush1.msra.mxu0 0.0
        %730 = vmatprep.subr.mxu0 0.0
        %731 = vmatpush1.msra.mxu0 0.0
        %732 = vmatprep.subr.mxu0 0.0
        %733 = vmatpush1.msra.mxu0 0.0
        %734 = vmatprep.subr.mxu0 0.0
        %735 = vmatpush1.msra.mxu0 0.0
        %736 = vmatprep.subr.mxu0 0.0
        %737 = vmatpush1.msra.mxu0 0.0
        %738 = vmatprep.subr.mxu0 0.0
        %739 = vmatpush1.msra.mxu0 0.0
        %740 = vmatprep.subr.mxu0 0.0
        %741 = vmatpush1.msra.mxu0 0.0
        %742 = vmatprep.subr.mxu0 0.0
        %743 = vmatpush1.msra.mxu0 0.0
        %744 = vmatprep.subr.mxu0 0.0
        %745 = vmatpush1.msra.mxu0 0.0
        %746 = vmatprep.subr.mxu0 0.0
        %747 = vmatpush1.msra.mxu0 0.0
        %748 = vmatprep.subr.mxu0 0.0
        %749 = vmatpush1.msra.mxu0 0.0
        %750 = vmatprep.subr.mxu0 0.0
        %751 = vmatpush1.msra.mxu0 0.0
        %752 = vmatprep.subr.mxu0 0.0
        %753 = vmatpush1.msra.mxu0 0.0
        %754 = vmatprep.mubr.f32.mxu0 0.0
        %v755 = vand.u32 %v623, 4294901760
        %v756 = vsub.f32 %v623, %v755
        %v757 = vand.u32 %v756, 4294901760
        %v758 = vsub.f32 %v756, %v757
        %v759 = vand.u32 %v758, 4294901760
        %760 = vmatmul.mubr.f32.gmra.mrb[0].mxu0 %v759
        %v761 = vpop.f32.mrb[0].mxu0
        %v762 = vadd.f32 0.0, %v761
        %v763 = vpop.f32.mrb[0].mxu0
        %764 = vmatprep.mubr.f32.mxu0 0.0
        %v765 = vand.u32 %v626, 4294901760
        %v766 = vsub.f32 %v626, %v765
        %v767 = vand.u32 %v766, 4294901760
        %v768 = vsub.f32 %v766, %v767
        %v769 = vand.u32 %v768, 4294901760
        %770 = vmatmul.mubr.f32.gmra.mrb[0].mxu0 %v769
        %v771 = vpop.f32.mrb[0].mxu0
        %v772 = vadd.f32 0.0, %v771
        %v773 = vpop.f32.mrb[0].mxu0
        %774 = vmatprep.mubr.f32.mxu0 0.0
        %v775 = vand.u32 %v629, 4294901760
        %v776 = vsub.f32 %v629, %v775
        %v777 = vand.u32 %v776, 4294901760
        %v778 = vsub.f32 %v776, %v777
        %v779 = vand.u32 %v778, 4294901760
        %780 = vmatmul.mubr.f32.gmra.mrb[0].mxu0 %v779
        %v781 = vpop.f32.mrb[0].mxu0
        %v782 = vadd.f32 0.0, %v781
        %v783 = vpop.f32.mrb[0].mxu0
        %784 = vmatprep.mubr.f32.mxu0 0.0
        %v785 = vand.u32 %v632, 4294901760
        %v786 = vsub.f32 %v632, %v785
        %v787 = vand.u32 %v786, 4294901760
        %v788 = vsub.f32 %v786, %v787
        %v789 = vand.u32 %v788, 4294901760
        %790 = vmatmul.mubr.f32.gmra.mrb[0].mxu0 %v789
        %v791 = vpop.f32.mrb[0].mxu0
        %v792 = vadd.f32 0.0, %v791
        %v793 = vpop.f32.mrb[0].mxu0
        %794 = vmatprep.mubr.f32.mxu0 0.0
        %v795 = vand.u32 %v635, 4294901760
        %v796 = vsub.f32 %v635, %v795
        %v797 = vand.u32 %v796, 4294901760
        %v798 = vsub.f32 %v796, %v797
        %v799 = vand.u32 %v798, 4294901760
        %800 = vmatmul.mubr.f32.gmra.mrb[0].mxu0 %v799
        %v801 = vpop.f32.mrb[0].mxu0
        %v802 = vadd.f32 0.0, %v801
        %v803 = vpop.f32.mrb[0].mxu0
        %804 = vmatprep.mubr.f32.mxu0 0.0
        %v805 = vand.u32 %v638, 4294901760
        %v806 = vsub.f32 %v638, %v805
        %v807 = vand.u32 %v806, 4294901760
        %v808 = vsub.f32 %v806, %v807
        %v809 = vand.u32 %v808, 4294901760
        %810 = vmatmul.mubr.f32.gmra.mrb[0].mxu0 %v809
        %v811 = vpop.f32.mrb[0].mxu0
        %v812 = vadd.f32 0.0, %v811
        %v813 = vpop.f32.mrb[0].mxu0
        %814 = vmatprep.mubr.f32.mxu0 0.0
        %v815 = vand.u32 %v641, 4294901760
        %v816 = vsub.f32 %v641, %v815
        %v817 = vand.u32 %v816, 4294901760
        %v818 = vsub.f32 %v816, %v817
        %v819 = vand.u32 %v818, 4294901760
        %820 = vmatmul.mubr.f32.gmra.mrb[0].mxu0 %v819
        %v821 = vpop.f32.mrb[0].mxu0
        %v822 = vadd.f32 0.0, %v821
        %v823 = vpop.f32.mrb[0].mxu0
        %824 = vmatprep.mubr.f32.mxu0 0.0
        %v825 = vand.u32 %v644, 4294901760
        %v826 = vsub.f32 %v644, %v825
        %v827 = vand.u32 %v826, 4294901760
        %v828 = vsub.f32 %v826, %v827
        %v829 = vand.u32 %v828, 4294901760
        %830 = vmatmul.mubr.f32.gmra.mrb[0].mxu0 %v829
        %v831 = vpop.f32.mrb[0].mxu0
        %v832 = vadd.f32 0.0, %v831
        %v833 = vpop.f32.mrb[0].mxu0
        %834 = vmatprep.mubr.f32.mxu0 0.0
        %v835 = vand.u32 %v647, 4294901760
        %v836 = vsub.f32 %v647, %v835
        %v837 = vand.u32 %v836, 4294901760
        %v838 = vsub.f32 %v836, %v837
        %v839 = vand.u32 %v838, 4294901760
        %840 = vmatmul.mubr.f32.gmra.mrb[0].mxu0 %v839
        %v841 = vpop.f32.mrb[0].mxu0
        %v842 = vadd.f32 0.0, %v841
        %v843 = vpop.f32.mrb[0].mxu0
        %844 = vmatprep.mubr.f32.mxu0 0.0
        %v845 = vand.u32 %v650, 4294901760
        %v846 = vsub.f32 %v650, %v845
        %v847 = vand.u32 %v846, 4294901760
        %v848 = vsub.f32 %v846, %v847
        %v849 = vand.u32 %v848, 4294901760
        %850 = vmatmul.mubr.f32.gmra.mrb[0].mxu0 %v849
        %v851 = vpop.f32.mrb[0].mxu0
        %v852 = vadd.f32 0.0, %v851
        %v853 = vpop.f32.mrb[0].mxu0
        %854 = vmatprep.mubr.f32.mxu0 0.0
        %v855 = vand.u32 %v653, 4294901760
        %v856 = vsub.f32 %v653, %v855
        %v857 = vand.u32 %v856, 4294901760
        %v858 = vsub.f32 %v856, %v857
        %v859 = vand.u32 %v858, 4294901760
        %860 = vmatmul.mubr.f32.gmra.mrb[0].mxu0 %v859
        %v861 = vpop.f32.mrb[0].mxu0
        %v862 = vadd.f32 0.0, %v861
        %v863 = vpop.f32.mrb[0].mxu0
        %864 = vmatprep.mubr.f32.mxu0 0.0
        %v865 = vand.u32 %v656, 4294901760
        %v866 = vsub.f32 %v656, %v865
        %v867 = vand.u32 %v866, 4294901760
        %v868 = vsub.f32 %v866, %v867
        %v869 = vand.u32 %v868, 4294901760
        %870 = vmatmul.mubr.f32.gmra.mrb[0].mxu0 %v869
        %v871 = vpop.f32.mrb[0].mxu0
        %v872 = vadd.f32 0.0, %v871
        %v873 = vpop.f32.mrb[0].mxu0
        %874 = vmatprep.mubr.f32.mxu0 0.0
        %v875 = vand.u32 %v659, 4294901760
        %v876 = vsub.f32 %v659, %v875
        %v877 = vand.u32 %v876, 4294901760
        %v878 = vsub.f32 %v876, %v877
        %v879 = vand.u32 %v878, 4294901760
        %880 = vmatmul.mubr.f32.gmra.mrb[0].mxu0 %v879
        %v881 = vpop.f32.mrb[0].mxu0
        %v882 = vadd.f32 0.0, %v881
        %v883 = vpop.f32.mrb[0].mxu0
        %884 = vmatprep.mubr.f32.mxu0 0.0
        %v885 = vand.u32 %v662, 4294901760
        %v886 = vsub.f32 %v662, %v885
        %v887 = vand.u32 %v886, 4294901760
        %v888 = vsub.f32 %v886, %v887
        %v889 = vand.u32 %v888, 4294901760
        %890 = vmatmul.mubr.f32.gmra.mrb[0].mxu0 %v889
        %v891 = vpop.f32.mrb[0].mxu0
        %v892 = vadd.f32 0.0, %v891
        %v893 = vpop.f32.mrb[0].mxu0
        %894 = vmatprep.mubr.f32.mxu0 0.0
        %v895 = vand.u32 %v665, 4294901760
        %v896 = vsub.f32 %v665, %v895
        %v897 = vand.u32 %v896, 4294901760
        %v898 = vsub.f32 %v896, %v897
        %v899 = vand.u32 %v898, 4294901760
        %900 = vmatmul.mubr.f32.gmra.mrb[0].mxu0 %v899
        %v901 = vpop.f32.mrb[0].mxu0
        %v902 = vadd.f32 0.0, %v901
        %v903 = vpop.f32.mrb[0].mxu0
        %904 = vmatprep.mubr.f32.mxu0 0.0
        %v905 = vand.u32 %v668, 4294901760
        %v906 = vsub.f32 %v668, %v905
        %v907 = vand.u32 %v906, 4294901760
        %v908 = vsub.f32 %v906, %v907
        %v909 = vand.u32 %v908, 4294901760
        %910 = vmatmul.mubr.f32.gmra.mrb[0].mxu0 %v909
        %v911 = vpop.f32.mrb[0].mxu0
        %v912 = vadd.f32 0.0, %v911
        %v913 = vpop.f32.mrb[0].mxu0
        %914 = vmatprep.mubr.f32.mxu0 0.0
        %v915 = vand.u32 %v671, 4294901760
        %v916 = vsub.f32 %v671, %v915
        %v917 = vand.u32 %v916, 4294901760
        %v918 = vsub.f32 %v916, %v917
        %v919 = vand.u32 %v918, 4294901760
        %920 = vmatmul.mubr.f32.gmra.mrb[0].mxu0 %v919
        %v921 = vpop.f32.mrb[0].mxu0
        %v922 = vadd.f32 0.0, %v921
        %v923 = vpop.f32.mrb[0].mxu0
        %924 = vmatprep.mubr.f32.mxu0 0.0
        %v925 = vand.u32 %v674, 4294901760
        %v926 = vsub.f32 %v674, %v925
        %v927 = vand.u32 %v926, 4294901760
        %v928 = vsub.f32 %v926, %v927
        %v929 = vand.u32 %v928, 4294901760
        %930 = vmatmul.mubr.f32.gmra.mrb[0].mxu0 %v929
        %v931 = vpop.f32.mrb[0].mxu0
        %v932 = vadd.f32 0.0, %v931
        %v933 = vpop.f32.mrb[0].mxu0
        %934 = vmatprep.mubr.f32.mxu0 0.0
        %v935 = vand.u32 %v677, 4294901760
        %v936 = vsub.f32 %v677, %v935
        %v937 = vand.u32 %v936, 4294901760
        %v938 = vsub.f32 %v936, %v937
        %v939 = vand.u32 %v938, 4294901760
        %940 = vmatmul.mubr.f32.gmra.mrb[0].mxu0 %v939
        %v941 = vpop.f32.mrb[0].mxu0
        %v942 = vadd.f32 0.0, %v941
        %v943 = vpop.f32.mrb[0].mxu0
        %944 = vmatprep.mubr.f32.mxu0 0.0
        %v945 = vand.u32 %v680, 4294901760
        %v946 = vsub.f32 %v680, %v945
        %v947 = vand.u32 %v946, 4294901760
        %v948 = vsub.f32 %v946, %v947
        %v949 = vand.u32 %v948, 4294901760
        %950 = vmatmul.mubr.f32.gmra.mrb[0].mxu0 %v949
        %v951 = vpop.f32.mrb[0].mxu0
        %v952 = vadd.f32 0.0, %v951
        %v953 = vpop.f32.mrb[0].mxu0
        %954 = vdwg.mxu0
        %955 = vmatprep.subr.mxu0 0.0
        %v956 = vand.u32 %v613, 4294901760
        %v957 = vsub.f32 %v613, %v956
        %v958 = vand.u32 %v957, 4294901760
        %v959 = vsub.f32 %v957, %v958
        %v960 = vand.u32 %v959, 4294901760
        %961 = vmatpush1.msra.mxu0 %v960
        %962 = vmatprep.subr.mxu0 0.0
        %v963 = vand.u32 %v614, 4294901760
        %v964 = vsub.f32 %v614, %v963
        %v965 = vand.u32 %v964, 4294901760
        %v966 = vsub.f32 %v964, %v965
        %v967 = vand.u32 %v966, 4294901760
        %968 = vmatpush1.msra.mxu0 %v967
        %969 = vmatprep.subr.mxu0 0.0
        %v970 = vand.u32 %v615, 4294901760
        %v971 = vsub.f32 %v615, %v970
        %v972 = vand.u32 %v971, 4294901760
        %v973 = vsub.f32 %v971, %v972
        %v974 = vand.u32 %v973, 4294901760
        %975 = vmatpush1.msra.mxu0 %v974
        %976 = vmatprep.subr.mxu0 0.0
        %v977 = vand.u32 %v616, 4294901760
        %v978 = vsub.f32 %v616, %v977
        %v979 = vand.u32 %v978, 4294901760
        %v980 = vsub.f32 %v978, %v979
        %v981 = vand.u32 %v980, 4294901760
        %982 = vmatpush1.msra.mxu0 %v981
        %983 = vmatprep.subr.mxu0 0.0
        %v984 = vand.u32 %v617, 4294901760
        %v985 = vsub.f32 %v617, %v984
        %v986 = vand.u32 %v985, 4294901760
        %v987 = vsub.f32 %v985, %v986
        %v988 = vand.u32 %v987, 4294901760
        %989 = vmatpush1.msra.mxu0 %v988
        %990 = vmatprep.subr.mxu0 0.0
        %v991 = vand.u32 %v618, 4294901760
        %v992 = vsub.f32 %v618, %v991
        %v993 = vand.u32 %v992, 4294901760
        %v994 = vsub.f32 %v992, %v993
        %v995 = vand.u32 %v994, 4294901760
        %996 = vmatpush1.msra.mxu0 %v995
        %997 = vmatprep.subr.mxu0 0.0
        %v998 = vand.u32 %v619, 4294901760
        %v999 = vsub.f32 %v619, %v998
        %v1000 = vand.u32 %v999, 4294901760
        %v1001 = vsub.f32 %v999, %v1000
        %v1002 = vand.u32 %v1001, 4294901760
        %1003 = vmatpush1.msra.mxu0 %v1002
        %1004 = vmatprep.subr.mxu0 0.0
        %v1005 = vand.u32 %v620, 4294901760
        %v1006 = vsub.f32 %v620, %v1005
        %v1007 = vand.u32 %v1006, 4294901760
        %v1008 = vsub.f32 %v1006, %v1007
        %v1009 = vand.u32 %v1008, 4294901760
        %1010 = vmatpush1.msra.mxu0 %v1009
        %1011 = vmatprep.subr.mxu0 0.0
        %1012 = vmatpush1.msra.mxu0 0.0
        %1013 = vmatprep.subr.mxu0 0.0
        %1014 = vmatpush1.msra.mxu0 0.0
        %1015 = vmatprep.subr.mxu0 0.0
        %1016 = vmatpush1.msra.mxu0 0.0
        %1017 = vmatprep.subr.mxu0 0.0
        %1018 = vmatpush1.msra.mxu0 0.0
        %1019 = vmatprep.subr.mxu0 0.0
        %1020 = vmatpush1.msra.mxu0 0.0
        %1021 = vmatprep.subr.mxu0 0.0
        %1022 = vmatpush1.msra.mxu0 0.0
        %1023 = vmatprep.subr.mxu0 0.0
        %1024 = vmatpush1.msra.mxu0 0.0
        %1025 = vmatprep.subr.mxu0 0.0
        %1026 = vmatpush1.msra.mxu0 0.0
        %1027 = vmatprep.subr.mxu0 0.0
        %1028 = vmatpush1.msra.mxu0 0.0
        %1029 = vmatprep.subr.mxu0 0.0
        %1030 = vmatpush1.msra.mxu0 0.0
        %1031 = vmatprep.subr.mxu0 0.0
        %1032 = vmatpush1.msra.mxu0 0.0
        %1033 = vmatprep.subr.mxu0 0.0
        %1034 = vmatpush1.msra.mxu0 0.0
        %1035 = vmatprep.subr.mxu0 0.0
        %1036 = vmatpush1.msra.mxu0 0.0
        %1037 = vmatprep.subr.mxu0 0.0
        %1038 = vmatpush1.msra.mxu0 0.0
        %1039 = vmatprep.subr.mxu0 0.0
        %1040 = vmatpush1.msra.mxu0 0.0
        %1041 = vmatprep.subr.mxu0 0.0
        %1042 = vmatpush1.msra.mxu0 0.0
        %1043 = vmatprep.subr.mxu0 0.0
        %1044 = vmatpush1.msra.mxu0 0.0
        %1045 = vmatprep.subr.mxu0 0.0
        %1046 = vmatpush1.msra.mxu0 0.0
        %1047 = vmatprep.subr.mxu0 0.0
        %1048 = vmatpush1.msra.mxu0 0.0
        %1049 = vmatprep.subr.mxu0 0.0
        %1050 = vmatpush1.msra.mxu0 0.0
        %1051 = vmatprep.subr.mxu0 0.0
        %1052 = vmatpush1.msra.mxu0 0.0
        %1053 = vmatprep.subr.mxu0 0.0
        %1054 = vmatpush1.msra.mxu0 0.0
        %1055 = vmatprep.subr.mxu0 0.0
        %1056 = vmatpush1.msra.mxu0 0.0
        %1057 = vmatprep.subr.mxu0 0.0
        %1058 = vmatpush1.msra.mxu0 0.0
        %1059 = vmatprep.mubr.f32.mxu0 0.0
        %v1060 = vand.u32 %v623, 4294901760
        %1061 = vmatmul.mubr.f32.gmra.mrb[0].mxu0 %v1060
        %v1062 = vpop.f32.mrb[0].mxu0
        %v1063 = vadd.f32 %v762, %v1062
        %v1064 = vpop.f32.mrb[0].mxu0
        %1065 = vmatprep.mubr.f32.mxu0 0.0
        %v1066 = vand.u32 %v626, 4294901760
        %1067 = vmatmul.mubr.f32.gmra.mrb[0].mxu0 %v1066
        %v1068 = vpop.f32.mrb[0].mxu0
        %v1069 = vadd.f32 %v772, %v1068
        %v1070 = vpop.f32.mrb[0].mxu0
        %1071 = vmatprep.mubr.f32.mxu0 0.0
        %v1072 = vand.u32 %v629, 4294901760
        %1073 = vmatmul.mubr.f32.gmra.mrb[0].mxu0 %v1072
        %v1074 = vpop.f32.mrb[0].mxu0
        %v1075 = vadd.f32 %v782, %v1074
        %v1076 = vpop.f32.mrb[0].mxu0
        %1077 = vmatprep.mubr.f32.mxu0 0.0
        %v1078 = vand.u32 %v632, 4294901760
        %1079 = vmatmul.mubr.f32.gmra.mrb[0].mxu0 %v1078
        %v1080 = vpop.f32.mrb[0].mxu0
        %v1081 = vadd.f32 %v792, %v1080
        %v1082 = vpop.f32.mrb[0].mxu0
        %1083 = vmatprep.mubr.f32.mxu0 0.0
        %v1084 = vand.u32 %v635, 4294901760
        %1085 = vmatmul.mubr.f32.gmra.mrb[0].mxu0 %v1084
        %v1086 = vpop.f32.mrb[0].mxu0
        %v1087 = vadd.f32 %v802, %v1086
        %v1088 = vpop.f32.mrb[0].mxu0
        %1089 = vmatprep.mubr.f32.mxu0 0.0
        %v1090 = vand.u32 %v638, 4294901760
        %1091 = vmatmul.mubr.f32.gmra.mrb[0].mxu0 %v1090
        %v1092 = vpop.f32.mrb[0].mxu0
        %v1093 = vadd.f32 %v812, %v1092
        %v1094 = vpop.f32.mrb[0].mxu0
        %1095 = vmatprep.mubr.f32.mxu0 0.0
        %v1096 = vand.u32 %v641, 4294901760
        %1097 = vmatmul.mubr.f32.gmra.mrb[0].mxu0 %v1096
        %v1098 = vpop.f32.mrb[0].mxu0
        %v1099 = vadd.f32 %v822, %v1098
        %v1100 = vpop.f32.mrb[0].mxu0
        %1101 = vmatprep.mubr.f32.mxu0 0.0
        %v1102 = vand.u32 %v644, 4294901760
        %1103 = vmatmul.mubr.f32.gmra.mrb[0].mxu0 %v1102
        %v1104 = vpop.f32.mrb[0].mxu0
        %v1105 = vadd.f32 %v832, %v1104
        %v1106 = vpop.f32.mrb[0].mxu0
        %1107 = vmatprep.mubr.f32.mxu0 0.0
        %v1108 = vand.u32 %v647, 4294901760
        %1109 = vmatmul.mubr.f32.gmra.mrb[0].mxu0 %v1108
        %v1110 = vpop.f32.mrb[0].mxu0
        %v1111 = vadd.f32 %v842, %v1110
        %v1112 = vpop.f32.mrb[0].mxu0
        %1113 = vmatprep.mubr.f32.mxu0 0.0
        %v1114 = vand.u32 %v650, 4294901760
        %1115 = vmatmul.mubr.f32.gmra.mrb[0].mxu0 %v1114
        %v1116 = vpop.f32.mrb[0].mxu0
        %v1117 = vadd.f32 %v852, %v1116
        %v1118 = vpop.f32.mrb[0].mxu0
        %1119 = vmatprep.mubr.f32.mxu0 0.0
        %v1120 = vand.u32 %v653, 4294901760
        %1121 = vmatmul.mubr.f32.gmra.mrb[0].mxu0 %v1120
        %v1122 = vpop.f32.mrb[0].mxu0
        %v1123 = vadd.f32 %v862, %v1122
        %v1124 = vpop.f32.mrb[0].mxu0
        %1125 = vmatprep.mubr.f32.mxu0 0.0
        %v1126 = vand.u32 %v656, 4294901760
        %1127 = vmatmul.mubr.f32.gmra.mrb[0].mxu0 %v1126
        %v1128 = vpop.f32.mrb[0].mxu0
        %v1129 = vadd.f32 %v872, %v1128
        %v1130 = vpop.f32.mrb[0].mxu0
        %1131 = vmatprep.mubr.f32.mxu0 0.0
        %v1132 = vand.u32 %v659, 4294901760
        %1133 = vmatmul.mubr.f32.gmra.mrb[0].mxu0 %v1132
        %v1134 = vpop.f32.mrb[0].mxu0
        %v1135 = vadd.f32 %v882, %v1134
        %v1136 = vpop.f32.mrb[0].mxu0
        %1137 = vmatprep.mubr.f32.mxu0 0.0
        %v1138 = vand.u32 %v662, 4294901760
        %1139 = vmatmul.mubr.f32.gmra.mrb[0].mxu0 %v1138
        %v1140 = vpop.f32.mrb[0].mxu0
        %v1141 = vadd.f32 %v892, %v1140
        %v1142 = vpop.f32.mrb[0].mxu0
        %1143 = vmatprep.mubr.f32.mxu0 0.0
        %v1144 = vand.u32 %v665, 4294901760
        %1145 = vmatmul.mubr.f32.gmra.mrb[0].mxu0 %v1144
        %v1146 = vpop.f32.mrb[0].mxu0
        %v1147 = vadd.f32 %v902, %v1146
        %v1148 = vpop.f32.mrb[0].mxu0
        %1149 = vmatprep.mubr.f32.mxu0 0.0
        %v1150 = vand.u32 %v668, 4294901760
        %1151 = vmatmul.mubr.f32.gmra.mrb[0].mxu0 %v1150
        %v1152 = vpop.f32.mrb[0].mxu0
        %v1153 = vadd.f32 %v912, %v1152
        %v1154 = vpop.f32.mrb[0].mxu0
        %1155 = vmatprep.mubr.f32.mxu0 0.0
        %v1156 = vand.u32 %v671, 4294901760
        %1157 = vmatmul.mubr.f32.gmra.mrb[0].mxu0 %v1156
        %v1158 = vpop.f32.mrb[0].mxu0
        %v1159 = vadd.f32 %v922, %v1158
        %v1160 = vpop.f32.mrb[0].mxu0
        %1161 = vmatprep.mubr.f32.mxu0 0.0
        %v1162 = vand.u32 %v674, 4294901760
        %1163 = vmatmul.mubr.f32.gmra.mrb[0].mxu0 %v1162
        %v1164 = vpop.f32.mrb[0].mxu0
        %v1165 = vadd.f32 %v932, %v1164
        %v1166 = vpop.f32.mrb[0].mxu0
        %1167 = vmatprep.mubr.f32.mxu0 0.0
        %v1168 = vand.u32 %v677, 4294901760
        %1169 = vmatmul.mubr.f32.gmra.mrb[0].mxu0 %v1168
        %v1170 = vpop.f32.mrb[0].mxu0
        %v1171 = vadd.f32 %v942, %v1170
        %v1172 = vpop.f32.mrb[0].mxu0
        %1173 = vmatprep.mubr.f32.mxu0 0.0
        %v1174 = vand.u32 %v680, 4294901760
        %1175 = vmatmul.mubr.f32.gmra.mrb[0].mxu0 %v1174
        %v1176 = vpop.f32.mrb[0].mxu0
        %v1177 = vadd.f32 %v952, %v1176
        %v1178 = vpop.f32.mrb[0].mxu0
        %1179 = vdwg.mxu0
        %1180 = vmatprep.subr.mxu0 0.0
        %v1181 = vand.u32 %v613, 4294901760
        %v1182 = vsub.f32 %v613, %v1181
        %1183 = vmatpush1.msra.mxu0 %v1182
        %1184 = vmatprep.subr.mxu0 0.0
        %v1185 = vand.u32 %v614, 4294901760
        %v1186 = vsub.f32 %v614, %v1185
        %1187 = vmatpush1.msra.mxu0 %v1186
        %1188 = vmatprep.subr.mxu0 0.0
        %v1189 = vand.u32 %v615, 4294901760
        %v1190 = vsub.f32 %v615, %v1189
        %1191 = vmatpush1.msra.mxu0 %v1190
        %1192 = vmatprep.subr.mxu0 0.0
        %v1193 = vand.u32 %v616, 4294901760
        %v1194 = vsub.f32 %v616, %v1193
        %1195 = vmatpush1.msra.mxu0 %v1194
        %1196 = vmatprep.subr.mxu0 0.0
        %v1197 = vand.u32 %v617, 4294901760
        %v1198 = vsub.f32 %v617, %v1197
        %1199 = vmatpush1.msra.mxu0 %v1198
        %1200 = vmatprep.subr.mxu0 0.0
        %v1201 = vand.u32 %v618, 4294901760
        %v1202 = vsub.f32 %v618, %v1201
        %1203 = vmatpush1.msra.mxu0 %v1202
        %1204 = vmatprep.subr.mxu0 0.0
        %v1205 = vand.u32 %v619, 4294901760
        %v1206 = vsub.f32 %v619, %v1205
        %1207 = vmatpush1.msra.mxu0 %v1206
        %1208 = vmatprep.subr.mxu0 0.0
        %v1209 = vand.u32 %v620, 4294901760
        %v1210 = vsub.f32 %v620, %v1209
        %1211 = vmatpush1.msra.mxu0 %v1210
        %1212 = vmatprep.subr.mxu0 0.0
        %1213 = vmatpush1.msra.mxu0 0.0
        %1214 = vmatprep.subr.mxu0 0.0
        %1215 = vmatpush1.msra.mxu0 0.0
        %1216 = vmatprep.subr.mxu0 0.0
        %1217 = vmatpush1.msra.mxu0 0.0
        %1218 = vmatprep.subr.mxu0 0.0
        %1219 = vmatpush1.msra.mxu0 0.0
        %1220 = vmatprep.subr.mxu0 0.0
        %1221 = vmatpush1.msra.mxu0 0.0
        %1222 = vmatprep.subr.mxu0 0.0
        %1223 = vmatpush1.msra.mxu0 0.0
        %1224 = vmatprep.subr.mxu0 0.0
        %1225 = vmatpush1.msra.mxu0 0.0
        %1226 = vmatprep.subr.mxu0 0.0
        %1227 = vmatpush1.msra.mxu0 0.0
        %1228 = vmatprep.subr.mxu0 0.0
        %1229 = vmatpush1.msra.mxu0 0.0
        %1230 = vmatprep.subr.mxu0 0.0
        %1231 = vmatpush1.msra.mxu0 0.0
        %1232 = vmatprep.subr.mxu0 0.0
        %1233 = vmatpush1.msra.mxu0 0.0
        %1234 = vmatprep.subr.mxu0 0.0
        %1235 = vmatpush1.msra.mxu0 0.0
        %1236 = vmatprep.subr.mxu0 0.0
        %1237 = vmatpush1.msra.mxu0 0.0
        %1238 = vmatprep.subr.mxu0 0.0
        %1239 = vmatpush1.msra.mxu0 0.0
        %1240 = vmatprep.subr.mxu0 0.0
        %1241 = vmatpush1.msra.mxu0 0.0
        %1242 = vmatprep.subr.mxu0 0.0
        %1243 = vmatpush1.msra.mxu0 0.0
        %1244 = vmatprep.subr.mxu0 0.0
        %1245 = vmatpush1.msra.mxu0 0.0
        %1246 = vmatprep.subr.mxu0 0.0
        %1247 = vmatpush1.msra.mxu0 0.0
        %1248 = vmatprep.subr.mxu0 0.0
        %1249 = vmatpush1.msra.mxu0 0.0
        %1250 = vmatprep.subr.mxu0 0.0
        %1251 = vmatpush1.msra.mxu0 0.0
        %1252 = vmatprep.subr.mxu0 0.0
        %1253 = vmatpush1.msra.mxu0 0.0
        %1254 = vmatprep.subr.mxu0 0.0
        %1255 = vmatpush1.msra.mxu0 0.0
        %1256 = vmatprep.subr.mxu0 0.0
        %1257 = vmatpush1.msra.mxu0 0.0
        %1258 = vmatprep.subr.mxu0 0.0
        %1259 = vmatpush1.msra.mxu0 0.0
        %1260 = vmatprep.mubr.f32.mxu0 0.0
        %v1261 = vand.u32 %v623, 4294901760
        %v1262 = vsub.f32 %v623, %v1261
        %1263 = vmatmul.mubr.f32.gmra.mrb[0].mxu0 %v1262
        %v1264 = vpop.f32.mrb[0].mxu0
        %v1265 = vadd.f32 %v1063, %v1264
        %v1266 = vpop.f32.mrb[0].mxu0
        %1267 = vmatprep.mubr.f32.mxu0 0.0
        %v1268 = vand.u32 %v626, 4294901760
        %v1269 = vsub.f32 %v626, %v1268
        %1270 = vmatmul.mubr.f32.gmra.mrb[0].mxu0 %v1269
        %v1271 = vpop.f32.mrb[0].mxu0
        %v1272 = vadd.f32 %v1069, %v1271
        %v1273 = vpop.f32.mrb[0].mxu0
        %1274 = vmatprep.mubr.f32.mxu0 0.0
        %v1275 = vand.u32 %v629, 4294901760
        %v1276 = vsub.f32 %v629, %v1275
        %1277 = vmatmul.mubr.f32.gmra.mrb[0].mxu0 %v1276
        %v1278 = vpop.f32.mrb[0].mxu0
        %v1279 = vadd.f32 %v1075, %v1278
        %v1280 = vpop.f32.mrb[0].mxu0
        %1281 = vmatprep.mubr.f32.mxu0 0.0
        %v1282 = vand.u32 %v632, 4294901760
        %v1283 = vsub.f32 %v632, %v1282
        %1284 = vmatmul.mubr.f32.gmra.mrb[0].mxu0 %v1283
        %v1285 = vpop.f32.mrb[0].mxu0
        %v1286 = vadd.f32 %v1081, %v1285
        %v1287 = vpop.f32.mrb[0].mxu0
        %1288 = vmatprep.mubr.f32.mxu0 0.0
        %v1289 = vand.u32 %v635, 4294901760
        %v1290 = vsub.f32 %v635, %v1289
        %1291 = vmatmul.mubr.f32.gmra.mrb[0].mxu0 %v1290
        %v1292 = vpop.f32.mrb[0].mxu0
        %v1293 = vadd.f32 %v1087, %v1292
        %v1294 = vpop.f32.mrb[0].mxu0
        %1295 = vmatprep.mubr.f32.mxu0 0.0
        %v1296 = vand.u32 %v638, 4294901760
        %v1297 = vsub.f32 %v638, %v1296
        %1298 = vmatmul.mubr.f32.gmra.mrb[0].mxu0 %v1297
        %v1299 = vpop.f32.mrb[0].mxu0
        %v1300 = vadd.f32 %v1093, %v1299
        %v1301 = vpop.f32.mrb[0].mxu0
        %1302 = vmatprep.mubr.f32.mxu0 0.0
        %v1303 = vand.u32 %v641, 4294901760
        %v1304 = vsub.f32 %v641, %v1303
        %1305 = vmatmul.mubr.f32.gmra.mrb[0].mxu0 %v1304
        %v1306 = vpop.f32.mrb[0].mxu0
        %v1307 = vadd.f32 %v1099, %v1306
        %v1308 = vpop.f32.mrb[0].mxu0
        %1309 = vmatprep.mubr.f32.mxu0 0.0
        %v1310 = vand.u32 %v644, 4294901760
        %v1311 = vsub.f32 %v644, %v1310
        %1312 = vmatmul.mubr.f32.gmra.mrb[0].mxu0 %v1311
        %v1313 = vpop.f32.mrb[0].mxu0
        %v1314 = vadd.f32 %v1105, %v1313
        %v1315 = vpop.f32.mrb[0].mxu0
        %1316 = vmatprep.mubr.f32.mxu0 0.0
        %v1317 = vand.u32 %v647, 4294901760
        %v1318 = vsub.f32 %v647, %v1317
        %1319 = vmatmul.mubr.f32.gmra.mrb[0].mxu0 %v1318
        %v1320 = vpop.f32.mrb[0].mxu0
        %v1321 = vadd.f32 %v1111, %v1320
        %v1322 = vpop.f32.mrb[0].mxu0
        %1323 = vmatprep.mubr.f32.mxu0 0.0
        %v1324 = vand.u32 %v650, 4294901760
        %v1325 = vsub.f32 %v650, %v1324
        %1326 = vmatmul.mubr.f32.gmra.mrb[0].mxu0 %v1325
        %v1327 = vpop.f32.mrb[0].mxu0
        %v1328 = vadd.f32 %v1117, %v1327
        %v1329 = vpop.f32.mrb[0].mxu0
        %1330 = vmatprep.mubr.f32.mxu0 0.0
        %v1331 = vand.u32 %v653, 4294901760
        %v1332 = vsub.f32 %v653, %v1331
        %1333 = vmatmul.mubr.f32.gmra.mrb[0].mxu0 %v1332
        %v1334 = vpop.f32.mrb[0].mxu0
        %v1335 = vadd.f32 %v1123, %v1334
        %v1336 = vpop.f32.mrb[0].mxu0
        %1337 = vmatprep.mubr.f32.mxu0 0.0
        %v1338 = vand.u32 %v656, 4294901760
        %v1339 = vsub.f32 %v656, %v1338
        %1340 = vmatmul.mubr.f32.gmra.mrb[0].mxu0 %v1339
        %v1341 = vpop.f32.mrb[0].mxu0
        %v1342 = vadd.f32 %v1129, %v1341
        %v1343 = vpop.f32.mrb[0].mxu0
        %1344 = vmatprep.mubr.f32.mxu0 0.0
        %v1345 = vand.u32 %v659, 4294901760
        %v1346 = vsub.f32 %v659, %v1345
        %1347 = vmatmul.mubr.f32.gmra.mrb[0].mxu0 %v1346
        %v1348 = vpop.f32.mrb[0].mxu0
        %v1349 = vadd.f32 %v1135, %v1348
        %v1350 = vpop.f32.mrb[0].mxu0
        %1351 = vmatprep.mubr.f32.mxu0 0.0
        %v1352 = vand.u32 %v662, 4294901760
        %v1353 = vsub.f32 %v662, %v1352
        %1354 = vmatmul.mubr.f32.gmra.mrb[0].mxu0 %v1353
        %v1355 = vpop.f32.mrb[0].mxu0
        %v1356 = vadd.f32 %v1141, %v1355
        %v1357 = vpop.f32.mrb[0].mxu0
        %1358 = vmatprep.mubr.f32.mxu0 0.0
        %v1359 = vand.u32 %v665, 4294901760
        %v1360 = vsub.f32 %v665, %v1359
        %1361 = vmatmul.mubr.f32.gmra.mrb[0].mxu0 %v1360
        %v1362 = vpop.f32.mrb[0].mxu0
        %v1363 = vadd.f32 %v1147, %v1362
        %v1364 = vpop.f32.mrb[0].mxu0
        %1365 = vmatprep.mubr.f32.mxu0 0.0
        %v1366 = vand.u32 %v668, 4294901760
        %v1367 = vsub.f32 %v668, %v1366
        %1368 = vmatmul.mubr.f32.gmra.mrb[0].mxu0 %v1367
        %v1369 = vpop.f32.mrb[0].mxu0
        %v1370 = vadd.f32 %v1153, %v1369
        %v1371 = vpop.f32.mrb[0].mxu0
        %1372 = vmatprep.mubr.f32.mxu0 0.0
        %v1373 = vand.u32 %v671, 4294901760
        %v1374 = vsub.f32 %v671, %v1373
        %1375 = vmatmul.mubr.f32.gmra.mrb[0].mxu0 %v1374
        %v1376 = vpop.f32.mrb[0].mxu0
        %v1377 = vadd.f32 %v1159, %v1376
        %v1378 = vpop.f32.mrb[0].mxu0
        %1379 = vmatprep.mubr.f32.mxu0 0.0
        %v1380 = vand.u32 %v674, 4294901760
        %v1381 = vsub.f32 %v674, %v1380
        %1382 = vmatmul.mubr.f32.gmra.mrb[0].mxu0 %v1381
        %v1383 = vpop.f32.mrb[0].mxu0
        %v1384 = vadd.f32 %v1165, %v1383
        %v1385 = vpop.f32.mrb[0].mxu0
        %1386 = vmatprep.mubr.f32.mxu0 0.0
        %v1387 = vand.u32 %v677, 4294901760
        %v1388 = vsub.f32 %v677, %v1387
        %1389 = vmatmul.mubr.f32.gmra.mrb[0].mxu0 %v1388
        %v1390 = vpop.f32.mrb[0].mxu0
        %v1391 = vadd.f32 %v1171, %v1390
        %v1392 = vpop.f32.mrb[0].mxu0
        %1393 = vmatprep.mubr.f32.mxu0 0.0
        %v1394 = vand.u32 %v680, 4294901760
        %v1395 = vsub.f32 %v680, %v1394
        %1396 = vmatmul.mubr.f32.gmra.mrb[0].mxu0 %v1395
        %v1397 = vpop.f32.mrb[0].mxu0
        %v1398 = vadd.f32 %v1177, %v1397
        %v1399 = vpop.f32.mrb[0].mxu0
        %1400 = vdwg.mxu0
        %1401 = vmatprep.subr.mxu0 0.0
        %v1402 = vand.u32 %v613, 4294901760
        %1403 = vmatpush1.msra.mxu0 %v1402
        %1404 = vmatprep.subr.mxu0 0.0
        %v1405 = vand.u32 %v614, 4294901760
        %1406 = vmatpush1.msra.mxu0 %v1405
        %1407 = vmatprep.subr.mxu0 0.0
        %v1408 = vand.u32 %v615, 4294901760
        %1409 = vmatpush1.msra.mxu0 %v1408
        %1410 = vmatprep.subr.mxu0 0.0
        %v1411 = vand.u32 %v616, 4294901760
        %1412 = vmatpush1.msra.mxu0 %v1411
        %1413 = vmatprep.subr.mxu0 0.0
        %v1414 = vand.u32 %v617, 4294901760
        %1415 = vmatpush1.msra.mxu0 %v1414
        %1416 = vmatprep.subr.mxu0 0.0
        %v1417 = vand.u32 %v618, 4294901760
        %1418 = vmatpush1.msra.mxu0 %v1417
        %1419 = vmatprep.subr.mxu0 0.0
        %v1420 = vand.u32 %v619, 4294901760
        %1421 = vmatpush1.msra.mxu0 %v1420
        %1422 = vmatprep.subr.mxu0 0.0
        %v1423 = vand.u32 %v620, 4294901760
        %1424 = vmatpush1.msra.mxu0 %v1423
        %1425 = vmatprep.subr.mxu0 0.0
        %1426 = vmatpush1.msra.mxu0 0.0
        %1427 = vmatprep.subr.mxu0 0.0
        %1428 = vmatpush1.msra.mxu0 0.0
        %1429 = vmatprep.subr.mxu0 0.0
        %1430 = vmatpush1.msra.mxu0 0.0
        %1431 = vmatprep.subr.mxu0 0.0
        %1432 = vmatpush1.msra.mxu0 0.0
        %1433 = vmatprep.subr.mxu0 0.0
        %1434 = vmatpush1.msra.mxu0 0.0
        %1435 = vmatprep.subr.mxu0 0.0
        %1436 = vmatpush1.msra.mxu0 0.0
        %1437 = vmatprep.subr.mxu0 0.0
        %1438 = vmatpush1.msra.mxu0 0.0
        %1439 = vmatprep.subr.mxu0 0.0
        %1440 = vmatpush1.msra.mxu0 0.0
        %1441 = vmatprep.subr.mxu0 0.0
        %1442 = vmatpush1.msra.mxu0 0.0
        %1443 = vmatprep.subr.mxu0 0.0
        %1444 = vmatpush1.msra.mxu0 0.0
        %1445 = vmatprep.subr.mxu0 0.0
        %1446 = vmatpush1.msra.mxu0 0.0
        %1447 = vmatprep.subr.mxu0 0.0
        %1448 = vmatpush1.msra.mxu0 0.0
        %1449 = vmatprep.subr.mxu0 0.0
        %1450 = vmatpush1.msra.mxu0 0.0
        %1451 = vmatprep.subr.mxu0 0.0
        %1452 = vmatpush1.msra.mxu0 0.0
        %1453 = vmatprep.subr.mxu0 0.0
        %1454 = vmatpush1.msra.mxu0 0.0
        %1455 = vmatprep.subr.mxu0 0.0
        %1456 = vmatpush1.msra.mxu0 0.0
        %1457 = vmatprep.subr.mxu0 0.0
        %1458 = vmatpush1.msra.mxu0 0.0
        %1459 = vmatprep.subr.mxu0 0.0
        %1460 = vmatpush1.msra.mxu0 0.0
        %1461 = vmatprep.subr.mxu0 0.0
        %1462 = vmatpush1.msra.mxu0 0.0
        %1463 = vmatprep.subr.mxu0 0.0
        %1464 = vmatpush1.msra.mxu0 0.0
        %1465 = vmatprep.subr.mxu0 0.0
        %1466 = vmatpush1.msra.mxu0 0.0
        %1467 = vmatprep.subr.mxu0 0.0
        %1468 = vmatpush1.msra.mxu0 0.0
        %1469 = vmatprep.subr.mxu0 0.0
        %1470 = vmatpush1.msra.mxu0 0.0
        %1471 = vmatprep.subr.mxu0 0.0
        %1472 = vmatpush1.msra.mxu0 0.0
        %1473 = vmatprep.mubr.f32.mxu0 0.0
        %v1474 = vand.u32 %v623, 4294901760
        %v1475 = vsub.f32 %v623, %v1474
        %v1476 = vand.u32 %v1475, 4294901760
        %1477 = vmatmul.mubr.f32.gmra.mrb[0].mxu0 %v1476
        %v1478 = vpop.f32.mrb[0].mxu0
        %v1479 = vadd.f32 %v1265, %v1478
        %v1480 = vpop.f32.mrb[0].mxu0
        %1481 = vmatprep.mubr.f32.mxu0 0.0
        %v1482 = vand.u32 %v626, 4294901760
        %v1483 = vsub.f32 %v626, %v1482
        %v1484 = vand.u32 %v1483, 4294901760
        %1485 = vmatmul.mubr.f32.gmra.mrb[0].mxu0 %v1484
        %v1486 = vpop.f32.mrb[0].mxu0
        %v1487 = vadd.f32 %v1272, %v1486
        %v1488 = vpop.f32.mrb[0].mxu0
        %1489 = vmatprep.mubr.f32.mxu0 0.0
        %v1490 = vand.u32 %v629, 4294901760
        %v1491 = vsub.f32 %v629, %v1490
        %v1492 = vand.u32 %v1491, 4294901760
        %1493 = vmatmul.mubr.f32.gmra.mrb[0].mxu0 %v1492
        %v1494 = vpop.f32.mrb[0].mxu0
        %v1495 = vadd.f32 %v1279, %v1494
        %v1496 = vpop.f32.mrb[0].mxu0
        %1497 = vmatprep.mubr.f32.mxu0 0.0
        %v1498 = vand.u32 %v632, 4294901760
        %v1499 = vsub.f32 %v632, %v1498
        %v1500 = vand.u32 %v1499, 4294901760
        %1501 = vmatmul.mubr.f32.gmra.mrb[0].mxu0 %v1500
        %v1502 = vpop.f32.mrb[0].mxu0
        %v1503 = vadd.f32 %v1286, %v1502
        %v1504 = vpop.f32.mrb[0].mxu0
        %1505 = vmatprep.mubr.f32.mxu0 0.0
        %v1506 = vand.u32 %v635, 4294901760
        %v1507 = vsub.f32 %v635, %v1506
        %v1508 = vand.u32 %v1507, 4294901760
        %1509 = vmatmul.mubr.f32.gmra.mrb[0].mxu0 %v1508
        %v1510 = vpop.f32.mrb[0].mxu0
        %v1511 = vadd.f32 %v1293, %v1510
        %v1512 = vpop.f32.mrb[0].mxu0
        %1513 = vmatprep.mubr.f32.mxu0 0.0
        %v1514 = vand.u32 %v638, 4294901760
        %v1515 = vsub.f32 %v638, %v1514
        %v1516 = vand.u32 %v1515, 4294901760
        %1517 = vmatmul.mubr.f32.gmra.mrb[0].mxu0 %v1516
        %v1518 = vpop.f32.mrb[0].mxu0
        %v1519 = vadd.f32 %v1300, %v1518
        %v1520 = vpop.f32.mrb[0].mxu0
        %1521 = vmatprep.mubr.f32.mxu0 0.0
        %v1522 = vand.u32 %v641, 4294901760
        %v1523 = vsub.f32 %v641, %v1522
        %v1524 = vand.u32 %v1523, 4294901760
        %1525 = vmatmul.mubr.f32.gmra.mrb[0].mxu0 %v1524
        %v1526 = vpop.f32.mrb[0].mxu0
        %v1527 = vadd.f32 %v1307, %v1526
        %v1528 = vpop.f32.mrb[0].mxu0
        %1529 = vmatprep.mubr.f32.mxu0 0.0
        %v1530 = vand.u32 %v644, 4294901760
        %v1531 = vsub.f32 %v644, %v1530
        %v1532 = vand.u32 %v1531, 4294901760
        %1533 = vmatmul.mubr.f32.gmra.mrb[0].mxu0 %v1532
        %v1534 = vpop.f32.mrb[0].mxu0
        %v1535 = vadd.f32 %v1314, %v1534
        %v1536 = vpop.f32.mrb[0].mxu0
        %1537 = vmatprep.mubr.f32.mxu0 0.0
        %v1538 = vand.u32 %v647, 4294901760
        %v1539 = vsub.f32 %v647, %v1538
        %v1540 = vand.u32 %v1539, 4294901760
        %1541 = vmatmul.mubr.f32.gmra.mrb[0].mxu0 %v1540
        %v1542 = vpop.f32.mrb[0].mxu0
        %v1543 = vadd.f32 %v1321, %v1542
        %v1544 = vpop.f32.mrb[0].mxu0
        %1545 = vmatprep.mubr.f32.mxu0 0.0
        %v1546 = vand.u32 %v650, 4294901760
        %v1547 = vsub.f32 %v650, %v1546
        %v1548 = vand.u32 %v1547, 4294901760
        %1549 = vmatmul.mubr.f32.gmra.mrb[0].mxu0 %v1548
        %v1550 = vpop.f32.mrb[0].mxu0
        %v1551 = vadd.f32 %v1328, %v1550
        %v1552 = vpop.f32.mrb[0].mxu0
        %1553 = vmatprep.mubr.f32.mxu0 0.0
        %v1554 = vand.u32 %v653, 4294901760
        %v1555 = vsub.f32 %v653, %v1554
        %v1556 = vand.u32 %v1555, 4294901760
        %1557 = vmatmul.mubr.f32.gmra.mrb[0].mxu0 %v1556
        %v1558 = vpop.f32.mrb[0].mxu0
        %v1559 = vadd.f32 %v1335, %v1558
        %v1560 = vpop.f32.mrb[0].mxu0
        %1561 = vmatprep.mubr.f32.mxu0 0.0
        %v1562 = vand.u32 %v656, 4294901760
        %v1563 = vsub.f32 %v656, %v1562
        %v1564 = vand.u32 %v1563, 4294901760
        %1565 = vmatmul.mubr.f32.gmra.mrb[0].mxu0 %v1564
        %v1566 = vpop.f32.mrb[0].mxu0
        %v1567 = vadd.f32 %v1342, %v1566
        %v1568 = vpop.f32.mrb[0].mxu0
        %1569 = vmatprep.mubr.f32.mxu0 0.0
        %v1570 = vand.u32 %v659, 4294901760
        %v1571 = vsub.f32 %v659, %v1570
        %v1572 = vand.u32 %v1571, 4294901760
        %1573 = vmatmul.mubr.f32.gmra.mrb[0].mxu0 %v1572
        %v1574 = vpop.f32.mrb[0].mxu0
        %v1575 = vadd.f32 %v1349, %v1574
        %v1576 = vpop.f32.mrb[0].mxu0
        %1577 = vmatprep.mubr.f32.mxu0 0.0
        %v1578 = vand.u32 %v662, 4294901760
        %v1579 = vsub.f32 %v662, %v1578
        %v1580 = vand.u32 %v1579, 4294901760
        %1581 = vmatmul.mubr.f32.gmra.mrb[0].mxu0 %v1580
        %v1582 = vpop.f32.mrb[0].mxu0
        %v1583 = vadd.f32 %v1356, %v1582
        %v1584 = vpop.f32.mrb[0].mxu0
        %1585 = vmatprep.mubr.f32.mxu0 0.0
        %v1586 = vand.u32 %v665, 4294901760
        %v1587 = vsub.f32 %v665, %v1586
        %v1588 = vand.u32 %v1587, 4294901760
        %1589 = vmatmul.mubr.f32.gmra.mrb[0].mxu0 %v1588
        %v1590 = vpop.f32.mrb[0].mxu0
        %v1591 = vadd.f32 %v1363, %v1590
        %v1592 = vpop.f32.mrb[0].mxu0
        %1593 = vmatprep.mubr.f32.mxu0 0.0
        %v1594 = vand.u32 %v668, 4294901760
        %v1595 = vsub.f32 %v668, %v1594
        %v1596 = vand.u32 %v1595, 4294901760
        %1597 = vmatmul.mubr.f32.gmra.mrb[0].mxu0 %v1596
        %v1598 = vpop.f32.mrb[0].mxu0
        %v1599 = vadd.f32 %v1370, %v1598
        %v1600 = vpop.f32.mrb[0].mxu0
        %1601 = vmatprep.mubr.f32.mxu0 0.0
        %v1602 = vand.u32 %v671, 4294901760
        %v1603 = vsub.f32 %v671, %v1602
        %v1604 = vand.u32 %v1603, 4294901760
        %1605 = vmatmul.mubr.f32.gmra.mrb[0].mxu0 %v1604
        %v1606 = vpop.f32.mrb[0].mxu0
        %v1607 = vadd.f32 %v1377, %v1606
        %v1608 = vpop.f32.mrb[0].mxu0
        %1609 = vmatprep.mubr.f32.mxu0 0.0
        %v1610 = vand.u32 %v674, 4294901760
        %v1611 = vsub.f32 %v674, %v1610
        %v1612 = vand.u32 %v1611, 4294901760
        %1613 = vmatmul.mubr.f32.gmra.mrb[0].mxu0 %v1612
        %v1614 = vpop.f32.mrb[0].mxu0
        %v1615 = vadd.f32 %v1384, %v1614
        %v1616 = vpop.f32.mrb[0].mxu0
        %1617 = vmatprep.mubr.f32.mxu0 0.0
        %v1618 = vand.u32 %v677, 4294901760
        %v1619 = vsub.f32 %v677, %v1618
        %v1620 = vand.u32 %v1619, 4294901760
        %1621 = vmatmul.mubr.f32.gmra.mrb[0].mxu0 %v1620
        %v1622 = vpop.f32.mrb[0].mxu0
        %v1623 = vadd.f32 %v1391, %v1622
        %v1624 = vpop.f32.mrb[0].mxu0
        %1625 = vmatprep.mubr.f32.mxu0 0.0
        %v1626 = vand.u32 %v680, 4294901760
        %v1627 = vsub.f32 %v680, %v1626
        %v1628 = vand.u32 %v1627, 4294901760
        %1629 = vmatmul.mubr.f32.gmra.mrb[0].mxu0 %v1628
        %v1630 = vpop.f32.mrb[0].mxu0
        %v1631 = vadd.f32 %v1398, %v1630
        %v1632 = vpop.f32.mrb[0].mxu0
        %1633 = vdwg.mxu0
        %1634 = vmatprep.subr.mxu0 0.0
        %v1635 = vand.u32 %v613, 4294901760
        %v1636 = vsub.f32 %v613, %v1635
        %v1637 = vand.u32 %v1636, 4294901760
        %1638 = vmatpush1.msra.mxu0 %v1637
        %1639 = vmatprep.subr.mxu0 0.0
        %v1640 = vand.u32 %v614, 4294901760
        %v1641 = vsub.f32 %v614, %v1640
        %v1642 = vand.u32 %v1641, 4294901760
        %1643 = vmatpush1.msra.mxu0 %v1642
        %1644 = vmatprep.subr.mxu0 0.0
        %v1645 = vand.u32 %v615, 4294901760
        %v1646 = vsub.f32 %v615, %v1645
        %v1647 = vand.u32 %v1646, 4294901760
        %1648 = vmatpush1.msra.mxu0 %v1647
        %1649 = vmatprep.subr.mxu0 0.0
        %v1650 = vand.u32 %v616, 4294901760
        %v1651 = vsub.f32 %v616, %v1650
        %v1652 = vand.u32 %v1651, 4294901760
        %1653 = vmatpush1.msra.mxu0 %v1652
        %1654 = vmatprep.subr.mxu0 0.0
        %v1655 = vand.u32 %v617, 4294901760
        %v1656 = vsub.f32 %v617, %v1655
        %v1657 = vand.u32 %v1656, 4294901760
        %1658 = vmatpush1.msra.mxu0 %v1657
        %1659 = vmatprep.subr.mxu0 0.0
        %v1660 = vand.u32 %v618, 4294901760
        %v1661 = vsub.f32 %v618, %v1660
        %v1662 = vand.u32 %v1661, 4294901760
        %1663 = vmatpush1.msra.mxu0 %v1662
        %1664 = vmatprep.subr.mxu0 0.0
        %v1665 = vand.u32 %v619, 4294901760
        %v1666 = vsub.f32 %v619, %v1665
        %v1667 = vand.u32 %v1666, 4294901760
        %1668 = vmatpush1.msra.mxu0 %v1667
        %1669 = vmatprep.subr.mxu0 0.0
        %v1670 = vand.u32 %v620, 4294901760
        %v1671 = vsub.f32 %v620, %v1670
        %v1672 = vand.u32 %v1671, 4294901760
        %1673 = vmatpush1.msra.mxu0 %v1672
        %1674 = vmatprep.subr.mxu0 0.0
        %1675 = vmatpush1.msra.mxu0 0.0
        %1676 = vmatprep.subr.mxu0 0.0
        %1677 = vmatpush1.msra.mxu0 0.0
        %1678 = vmatprep.subr.mxu0 0.0
        %1679 = vmatpush1.msra.mxu0 0.0
        %1680 = vmatprep.subr.mxu0 0.0
        %1681 = vmatpush1.msra.mxu0 0.0
        %1682 = vmatprep.subr.mxu0 0.0
        %1683 = vmatpush1.msra.mxu0 0.0
        %1684 = vmatprep.subr.mxu0 0.0
        %1685 = vmatpush1.msra.mxu0 0.0
        %1686 = vmatprep.subr.mxu0 0.0
        %1687 = vmatpush1.msra.mxu0 0.0
        %1688 = vmatprep.subr.mxu0 0.0
        %1689 = vmatpush1.msra.mxu0 0.0
        %1690 = vmatprep.subr.mxu0 0.0
        %1691 = vmatpush1.msra.mxu0 0.0
        %1692 = vmatprep.subr.mxu0 0.0
        %1693 = vmatpush1.msra.mxu0 0.0
        %1694 = vmatprep.subr.mxu0 0.0
        %1695 = vmatpush1.msra.mxu0 0.0
        %1696 = vmatprep.subr.mxu0 0.0
        %1697 = vmatpush1.msra.mxu0 0.0
        %1698 = vmatprep.subr.mxu0 0.0
        %1699 = vmatpush1.msra.mxu0 0.0
        %1700 = vmatprep.subr.mxu0 0.0
        %1701 = vmatpush1.msra.mxu0 0.0
        %1702 = vmatprep.subr.mxu0 0.0
        %1703 = vmatpush1.msra.mxu0 0.0
        %1704 = vmatprep.subr.mxu0 0.0
        %1705 = vmatpush1.msra.mxu0 0.0
        %1706 = vmatprep.subr.mxu0 0.0
        %1707 = vmatpush1.msra.mxu0 0.0
        %1708 = vmatprep.subr.mxu0 0.0
        %1709 = vmatpush1.msra.mxu0 0.0
        %1710 = vmatprep.subr.mxu0 0.0
        %1711 = vmatpush1.msra.mxu0 0.0
        %1712 = vmatprep.subr.mxu0 0.0
        %1713 = vmatpush1.msra.mxu0 0.0
        %1714 = vmatprep.subr.mxu0 0.0
        %1715 = vmatpush1.msra.mxu0 0.0
        %1716 = vmatprep.subr.mxu0 0.0
        %1717 = vmatpush1.msra.mxu0 0.0
        %1718 = vmatprep.subr.mxu0 0.0
        %1719 = vmatpush1.msra.mxu0 0.0
        %1720 = vmatprep.subr.mxu0 0.0
        %1721 = vmatpush1.msra.mxu0 0.0
        %1722 = vmatprep.mubr.f32.mxu0 0.0
        %v1723 = vand.u32 %v623, 4294901760
        %1724 = vmatmul.mubr.f32.gmra.mrb[0].mxu0 %v1723
        %v1725 = vpop.f32.mrb[0].mxu0
        %v1726 = vadd.f32 %v1479, %v1725
        %v1727 = vpop.f32.mrb[0].mxu0
        %1728 = vmatprep.mubr.f32.mxu0 0.0
        %v1729 = vand.u32 %v626, 4294901760
        %1730 = vmatmul.mubr.f32.gmra.mrb[0].mxu0 %v1729
        %v1731 = vpop.f32.mrb[0].mxu0
        %v1732 = vadd.f32 %v1487, %v1731
        %v1733 = vpop.f32.mrb[0].mxu0
        %1734 = vmatprep.mubr.f32.mxu0 0.0
        %v1735 = vand.u32 %v629, 4294901760
        %1736 = vmatmul.mubr.f32.gmra.mrb[0].mxu0 %v1735
        %v1737 = vpop.f32.mrb[0].mxu0
        %v1738 = vadd.f32 %v1495, %v1737
        %v1739 = vpop.f32.mrb[0].mxu0
        %1740 = vmatprep.mubr.f32.mxu0 0.0
        %v1741 = vand.u32 %v632, 4294901760
        %1742 = vmatmul.mubr.f32.gmra.mrb[0].mxu0 %v1741
        %v1743 = vpop.f32.mrb[0].mxu0
        %v1744 = vadd.f32 %v1503, %v1743
        %v1745 = vpop.f32.mrb[0].mxu0
        %1746 = vmatprep.mubr.f32.mxu0 0.0
        %v1747 = vand.u32 %v635, 4294901760
        %1748 = vmatmul.mubr.f32.gmra.mrb[0].mxu0 %v1747
        %v1749 = vpop.f32.mrb[0].mxu0
        %v1750 = vadd.f32 %v1511, %v1749
        %v1751 = vpop.f32.mrb[0].mxu0
        %1752 = vmatprep.mubr.f32.mxu0 0.0
        %v1753 = vand.u32 %v638, 4294901760
        %1754 = vmatmul.mubr.f32.gmra.mrb[0].mxu0 %v1753
        %v1755 = vpop.f32.mrb[0].mxu0
        %v1756 = vadd.f32 %v1519, %v1755
        %v1757 = vpop.f32.mrb[0].mxu0
        %1758 = vmatprep.mubr.f32.mxu0 0.0
        %v1759 = vand.u32 %v641, 4294901760
        %1760 = vmatmul.mubr.f32.gmra.mrb[0].mxu0 %v1759
        %v1761 = vpop.f32.mrb[0].mxu0
        %v1762 = vadd.f32 %v1527, %v1761
        %v1763 = vpop.f32.mrb[0].mxu0
        %1764 = vmatprep.mubr.f32.mxu0 0.0
        %v1765 = vand.u32 %v644, 4294901760
        %1766 = vmatmul.mubr.f32.gmra.mrb[0].mxu0 %v1765
        %v1767 = vpop.f32.mrb[0].mxu0
        %v1768 = vadd.f32 %v1535, %v1767
        %v1769 = vpop.f32.mrb[0].mxu0
        %1770 = vmatprep.mubr.f32.mxu0 0.0
        %v1771 = vand.u32 %v647, 4294901760
        %1772 = vmatmul.mubr.f32.gmra.mrb[0].mxu0 %v1771
        %v1773 = vpop.f32.mrb[0].mxu0
        %v1774 = vadd.f32 %v1543, %v1773
        %v1775 = vpop.f32.mrb[0].mxu0
        %1776 = vmatprep.mubr.f32.mxu0 0.0
        %v1777 = vand.u32 %v650, 4294901760
        %1778 = vmatmul.mubr.f32.gmra.mrb[0].mxu0 %v1777
        %v1779 = vpop.f32.mrb[0].mxu0
        %v1780 = vadd.f32 %v1551, %v1779
        %v1781 = vpop.f32.mrb[0].mxu0
        %1782 = vmatprep.mubr.f32.mxu0 0.0
        %v1783 = vand.u32 %v653, 4294901760
        %1784 = vmatmul.mubr.f32.gmra.mrb[0].mxu0 %v1783
        %v1785 = vpop.f32.mrb[0].mxu0
        %v1786 = vadd.f32 %v1559, %v1785
        %v1787 = vpop.f32.mrb[0].mxu0
        %1788 = vmatprep.mubr.f32.mxu0 0.0
        %v1789 = vand.u32 %v656, 4294901760
        %1790 = vmatmul.mubr.f32.gmra.mrb[0].mxu0 %v1789
        %v1791 = vpop.f32.mrb[0].mxu0
        %v1792 = vadd.f32 %v1567, %v1791
        %v1793 = vpop.f32.mrb[0].mxu0
        %1794 = vmatprep.mubr.f32.mxu0 0.0
        %v1795 = vand.u32 %v659, 4294901760
        %1796 = vmatmul.mubr.f32.gmra.mrb[0].mxu0 %v1795
        %v1797 = vpop.f32.mrb[0].mxu0
        %v1798 = vadd.f32 %v1575, %v1797
        %v1799 = vpop.f32.mrb[0].mxu0
        %1800 = vmatprep.mubr.f32.mxu0 0.0
        %v1801 = vand.u32 %v662, 4294901760
        %1802 = vmatmul.mubr.f32.gmra.mrb[0].mxu0 %v1801
        %v1803 = vpop.f32.mrb[0].mxu0
        %v1804 = vadd.f32 %v1583, %v1803
        %v1805 = vpop.f32.mrb[0].mxu0
        %1806 = vmatprep.mubr.f32.mxu0 0.0
        %v1807 = vand.u32 %v665, 4294901760
        %1808 = vmatmul.mubr.f32.gmra.mrb[0].mxu0 %v1807
        %v1809 = vpop.f32.mrb[0].mxu0
        %v1810 = vadd.f32 %v1591, %v1809
        %v1811 = vpop.f32.mrb[0].mxu0
        %1812 = vmatprep.mubr.f32.mxu0 0.0
        %v1813 = vand.u32 %v668, 4294901760
        %1814 = vmatmul.mubr.f32.gmra.mrb[0].mxu0 %v1813
        %v1815 = vpop.f32.mrb[0].mxu0
        %v1816 = vadd.f32 %v1599, %v1815
        %v1817 = vpop.f32.mrb[0].mxu0
        %1818 = vmatprep.mubr.f32.mxu0 0.0
        %v1819 = vand.u32 %v671, 4294901760
        %1820 = vmatmul.mubr.f32.gmra.mrb[0].mxu0 %v1819
        %v1821 = vpop.f32.mrb[0].mxu0
        %v1822 = vadd.f32 %v1607, %v1821
        %v1823 = vpop.f32.mrb[0].mxu0
        %1824 = vmatprep.mubr.f32.mxu0 0.0
        %v1825 = vand.u32 %v674, 4294901760
        %1826 = vmatmul.mubr.f32.gmra.mrb[0].mxu0 %v1825
        %v1827 = vpop.f32.mrb[0].mxu0
        %v1828 = vadd.f32 %v1615, %v1827
        %v1829 = vpop.f32.mrb[0].mxu0
        %1830 = vmatprep.mubr.f32.mxu0 0.0
        %v1831 = vand.u32 %v677, 4294901760
        %1832 = vmatmul.mubr.f32.gmra.mrb[0].mxu0 %v1831
        %v1833 = vpop.f32.mrb[0].mxu0
        %v1834 = vadd.f32 %v1623, %v1833
        %v1835 = vpop.f32.mrb[0].mxu0
        %1836 = vmatprep.mubr.f32.mxu0 0.0
        %v1837 = vand.u32 %v680, 4294901760
        %1838 = vmatmul.mubr.f32.gmra.mrb[0].mxu0 %v1837
        %v1839 = vpop.f32.mrb[0].mxu0
        %v1840 = vadd.f32 %v1631, %v1839
        %v1841 = vpop.f32.mrb[0].mxu0
        %1842 = vdwg.mxu0
        %1843 = vmatprep.subr.mxu0 0.0
        %v1844 = vand.u32 %v613, 4294901760
        %1845 = vmatpush1.msra.mxu0 %v1844
        %1846 = vmatprep.subr.mxu0 0.0
        %v1847 = vand.u32 %v614, 4294901760
        %1848 = vmatpush1.msra.mxu0 %v1847
        %1849 = vmatprep.subr.mxu0 0.0
        %v1850 = vand.u32 %v615, 4294901760
        %1851 = vmatpush1.msra.mxu0 %v1850
        %1852 = vmatprep.subr.mxu0 0.0
        %v1853 = vand.u32 %v616, 4294901760
        %1854 = vmatpush1.msra.mxu0 %v1853
        %1855 = vmatprep.subr.mxu0 0.0
        %v1856 = vand.u32 %v617, 4294901760
        %1857 = vmatpush1.msra.mxu0 %v1856
        %1858 = vmatprep.subr.mxu0 0.0
        %v1859 = vand.u32 %v618, 4294901760
        %1860 = vmatpush1.msra.mxu0 %v1859
        %1861 = vmatprep.subr.mxu0 0.0
        %v1862 = vand.u32 %v619, 4294901760
        %1863 = vmatpush1.msra.mxu0 %v1862
        %1864 = vmatprep.subr.mxu0 0.0
        %v1865 = vand.u32 %v620, 4294901760
        %1866 = vmatpush1.msra.mxu0 %v1865
        %1867 = vmatprep.subr.mxu0 0.0
        %1868 = vmatpush1.msra.mxu0 0.0
        %1869 = vmatprep.subr.mxu0 0.0
        %1870 = vmatpush1.msra.mxu0 0.0
        %1871 = vmatprep.subr.mxu0 0.0
        %1872 = vmatpush1.msra.mxu0 0.0
        %1873 = vmatprep.subr.mxu0 0.0
        %1874 = vmatpush1.msra.mxu0 0.0
        %1875 = vmatprep.subr.mxu0 0.0
        %1876 = vmatpush1.msra.mxu0 0.0
        %1877 = vmatprep.subr.mxu0 0.0
        %1878 = vmatpush1.msra.mxu0 0.0
        %1879 = vmatprep.subr.mxu0 0.0
        %1880 = vmatpush1.msra.mxu0 0.0
        %1881 = vmatprep.subr.mxu0 0.0
        %1882 = vmatpush1.msra.mxu0 0.0
        %1883 = vmatprep.subr.mxu0 0.0
        %1884 = vmatpush1.msra.mxu0 0.0
        %1885 = vmatprep.subr.mxu0 0.0
        %1886 = vmatpush1.msra.mxu0 0.0
        %1887 = vmatprep.subr.mxu0 0.0
        %1888 = vmatpush1.msra.mxu0 0.0
        %1889 = vmatprep.subr.mxu0 0.0
        %1890 = vmatpush1.msra.mxu0 0.0
        %1891 = vmatprep.subr.mxu0 0.0
        %1892 = vmatpush1.msra.mxu0 0.0
        %1893 = vmatprep.subr.mxu0 0.0
        %1894 = vmatpush1.msra.mxu0 0.0
        %1895 = vmatprep.subr.mxu0 0.0
        %1896 = vmatpush1.msra.mxu0 0.0
        %1897 = vmatprep.subr.mxu0 0.0
        %1898 = vmatpush1.msra.mxu0 0.0
        %1899 = vmatprep.subr.mxu0 0.0
        %1900 = vmatpush1.msra.mxu0 0.0
        %1901 = vmatprep.subr.mxu0 0.0
        %1902 = vmatpush1.msra.mxu0 0.0
        %1903 = vmatprep.subr.mxu0 0.0
        %1904 = vmatpush1.msra.mxu0 0.0
        %1905 = vmatprep.subr.mxu0 0.0
        %1906 = vmatpush1.msra.mxu0 0.0
        %1907 = vmatprep.subr.mxu0 0.0
        %1908 = vmatpush1.msra.mxu0 0.0
        %1909 = vmatprep.subr.mxu0 0.0
        %1910 = vmatpush1.msra.mxu0 0.0
        %1911 = vmatprep.subr.mxu0 0.0
        %1912 = vmatpush1.msra.mxu0 0.0
        %1913 = vmatprep.subr.mxu0 0.0
        %1914 = vmatpush1.msra.mxu0 0.0
        %1915 = vmatprep.mubr.f32.mxu0 0.0
        %v1916 = vand.u32 %v623, 4294901760
        %1917 = vmatmul.mubr.f32.gmra.mrb[0].mxu0 %v1916
        %v1918 = vpop.f32.mrb[0].mxu0
        %v1919 = vadd.f32 %v1726, %v1918
        %v1920 = vpop.f32.mrb[0].mxu0
        %1921 = vmatprep.mubr.f32.mxu0 0.0
        %v1922 = vand.u32 %v626, 4294901760
        %1923 = vmatmul.mubr.f32.gmra.mrb[0].mxu0 %v1922
        %v1924 = vpop.f32.mrb[0].mxu0
        %v1925 = vadd.f32 %v1732, %v1924
        %v1926 = vpop.f32.mrb[0].mxu0
        %1927 = vmatprep.mubr.f32.mxu0 0.0
        %v1928 = vand.u32 %v629, 4294901760
        %1929 = vmatmul.mubr.f32.gmra.mrb[0].mxu0 %v1928
        %v1930 = vpop.f32.mrb[0].mxu0
        %v1931 = vadd.f32 %v1738, %v1930
        %v1932 = vpop.f32.mrb[0].mxu0
        %1933 = vmatprep.mubr.f32.mxu0 0.0
        %v1934 = vand.u32 %v632, 4294901760
        %1935 = vmatmul.mubr.f32.gmra.mrb[0].mxu0 %v1934
        %v1936 = vpop.f32.mrb[0].mxu0
        %v1937 = vadd.f32 %v1744, %v1936
        %v1938 = vpop.f32.mrb[0].mxu0
        %1939 = vmatprep.mubr.f32.mxu0 0.0
        %v1940 = vand.u32 %v635, 4294901760
        %1941 = vmatmul.mubr.f32.gmra.mrb[0].mxu0 %v1940
        %v1942 = vpop.f32.mrb[0].mxu0
        %v1943 = vadd.f32 %v1750, %v1942
        %v1944 = vpop.f32.mrb[0].mxu0
        %1945 = vmatprep.mubr.f32.mxu0 0.0
        %v1946 = vand.u32 %v638, 4294901760
        %1947 = vmatmul.mubr.f32.gmra.mrb[0].mxu0 %v1946
        %v1948 = vpop.f32.mrb[0].mxu0
        %v1949 = vadd.f32 %v1756, %v1948
        %v1950 = vpop.f32.mrb[0].mxu0
        %1951 = vmatprep.mubr.f32.mxu0 0.0
        %v1952 = vand.u32 %v641, 4294901760
        %1953 = vmatmul.mubr.f32.gmra.mrb[0].mxu0 %v1952
        %v1954 = vpop.f32.mrb[0].mxu0
        %v1955 = vadd.f32 %v1762, %v1954
        %v1956 = vpop.f32.mrb[0].mxu0
        %1957 = vmatprep.mubr.f32.mxu0 0.0
        %v1958 = vand.u32 %v644, 4294901760
        %1959 = vmatmul.mubr.f32.gmra.mrb[0].mxu0 %v1958
        %v1960 = vpop.f32.mrb[0].mxu0
        %v1961 = vadd.f32 %v1768, %v1960
        %v1962 = vpop.f32.mrb[0].mxu0
        %1963 = vmatprep.mubr.f32.mxu0 0.0
        %v1964 = vand.u32 %v647, 4294901760
        %1965 = vmatmul.mubr.f32.gmra.mrb[0].mxu0 %v1964
        %v1966 = vpop.f32.mrb[0].mxu0
        %v1967 = vadd.f32 %v1774, %v1966
        %v1968 = vpop.f32.mrb[0].mxu0
        %1969 = vmatprep.mubr.f32.mxu0 0.0
        %v1970 = vand.u32 %v650, 4294901760
        %1971 = vmatmul.mubr.f32.gmra.mrb[0].mxu0 %v1970
        %v1972 = vpop.f32.mrb[0].mxu0
        %v1973 = vadd.f32 %v1780, %v1972
        %v1974 = vpop.f32.mrb[0].mxu0
        %1975 = vmatprep.mubr.f32.mxu0 0.0
        %v1976 = vand.u32 %v653, 4294901760
        %1977 = vmatmul.mubr.f32.gmra.mrb[0].mxu0 %v1976
        %v1978 = vpop.f32.mrb[0].mxu0
        %v1979 = vadd.f32 %v1786, %v1978
        %v1980 = vpop.f32.mrb[0].mxu0
        %1981 = vmatprep.mubr.f32.mxu0 0.0
        %v1982 = vand.u32 %v656, 4294901760
        %1983 = vmatmul.mubr.f32.gmra.mrb[0].mxu0 %v1982
        %v1984 = vpop.f32.mrb[0].mxu0
        %v1985 = vadd.f32 %v1792, %v1984
        %v1986 = vpop.f32.mrb[0].mxu0
        %1987 = vmatprep.mubr.f32.mxu0 0.0
        %v1988 = vand.u32 %v659, 4294901760
        %1989 = vmatmul.mubr.f32.gmra.mrb[0].mxu0 %v1988
        %v1990 = vpop.f32.mrb[0].mxu0
        %v1991 = vadd.f32 %v1798, %v1990
        %v1992 = vpop.f32.mrb[0].mxu0
        %1993 = vmatprep.mubr.f32.mxu0 0.0
        %v1994 = vand.u32 %v662, 4294901760
        %1995 = vmatmul.mubr.f32.gmra.mrb[0].mxu0 %v1994
        %v1996 = vpop.f32.mrb[0].mxu0
        %v1997 = vadd.f32 %v1804, %v1996
        %v1998 = vpop.f32.mrb[0].mxu0
        %1999 = vmatprep.mubr.f32.mxu0 0.0
        %v2000 = vand.u32 %v665, 4294901760
        %2001 = vmatmul.mubr.f32.gmra.mrb[0].mxu0 %v2000
        %v2002 = vpop.f32.mrb[0].mxu0
        %v2003 = vadd.f32 %v1810, %v2002
        %v2004 = vpop.f32.mrb[0].mxu0
        %2005 = vmatprep.mubr.f32.mxu0 0.0
        %v2006 = vand.u32 %v668, 4294901760
        %2007 = vmatmul.mubr.f32.gmra.mrb[0].mxu0 %v2006
        %v2008 = vpop.f32.mrb[0].mxu0
        %v2009 = vadd.f32 %v1816, %v2008
        %v2010 = vpop.f32.mrb[0].mxu0
        %2011 = vmatprep.mubr.f32.mxu0 0.0
        %v2012 = vand.u32 %v671, 4294901760
        %2013 = vmatmul.mubr.f32.gmra.mrb[0].mxu0 %v2012
        %v2014 = vpop.f32.mrb[0].mxu0
        %v2015 = vadd.f32 %v1822, %v2014
        %v2016 = vpop.f32.mrb[0].mxu0
        %2017 = vmatprep.mubr.f32.mxu0 0.0
        %v2018 = vand.u32 %v674, 4294901760
        %2019 = vmatmul.mubr.f32.gmra.mrb[0].mxu0 %v2018
        %v2020 = vpop.f32.mrb[0].mxu0
        %v2021 = vadd.f32 %v1828, %v2020
        %v2022 = vpop.f32.mrb[0].mxu0
        %2023 = vmatprep.mubr.f32.mxu0 0.0
        %v2024 = vand.u32 %v677, 4294901760
        %2025 = vmatmul.mubr.f32.gmra.mrb[0].mxu0 %v2024
        %v2026 = vpop.f32.mrb[0].mxu0
        %v2027 = vadd.f32 %v1834, %v2026
        %v2028 = vpop.f32.mrb[0].mxu0
        %2029 = vmatprep.mubr.f32.mxu0 0.0
        %v2030 = vand.u32 %v680, 4294901760
        %2031 = vmatmul.mubr.f32.gmra.mrb[0].mxu0 %v2030
        %v2032 = vpop.f32.mrb[0].mxu0
        %v2033 = vadd.f32 %v1840, %v2032
        %v2034 = vpop.f32.mrb[0].mxu0
        %2035 = vdwg.mxu0
        %v2036 = vld [vmem:[%s4] sm:$0x1]
        %v2038 = vlaneseq
        %v2039 = vshrl.u32 %v2038, 7
        %v2040 = vsub.s32 0, %v2039
        %v2041 = vrot.slane %v2036, %v2040
        %v2043 = vmul.f32 %v1919, %v2041
        %v2044 = vmul.f32 %v1925, %v2041
        %v2045 = vmul.f32 %v1931, %v2041
        %v2046 = vmul.f32 %v1937, %v2041
        %v2047 = vmul.f32 %v1943, %v2041
        %v2048 = vmul.f32 %v1949, %v2041
        %v2049 = vmul.f32 %v1955, %v2041
        %v2050 = vmul.f32 %v1961, %v2041
        %v2051 = vmul.f32 %v1967, %v2041
        %v2052 = vmul.f32 %v1973, %v2041
        %v2053 = vmul.f32 %v1979, %v2041
        %v2054 = vmul.f32 %v1985, %v2041
        %v2055 = vmul.f32 %v1991, %v2041
        %v2056 = vmul.f32 %v1997, %v2041
        %v2057 = vmul.f32 %v2003, %v2041
        %v2058 = vmul.f32 %v2009, %v2041
        %v2059 = vmul.f32 %v2015, %v2041
        %v2060 = vmul.f32 %v2021, %v2041
        %v2061 = vmul.f32 %v2027, %v2041
        %v2062 = vmul.f32 %v2033, %v2041
        %v2063 = vld [vmem:[%s5] sm:$0x1]
        %v2065 = vlaneseq
        %v2066 = vshrl.u32 %v2065, 7
        %v2067 = vsub.s32 0, %v2066
        %v2068 = vrot.slane %v2063, %v2067
        %v2070 = vadd.f32 %v2043, %v2068
        %v2071 = vadd.f32 %v2044, %v2068
        %v2072 = vadd.f32 %v2045, %v2068
        %v2073 = vadd.f32 %v2046, %v2068
        %v2074 = vadd.f32 %v2047, %v2068
        %v2075 = vadd.f32 %v2048, %v2068
        %v2076 = vadd.f32 %v2049, %v2068
        %v2077 = vadd.f32 %v2050, %v2068
        %v2078 = vadd.f32 %v2051, %v2068
        %v2079 = vadd.f32 %v2052, %v2068
        %v2080 = vadd.f32 %v2053, %v2068
        %v2081 = vadd.f32 %v2054, %v2068
        %v2082 = vadd.f32 %v2055, %v2068
        %v2083 = vadd.f32 %v2056, %v2068
        %v2084 = vadd.f32 %v2057, %v2068
        %v2085 = vadd.f32 %v2058, %v2068
        %v2086 = vadd.f32 %v2059, %v2068
        %v2087 = vadd.f32 %v2060, %v2068
        %v2088 = vadd.f32 %v2061, %v2068
        %v2089 = vadd.f32 %v2062, %v2068
        %v2090 = vmax.f32 %v2070, 0.0
        %v2091 = vmax.f32 %v2071, 0.0
        %v2092 = vmax.f32 %v2072, 0.0
        %v2093 = vmax.f32 %v2073, 0.0
        %v2094 = vmax.f32 %v2074, 0.0
        %v2095 = vmax.f32 %v2075, 0.0
        %v2096 = vmax.f32 %v2076, 0.0
        %v2097 = vmax.f32 %v2077, 0.0
        %v2098 = vmax.f32 %v2078, 0.0
        %v2099 = vmax.f32 %v2079, 0.0
        %v2100 = vmax.f32 %v2080, 0.0
        %v2101 = vmax.f32 %v2081, 0.0
        %v2102 = vmax.f32 %v2082, 0.0
        %v2103 = vmax.f32 %v2083, 0.0
        %v2104 = vmax.f32 %v2084, 0.0
        %v2105 = vmax.f32 %v2085, 0.0
        %v2106 = vmax.f32 %v2086, 0.0
        %v2107 = vmax.f32 %v2087, 0.0
        %v2108 = vmax.f32 %v2088, 0.0
        %v2109 = vmax.f32 %v2089, 0.0
        %2111 = vset.pattern.permute.xlu0 0
        %2112 = vperm.xlu0 %2111, %v573
        %v2113 = vpop.permute.xlu0 %2112
        %2116 = vset.pattern.permute.xlu0 0
        %2117 = vperm.xlu0 %2116, %v574
        %v2118 = vpop.permute.xlu0 %2117
        %2121 = vset.pattern.permute.xlu0 0
        %2122 = vperm.xlu0 %2121, %v575
        %v2123 = vpop.permute.xlu0 %2122
        %2126 = vset.pattern.permute.xlu0 0
        %2127 = vperm.xlu0 %2126, %v576
        %v2128 = vpop.permute.xlu0 %2127
        %2131 = vset.pattern.permute.xlu0 0
        %2132 = vperm.xlu0 %2131, %v577
        %v2133 = vpop.permute.xlu0 %2132
        %2136 = vset.pattern.permute.xlu0 0
        %2137 = vperm.xlu0 %2136, %v578
        %v2138 = vpop.permute.xlu0 %2137
        %2141 = vset.pattern.permute.xlu0 0
        %2142 = vperm.xlu0 %2141, %v579
        %v2143 = vpop.permute.xlu0 %2142
        %2146 = vset.pattern.permute.xlu0 0
        %2147 = vperm.xlu0 %2146, %v580
        %v2148 = vpop.permute.xlu0 %2147
        %2151 = vset.pattern.permute.xlu0 0
        %2152 = vperm.xlu0 %2151, %v581
        %v2153 = vpop.permute.xlu0 %2152
        %2156 = vset.pattern.permute.xlu0 0
        %2157 = vperm.xlu0 %2156, %v582
        %v2158 = vpop.permute.xlu0 %2157
        %2161 = vset.pattern.permute.xlu0 0
        %2162 = vperm.xlu0 %2161, %v583
        %v2163 = vpop.permute.xlu0 %2162
        %2166 = vset.pattern.permute.xlu0 0
        %2167 = vperm.xlu0 %2166, %v584
        %v2168 = vpop.permute.xlu0 %2167
        %2171 = vset.pattern.permute.xlu0 0
        %2172 = vperm.xlu0 %2171, %v585
        %v2173 = vpop.permute.xlu0 %2172
        %2176 = vset.pattern.permute.xlu0 0
        %2177 = vperm.xlu0 %2176, %v586
        %v2178 = vpop.permute.xlu0 %2177
        %2181 = vset.pattern.permute.xlu0 0
        %2182 = vperm.xlu0 %2181, %v587
        %v2183 = vpop.permute.xlu0 %2182
        %2186 = vset.pattern.permute.xlu0 0
        %2187 = vperm.xlu0 %2186, %v588
        %v2188 = vpop.permute.xlu0 %2187
        %2191 = vset.pattern.permute.xlu0 0
        %2192 = vperm.xlu0 %2191, %v589
        %v2193 = vpop.permute.xlu0 %2192
        %2196 = vset.pattern.permute.xlu0 0
        %2197 = vperm.xlu0 %2196, %v590
        %v2198 = vpop.permute.xlu0 %2197
        %2201 = vset.pattern.permute.xlu0 0
        %2202 = vperm.xlu0 %2201, %v591
        %v2203 = vpop.permute.xlu0 %2202
        %2206 = vset.pattern.permute.xlu0 0
        %2207 = vperm.xlu0 %2206, %v592
        %v2208 = vpop.permute.xlu0 %2207
        %v2210 = vmul.f32 %v2090, %v2113
        %v2211 = vmul.f32 %v2091, %v2118
        %v2212 = vmul.f32 %v2092, %v2123
        %v2213 = vmul.f32 %v2093, %v2128
        %v2214 = vmul.f32 %v2094, %v2133
        %v2215 = vmul.f32 %v2095, %v2138
        %v2216 = vmul.f32 %v2096, %v2143
        %v2217 = vmul.f32 %v2097, %v2148
        %v2218 = vmul.f32 %v2098, %v2153
        %v2219 = vmul.f32 %v2099, %v2158
        %v2220 = vmul.f32 %v2100, %v2163
        %v2221 = vmul.f32 %v2101, %v2168
        %v2222 = vmul.f32 %v2102, %v2173
        %v2223 = vmul.f32 %v2103, %v2178
        %v2224 = vmul.f32 %v2104, %v2183
        %v2225 = vmul.f32 %v2105, %v2188
        %v2226 = vmul.f32 %v2106, %v2193
        %v2227 = vmul.f32 %v2107, %v2198
        %v2228 = vmul.f32 %v2108, %v2203
        %v2229 = vmul.f32 %v2109, %v2208
        %v2230 = vld [vmem:[#allocation6] sm:$0xff]
        %v2231 = vld [vmem:[#allocation6 + $0x8] sm:$0x1]
        %v2232 = vrot.slane %v2210, 7
        %v2233 = vrot.slane %v2211, 7
        %v2234 = vrot.slane %v2212, 7
        %v2235 = vrot.slane %v2213, 7
        %v2236 = vrot.slane %v2214, 7
        %v2237 = vrot.slane %v2215, 7
        %v2238 = vrot.slane %v2216, 7
        %v2239 = vrot.slane %v2217, 7
        %v2240 = vrot.slane %v2218, 7
        %v2241 = vrot.slane %v2219, 7
        %v2242 = vrot.slane %v2220, 7
        %v2243 = vrot.slane %v2221, 7
        %v2244 = vrot.slane %v2222, 7
        %v2245 = vrot.slane %v2223, 7
        %v2246 = vrot.slane %v2224, 7
        %v2247 = vrot.slane %v2225, 7
        %v2248 = vrot.slane %v2226, 7
        %v2249 = vrot.slane %v2227, 7
        %v2250 = vrot.slane %v2228, 7
        %v2251 = vrot.slane %v2229, 7
        %v2252 = vlaneseq
        %v2253 = vshrl.u32 %v2252, 7
        %vm2254 = vcmp.lt.s32.totalorder %v2253, 1
        %v2255 = vsel %vm2254, %v2250, %v2251
        %v2256 = vsel %vm2254, %v2249, %v2250
        %v2257 = vsel %vm2254, %v2248, %v2249
        %v2258 = vsel %vm2254, %v2247, %v2248
        %v2259 = vsel %vm2254, %v2246, %v2247
        %v2260 = vsel %vm2254, %v2245, %v2246
        %v2261 = vsel %vm2254, %v2244, %v2245
        %v2262 = vsel %vm2254, %v2243, %v2244
        %v2263 = vsel %vm2254, %v2242, %v2243
        %v2264 = vsel %vm2254, %v2241, %v2242
        %v2265 = vsel %vm2254, %v2240, %v2241
        %v2266 = vsel %vm2254, %v2239, %v2240
        %v2267 = vsel %vm2254, %v2238, %v2239
        %v2268 = vsel %vm2254, %v2237, %v2238
        %v2269 = vsel %vm2254, %v2236, %v2237
        %v2270 = vsel %vm2254, %v2235, %v2236
        %v2271 = vsel %vm2254, %v2234, %v2235
        %v2272 = vsel %vm2254, %v2233, %v2234
        %v2273 = vsel %vm2254, %v2232, %v2233
        %v2274 = vsel %vm2254, %v2251, %v2232
        %2276 = vset.pattern.permute.xlu0 0
        %2277 = vperm.xlu0 %2276, %v593
        %v2278 = vpop.permute.xlu0 %2277
        %2281 = vset.pattern.permute.xlu0 0
        %2282 = vperm.xlu0 %2281, %v594
        %v2283 = vpop.permute.xlu0 %2282
        %2286 = vset.pattern.permute.xlu0 0
        %2287 = vperm.xlu0 %2286, %v595
        %v2288 = vpop.permute.xlu0 %2287
        %2291 = vset.pattern.permute.xlu0 0
        %2292 = vperm.xlu0 %2291, %v596
        %v2293 = vpop.permute.xlu0 %2292
        %2296 = vset.pattern.permute.xlu0 0
        %2297 = vperm.xlu0 %2296, %v597
        %v2298 = vpop.permute.xlu0 %2297
        %2301 = vset.pattern.permute.xlu0 0
        %2302 = vperm.xlu0 %2301, %v598
        %v2303 = vpop.permute.xlu0 %2302
        %2306 = vset.pattern.permute.xlu0 0
        %2307 = vperm.xlu0 %2306, %v599
        %v2308 = vpop.permute.xlu0 %2307
        %2311 = vset.pattern.permute.xlu0 0
        %2312 = vperm.xlu0 %2311, %v600
        %v2313 = vpop.permute.xlu0 %2312
        %2316 = vset.pattern.permute.xlu0 0
        %2317 = vperm.xlu0 %2316, %v601
        %v2318 = vpop.permute.xlu0 %2317
        %2321 = vset.pattern.permute.xlu0 0
        %2322 = vperm.xlu0 %2321, %v602
        %v2323 = vpop.permute.xlu0 %2322
        %2326 = vset.pattern.permute.xlu0 0
        %2327 = vperm.xlu0 %2326, %v603
        %v2328 = vpop.permute.xlu0 %2327
        %2331 = vset.pattern.permute.xlu0 0
        %2332 = vperm.xlu0 %2331, %v604
        %v2333 = vpop.permute.xlu0 %2332
        %2336 = vset.pattern.permute.xlu0 0
        %2337 = vperm.xlu0 %2336, %v605
        %v2338 = vpop.permute.xlu0 %2337
        %2341 = vset.pattern.permute.xlu0 0
        %2342 = vperm.xlu0 %2341, %v606
        %v2343 = vpop.permute.xlu0 %2342
        %2346 = vset.pattern.permute.xlu0 0
        %2347 = vperm.xlu0 %2346, %v607
        %v2348 = vpop.permute.xlu0 %2347
        %2351 = vset.pattern.permute.xlu0 0
        %2352 = vperm.xlu0 %2351, %v608
        %v2353 = vpop.permute.xlu0 %2352
        %2356 = vset.pattern.permute.xlu0 0
        %2357 = vperm.xlu0 %2356, %v609
        %v2358 = vpop.permute.xlu0 %2357
        %2361 = vset.pattern.permute.xlu0 0
        %2362 = vperm.xlu0 %2361, %v610
        %v2363 = vpop.permute.xlu0 %2362
        %2366 = vset.pattern.permute.xlu0 0
        %2367 = vperm.xlu0 %2366, %v611
        %v2368 = vpop.permute.xlu0 %2367
        %2371 = vset.pattern.permute.xlu0 0
        %2372 = vperm.xlu0 %2371, %v612
        %v2373 = vpop.permute.xlu0 %2372
        %v2375 = vmul.f32 %v2274, %v2278
        %v2376 = vmul.f32 %v2273, %v2283
        %v2377 = vmul.f32 %v2272, %v2288
        %v2378 = vmul.f32 %v2271, %v2293
        %v2379 = vmul.f32 %v2270, %v2298
        %v2380 = vmul.f32 %v2269, %v2303
        %v2381 = vmul.f32 %v2268, %v2308
        %v2382 = vmul.f32 %v2267, %v2313
        %v2383 = vmul.f32 %v2266, %v2318
        %v2384 = vmul.f32 %v2265, %v2323
        %v2385 = vmul.f32 %v2264, %v2328
        %v2386 = vmul.f32 %v2263, %v2333
        %v2387 = vmul.f32 %v2262, %v2338
        %v2388 = vmul.f32 %v2261, %v2343
        %v2389 = vmul.f32 %v2260, %v2348
        %v2390 = vmul.f32 %v2259, %v2353
        %v2391 = vmul.f32 %v2258, %v2358
        %v2392 = vmul.f32 %v2257, %v2363
        %v2393 = vmul.f32 %v2256, %v2368
        %v2394 = vmul.f32 %v2255, %v2373
        %v2395 = vlaneseq
        %v2396 = vshrl.u32 %v2395, 7
        %v2397 = vsub.s32 0, %v2396
        %v2398 = vrot.slane %v2230, %v2397
        %v2399 = vmul.f32 %v2375, %v2398
        %v2400 = vmul.f32 %v2376, %v2398
        %v2401 = vmul.f32 %v2377, %v2398
        %v2402 = vmul.f32 %v2378, %v2398
        %v2403 = vmul.f32 %v2379, %v2398
        %v2404 = vmul.f32 %v2380, %v2398
        %v2405 = vmul.f32 %v2381, %v2398
        %v2406 = vmul.f32 %v2382, %v2398
        %v2407 = vmul.f32 %v2383, %v2398
        %v2408 = vmul.f32 %v2384, %v2398
        %v2409 = vmul.f32 %v2385, %v2398
        %v2410 = vmul.f32 %v2386, %v2398
        %v2411 = vmul.f32 %v2387, %v2398
        %v2412 = vmul.f32 %v2388, %v2398
        %v2413 = vmul.f32 %v2389, %v2398
        %v2414 = vmul.f32 %v2390, %v2398
        %v2415 = vadd.f32 %v2399, 0.0
        %v2416 = vadd.f32 %v2400, 0.0
        %v2417 = vadd.f32 %v2401, 0.0
        %v2418 = vadd.f32 %v2402, 0.0
        %v2419 = vadd.f32 %v2403, 0.0
        %v2420 = vadd.f32 %v2404, 0.0
        %v2421 = vadd.f32 %v2405, 0.0
        %v2422 = vadd.f32 %v2406, 0.0
        %v2423 = vadd.f32 %v2407, 0.0
        %v2424 = vadd.f32 %v2408, 0.0
        %v2425 = vadd.f32 %v2409, 0.0
        %v2426 = vadd.f32 %v2410, 0.0
        %v2427 = vadd.f32 %v2411, 0.0
        %v2428 = vadd.f32 %v2412, 0.0
        %v2429 = vadd.f32 %v2413, 0.0
        %v2430 = vadd.f32 %v2414, 0.0
        %v2431 = vlaneseq
        %v2432 = vshrl.u32 %v2431, 7
        %v2433 = vsub.s32 3, %v2432
        %v2434 = vrot.slane %v2230, %v2433
        %v2435 = vmul.f32 %v2377, %v2434
        %v2436 = vmul.f32 %v2378, %v2434
        %v2437 = vmul.f32 %v2379, %v2434
        %v2438 = vmul.f32 %v2380, %v2434
        %v2439 = vmul.f32 %v2381, %v2434
        %v2440 = vmul.f32 %v2382, %v2434
        %v2441 = vmul.f32 %v2383, %v2434
        %v2442 = vmul.f32 %v2384, %v2434
        %v2443 = vmul.f32 %v2385, %v2434
        %v2444 = vmul.f32 %v2386, %v2434
        %v2445 = vmul.f32 %v2387, %v2434
        %v2446 = vmul.f32 %v2388, %v2434
        %v2447 = vmul.f32 %v2389, %v2434
        %v2448 = vmul.f32 %v2390, %v2434
        %v2449 = vmul.f32 %v2391, %v2434
        %v2450 = vmul.f32 %v2392, %v2434
        %v2451 = vadd.f32 %v2415, %v2435
        %v2452 = vadd.f32 %v2416, %v2436
        %v2453 = vadd.f32 %v2417, %v2437
        %v2454 = vadd.f32 %v2418, %v2438
        %v2455 = vadd.f32 %v2419, %v2439
        %v2456 = vadd.f32 %v2420, %v2440
        %v2457 = vadd.f32 %v2421, %v2441
        %v2458 = vadd.f32 %v2422, %v2442
        %v2459 = vadd.f32 %v2423, %v2443
        %v2460 = vadd.f32 %v2424, %v2444
        %v2461 = vadd.f32 %v2425, %v2445
        %v2462 = vadd.f32 %v2426, %v2446
        %v2463 = vadd.f32 %v2427, %v2447
        %v2464 = vadd.f32 %v2428, %v2448
        %v2465 = vadd.f32 %v2429, %v2449
        %v2466 = vadd.f32 %v2430, %v2450
        %v2467 = vlaneseq
        %v2468 = vshrl.u32 %v2467, 7
        %v2469 = vsub.s32 6, %v2468
        %v2470 = vrot.slane %v2230, %v2469
        %v2471 = vmul.f32 %v2379, %v2470
        %v2472 = vmul.f32 %v2380, %v2470
        %v2473 = vmul.f32 %v2381, %v2470
        %v2474 = vmul.f32 %v2382, %v2470
        %v2475 = vmul.f32 %v2383, %v2470
        %v2476 = vmul.f32 %v2384, %v2470
        %v2477 = vmul.f32 %v2385, %v2470
        %v2478 = vmul.f32 %v2386, %v2470
        %v2479 = vmul.f32 %v2387, %v2470
        %v2480 = vmul.f32 %v2388, %v2470
        %v2481 = vmul.f32 %v2389, %v2470
        %v2482 = vmul.f32 %v2390, %v2470
        %v2483 = vmul.f32 %v2391, %v2470
        %v2484 = vmul.f32 %v2392, %v2470
        %v2485 = vmul.f32 %v2393, %v2470
        %v2486 = vmul.f32 %v2394, %v2470
        %v2487 = vadd.f32 %v2451, %v2471
        %v2488 = vadd.f32 %v2452, %v2472
        %v2489 = vadd.f32 %v2453, %v2473
        %v2490 = vadd.f32 %v2454, %v2474
        %v2491 = vadd.f32 %v2455, %v2475
        %v2492 = vadd.f32 %v2456, %v2476
        %v2493 = vadd.f32 %v2457, %v2477
        %v2494 = vadd.f32 %v2458, %v2478
        %v2495 = vadd.f32 %v2459, %v2479
        %v2496 = vadd.f32 %v2460, %v2480
        %v2497 = vadd.f32 %v2461, %v2481
        %v2498 = vadd.f32 %v2462, %v2482
        %v2499 = vadd.f32 %v2463, %v2483
        %v2500 = vadd.f32 %v2464, %v2484
        %v2501 = vadd.f32 %v2465, %v2485
        %v2502 = vadd.f32 %v2466, %v2486
        %v2503 = vlaneseq
        %v2504 = vshrl.u32 %v2503, 7
        %v2505 = vsub.s32 1, %v2504
        %v2506 = vrot.slane %v2230, %v2505
        %v2507 = vmul.f32 %v2210, %v2506
        %v2508 = vmul.f32 %v2211, %v2506
        %v2509 = vmul.f32 %v2212, %v2506
        %v2510 = vmul.f32 %v2213, %v2506
        %v2511 = vmul.f32 %v2214, %v2506
        %v2512 = vmul.f32 %v2215, %v2506
        %v2513 = vmul.f32 %v2216, %v2506
        %v2514 = vmul.f32 %v2217, %v2506
        %v2515 = vmul.f32 %v2218, %v2506
        %v2516 = vmul.f32 %v2219, %v2506
        %v2517 = vmul.f32 %v2220, %v2506
        %v2518 = vmul.f32 %v2221, %v2506
        %v2519 = vmul.f32 %v2222, %v2506
        %v2520 = vmul.f32 %v2223, %v2506
        %v2521 = vmul.f32 %v2224, %v2506
        %v2522 = vmul.f32 %v2225, %v2506
        %v2523 = vadd.f32 %v2487, %v2507
        %v2524 = vadd.f32 %v2488, %v2508
        %v2525 = vadd.f32 %v2489, %v2509
        %v2526 = vadd.f32 %v2490, %v2510
        %v2527 = vadd.f32 %v2491, %v2511
        %v2528 = vadd.f32 %v2492, %v2512
        %v2529 = vadd.f32 %v2493, %v2513
        %v2530 = vadd.f32 %v2494, %v2514
        %v2531 = vadd.f32 %v2495, %v2515
        %v2532 = vadd.f32 %v2496, %v2516
        %v2533 = vadd.f32 %v2497, %v2517
        %v2534 = vadd.f32 %v2498, %v2518
        %v2535 = vadd.f32 %v2499, %v2519
        %v2536 = vadd.f32 %v2500, %v2520
        %v2537 = vadd.f32 %v2501, %v2521
        %v2538 = vadd.f32 %v2502, %v2522
        %v2539 = vlaneseq
        %v2540 = vshrl.u32 %v2539, 7
        %v2541 = vsub.s32 4, %v2540
        %v2542 = vrot.slane %v2230, %v2541
        %v2543 = vmul.f32 %v2212, %v2542
        %v2544 = vmul.f32 %v2213, %v2542
        %v2545 = vmul.f32 %v2214, %v2542
        %v2546 = vmul.f32 %v2215, %v2542
        %v2547 = vmul.f32 %v2216, %v2542
        %v2548 = vmul.f32 %v2217, %v2542
        %v2549 = vmul.f32 %v2218, %v2542
        %v2550 = vmul.f32 %v2219, %v2542
        %v2551 = vmul.f32 %v2220, %v2542
        %v2552 = vmul.f32 %v2221, %v2542
        %v2553 = vmul.f32 %v2222, %v2542
        %v2554 = vmul.f32 %v2223, %v2542
        %v2555 = vmul.f32 %v2224, %v2542
        %v2556 = vmul.f32 %v2225, %v2542
        %v2557 = vmul.f32 %v2226, %v2542
        %v2558 = vmul.f32 %v2227, %v2542
        %v2559 = vadd.f32 %v2523, %v2543
        %v2560 = vadd.f32 %v2524, %v2544
        %v2561 = vadd.f32 %v2525, %v2545
        %v2562 = vadd.f32 %v2526, %v2546
        %v2563 = vadd.f32 %v2527, %v2547
        %v2564 = vadd.f32 %v2528, %v2548
        %v2565 = vadd.f32 %v2529, %v2549
        %v2566 = vadd.f32 %v2530, %v2550
        %v2567 = vadd.f32 %v2531, %v2551
        %v2568 = vadd.f32 %v2532, %v2552
        %v2569 = vadd.f32 %v2533, %v2553
        %v2570 = vadd.f32 %v2534, %v2554
        %v2571 = vadd.f32 %v2535, %v2555
        %v2572 = vadd.f32 %v2536, %v2556
        %v2573 = vadd.f32 %v2537, %v2557
        %v2574 = vadd.f32 %v2538, %v2558
        %v2575 = vlaneseq
        %v2576 = vshrl.u32 %v2575, 7
        %v2577 = vsub.s32 7, %v2576
        %v2578 = vrot.slane %v2230, %v2577
        %v2579 = vmul.f32 %v2214, %v2578
        %v2580 = vmul.f32 %v2215, %v2578
        %v2581 = vmul.f32 %v2216, %v2578
        %v2582 = vmul.f32 %v2217, %v2578
        %v2583 = vmul.f32 %v2218, %v2578
        %v2584 = vmul.f32 %v2219, %v2578
        %v2585 = vmul.f32 %v2220, %v2578
        %v2586 = vmul.f32 %v2221, %v2578
        %v2587 = vmul.f32 %v2222, %v2578
        %v2588 = vmul.f32 %v2223, %v2578
        %v2589 = vmul.f32 %v2224, %v2578
        %v2590 = vmul.f32 %v2225, %v2578
        %v2591 = vmul.f32 %v2226, %v2578
        %v2592 = vmul.f32 %v2227, %v2578
        %v2593 = vmul.f32 %v2228, %v2578
        %v2594 = vmul.f32 %v2229, %v2578
        %v2595 = vadd.f32 %v2559, %v2579
        %v2596 = vadd.f32 %v2560, %v2580
        %v2597 = vadd.f32 %v2561, %v2581
        %v2598 = vadd.f32 %v2562, %v2582
        %v2599 = vadd.f32 %v2563, %v2583
        %v2600 = vadd.f32 %v2564, %v2584
        %v2601 = vadd.f32 %v2565, %v2585
        %v2602 = vadd.f32 %v2566, %v2586
        %v2603 = vadd.f32 %v2567, %v2587
        %v2604 = vadd.f32 %v2568, %v2588
        %v2605 = vadd.f32 %v2569, %v2589
        %v2606 = vadd.f32 %v2570, %v2590
        %v2607 = vadd.f32 %v2571, %v2591
        %v2608 = vadd.f32 %v2572, %v2592
        %v2609 = vadd.f32 %v2573, %v2593
        %v2610 = vadd.f32 %v2574, %v2594
        %v2611 = vrot.slane %v2210, 1
        %v2612 = vrot.slane %v2211, 1
        %v2613 = vrot.slane %v2212, 1
        %v2614 = vrot.slane %v2213, 1
        %v2615 = vrot.slane %v2214, 1
        %v2616 = vrot.slane %v2215, 1
        %v2617 = vrot.slane %v2216, 1
        %v2618 = vrot.slane %v2217, 1
        %v2619 = vrot.slane %v2218, 1
        %v2620 = vrot.slane %v2219, 1
        %v2621 = vrot.slane %v2220, 1
        %v2622 = vrot.slane %v2221, 1
        %v2623 = vrot.slane %v2222, 1
        %v2624 = vrot.slane %v2223, 1
        %v2625 = vrot.slane %v2224, 1
        %v2626 = vrot.slane %v2225, 1
        %v2627 = vrot.slane %v2226, 1
        %v2628 = vrot.slane %v2227, 1
        %v2629 = vrot.slane %v2228, 1
        %v2630 = vrot.slane %v2229, 1
        %vm2631 = vcmp.lt.s32.totalorder %v2253, 7
        %v2632 = vsel %vm2631, %v2629, %v2630
        %v2633 = vsel %vm2631, %v2628, %v2629
        %v2634 = vsel %vm2631, %v2627, %v2628
        %v2635 = vsel %vm2631, %v2626, %v2627
        %v2636 = vsel %vm2631, %v2625, %v2626
        %v2637 = vsel %vm2631, %v2624, %v2625
        %v2638 = vsel %vm2631, %v2623, %v2624
        %v2639 = vsel %vm2631, %v2622, %v2623
        %v2640 = vsel %vm2631, %v2621, %v2622
        %v2641 = vsel %vm2631, %v2620, %v2621
        %v2642 = vsel %vm2631, %v2619, %v2620
        %v2643 = vsel %vm2631, %v2618, %v2619
        %v2644 = vsel %vm2631, %v2617, %v2618
        %v2645 = vsel %vm2631, %v2616, %v2617
        %v2646 = vsel %vm2631, %v2615, %v2616
        %v2647 = vsel %vm2631, %v2614, %v2615
        %v2648 = vsel %vm2631, %v2613, %v2614
        %v2649 = vsel %vm2631, %v2612, %v2613
        %v2650 = vsel %vm2631, %v2611, %v2612
        %v2651 = vsel %vm2631, %v2630, %v2611
        %2652 = vset.pattern.permute.xlu0 2
        %2653 = vperm.xlu0 %2652, %v593
        %v2654 = vpop.permute.xlu0 %2653
        %2656 = vset.pattern.permute.xlu0 2
        %2657 = vperm.xlu0 %2656, %v594
        %v2658 = vpop.permute.xlu0 %2657
        %2660 = vset.pattern.permute.xlu0 2
        %2661 = vperm.xlu0 %2660, %v595
        %v2662 = vpop.permute.xlu0 %2661
        %2664 = vset.pattern.permute.xlu0 2
        %2665 = vperm.xlu0 %2664, %v596
        %v2666 = vpop.permute.xlu0 %2665
        %2668 = vset.pattern.permute.xlu0 2
        %2669 = vperm.xlu0 %2668, %v597
        %v2670 = vpop.permute.xlu0 %2669
        %2672 = vset.pattern.permute.xlu0 2
        %2673 = vperm.xlu0 %2672, %v598
        %v2674 = vpop.permute.xlu0 %2673
        %2676 = vset.pattern.permute.xlu0 2
        %2677 = vperm.xlu0 %2676, %v599
        %v2678 = vpop.permute.xlu0 %2677
        %2680 = vset.pattern.permute.xlu0 2
        %2681 = vperm.xlu0 %2680, %v600
        %v2682 = vpop.permute.xlu0 %2681
        %2684 = vset.pattern.permute.xlu0 2
        %2685 = vperm.xlu0 %2684, %v601
        %v2686 = vpop.permute.xlu0 %2685
        %2688 = vset.pattern.permute.xlu0 2
        %2689 = vperm.xlu0 %2688, %v602
        %v2690 = vpop.permute.xlu0 %2689
        %2692 = vset.pattern.permute.xlu0 2
        %2693 = vperm.xlu0 %2692, %v603
        %v2694 = vpop.permute.xlu0 %2693
        %2696 = vset.pattern.permute.xlu0 2
        %2697 = vperm.xlu0 %2696, %v604
        %v2698 = vpop.permute.xlu0 %2697
        %2700 = vset.pattern.permute.xlu0 2
        %2701 = vperm.xlu0 %2700, %v605
        %v2702 = vpop.permute.xlu0 %2701
        %2704 = vset.pattern.permute.xlu0 2
        %2705 = vperm.xlu0 %2704, %v606
        %v2706 = vpop.permute.xlu0 %2705
        %2708 = vset.pattern.permute.xlu0 2
        %2709 = vperm.xlu0 %2708, %v607
        %v2710 = vpop.permute.xlu0 %2709
        %2712 = vset.pattern.permute.xlu0 2
        %2713 = vperm.xlu0 %2712, %v608
        %v2714 = vpop.permute.xlu0 %2713
        %2716 = vset.pattern.permute.xlu0 2
        %2717 = vperm.xlu0 %2716, %v609
        %v2718 = vpop.permute.xlu0 %2717
        %2720 = vset.pattern.permute.xlu0 2
        %2721 = vperm.xlu0 %2720, %v610
        %v2722 = vpop.permute.xlu0 %2721
        %2724 = vset.pattern.permute.xlu0 2
        %2725 = vperm.xlu0 %2724, %v611
        %v2726 = vpop.permute.xlu0 %2725
        %2728 = vset.pattern.permute.xlu0 2
        %2729 = vperm.xlu0 %2728, %v612
        %v2730 = vpop.permute.xlu0 %2729
        %v2732 = vmul.f32 %v2650, %v2654
        %v2733 = vmul.f32 %v2649, %v2658
        %v2734 = vmul.f32 %v2648, %v2662
        %v2735 = vmul.f32 %v2647, %v2666
        %v2736 = vmul.f32 %v2646, %v2670
        %v2737 = vmul.f32 %v2645, %v2674
        %v2738 = vmul.f32 %v2644, %v2678
        %v2739 = vmul.f32 %v2643, %v2682
        %v2740 = vmul.f32 %v2642, %v2686
        %v2741 = vmul.f32 %v2641, %v2690
        %v2742 = vmul.f32 %v2640, %v2694
        %v2743 = vmul.f32 %v2639, %v2698
        %v2744 = vmul.f32 %v2638, %v2702
        %v2745 = vmul.f32 %v2637, %v2706
        %v2746 = vmul.f32 %v2636, %v2710
        %v2747 = vmul.f32 %v2635, %v2714
        %v2748 = vmul.f32 %v2634, %v2718
        %v2749 = vmul.f32 %v2633, %v2722
        %v2750 = vmul.f32 %v2632, %v2726
        %v2751 = vmul.f32 %v2651, %v2730
        %v2752 = vlaneseq
        %v2753 = vshrl.u32 %v2752, 7
        %v2754 = vsub.s32 2, %v2753
        %v2755 = vrot.slane %v2230, %v2754
        %v2756 = vmul.f32 %v2732, %v2755
        %v2757 = vmul.f32 %v2733, %v2755
        %v2758 = vmul.f32 %v2734, %v2755
        %v2759 = vmul.f32 %v2735, %v2755
        %v2760 = vmul.f32 %v2736, %v2755
        %v2761 = vmul.f32 %v2737, %v2755
        %v2762 = vmul.f32 %v2738, %v2755
        %v2763 = vmul.f32 %v2739, %v2755
        %v2764 = vmul.f32 %v2740, %v2755
        %v2765 = vmul.f32 %v2741, %v2755
        %v2766 = vmul.f32 %v2742, %v2755
        %v2767 = vmul.f32 %v2743, %v2755
        %v2768 = vmul.f32 %v2744, %v2755
        %v2769 = vmul.f32 %v2745, %v2755
        %v2770 = vmul.f32 %v2746, %v2755
        %v2771 = vmul.f32 %v2747, %v2755
        %v2772 = vadd.f32 %v2595, %v2756
        %v2773 = vadd.f32 %v2596, %v2757
        %v2774 = vadd.f32 %v2597, %v2758
        %v2775 = vadd.f32 %v2598, %v2759
        %v2776 = vadd.f32 %v2599, %v2760
        %v2777 = vadd.f32 %v2600, %v2761
        %v2778 = vadd.f32 %v2601, %v2762
        %v2779 = vadd.f32 %v2602, %v2763
        %v2780 = vadd.f32 %v2603, %v2764
        %v2781 = vadd.f32 %v2604, %v2765
        %v2782 = vadd.f32 %v2605, %v2766
        %v2783 = vadd.f32 %v2606, %v2767
        %v2784 = vadd.f32 %v2607, %v2768
        %v2785 = vadd.f32 %v2608, %v2769
        %v2786 = vadd.f32 %v2609, %v2770
        %v2787 = vadd.f32 %v2610, %v2771
        %v2788 = vlaneseq
        %v2789 = vshrl.u32 %v2788, 7
        %v2790 = vsub.s32 5, %v2789
        %v2791 = vrot.slane %v2230, %v2790
        %v2792 = vmul.f32 %v2734, %v2791
        %v2793 = vmul.f32 %v2735, %v2791
        %v2794 = vmul.f32 %v2736, %v2791
        %v2795 = vmul.f32 %v2737, %v2791
        %v2796 = vmul.f32 %v2738, %v2791
        %v2797 = vmul.f32 %v2739, %v2791
        %v2798 = vmul.f32 %v2740, %v2791
        %v2799 = vmul.f32 %v2741, %v2791
        %v2800 = vmul.f32 %v2742, %v2791
        %v2801 = vmul.f32 %v2743, %v2791
        %v2802 = vmul.f32 %v2744, %v2791
        %v2803 = vmul.f32 %v2745, %v2791
        %v2804 = vmul.f32 %v2746, %v2791
        %v2805 = vmul.f32 %v2747, %v2791
        %v2806 = vmul.f32 %v2748, %v2791
        %v2807 = vmul.f32 %v2749, %v2791
        %v2808 = vadd.f32 %v2772, %v2792
        %v2809 = vadd.f32 %v2773, %v2793
        %v2810 = vadd.f32 %v2774, %v2794
        %v2811 = vadd.f32 %v2775, %v2795
        %v2812 = vadd.f32 %v2776, %v2796
        %v2813 = vadd.f32 %v2777, %v2797
        %v2814 = vadd.f32 %v2778, %v2798
        %v2815 = vadd.f32 %v2779, %v2799
        %v2816 = vadd.f32 %v2780, %v2800
        %v2817 = vadd.f32 %v2781, %v2801
        %v2818 = vadd.f32 %v2782, %v2802
        %v2819 = vadd.f32 %v2783, %v2803
        %v2820 = vadd.f32 %v2784, %v2804
        %v2821 = vadd.f32 %v2785, %v2805
        %v2822 = vadd.f32 %v2786, %v2806
        %v2823 = vadd.f32 %v2787, %v2807
        %v2824 = vlaneseq
        %v2825 = vshrl.u32 %v2824, 7
        %v2826 = vsub.s32 0, %v2825
        %v2827 = vrot.slane %v2231, %v2826
        %v2828 = vmul.f32 %v2736, %v2827
        %v2829 = vmul.f32 %v2737, %v2827
        %v2830 = vmul.f32 %v2738, %v2827
        %v2831 = vmul.f32 %v2739, %v2827
        %v2832 = vmul.f32 %v2740, %v2827
        %v2833 = vmul.f32 %v2741, %v2827
        %v2834 = vmul.f32 %v2742, %v2827
        %v2835 = vmul.f32 %v2743, %v2827
        %v2836 = vmul.f32 %v2744, %v2827
        %v2837 = vmul.f32 %v2745, %v2827
        %v2838 = vmul.f32 %v2746, %v2827
        %v2839 = vmul.f32 %v2747, %v2827
        %v2840 = vmul.f32 %v2748, %v2827
        %v2841 = vmul.f32 %v2749, %v2827
        %v2842 = vmul.f32 %v2750, %v2827
        %v2843 = vmul.f32 %v2751, %v2827
        %v2844 = vadd.f32 %v2808, %v2828
        %v2845 = vadd.f32 %v2809, %v2829
        %v2846 = vadd.f32 %v2810, %v2830
        %v2847 = vadd.f32 %v2811, %v2831
        %v2848 = vadd.f32 %v2812, %v2832
        %v2849 = vadd.f32 %v2813, %v2833
        %v2850 = vadd.f32 %v2814, %v2834
        %v2851 = vadd.f32 %v2815, %v2835
        %v2852 = vadd.f32 %v2816, %v2836
        %v2853 = vadd.f32 %v2817, %v2837
        %v2854 = vadd.f32 %v2818, %v2838
        %v2855 = vadd.f32 %v2819, %v2839
        %v2856 = vadd.f32 %v2820, %v2840
        %v2857 = vadd.f32 %v2821, %v2841
        %v2858 = vadd.f32 %v2822, %v2842
        %v2859 = vadd.f32 %v2823, %v2843
        %v2860 = vld [vmem:[%s7] sm:$0x1]
        %v2862 = vlaneseq
        %v2863 = vshrl.u32 %v2862, 7
        %v2864 = vsub.s32 0, %v2863
        %v2865 = vrot.slane %v2860, %v2864
        %v2867 = vmul.f32 %v2844, %v2865
        %v2868 = vmul.f32 %v2845, %v2865
        %v2869 = vmul.f32 %v2846, %v2865
        %v2870 = vmul.f32 %v2847, %v2865
        %v2871 = vmul.f32 %v2848, %v2865
        %v2872 = vmul.f32 %v2849, %v2865
        %v2873 = vmul.f32 %v2850, %v2865
        %v2874 = vmul.f32 %v2851, %v2865
        %v2875 = vmul.f32 %v2852, %v2865
        %v2876 = vmul.f32 %v2853, %v2865
        %v2877 = vmul.f32 %v2854, %v2865
        %v2878 = vmul.f32 %v2855, %v2865
        %v2879 = vmul.f32 %v2856, %v2865
        %v2880 = vmul.f32 %v2857, %v2865
        %v2881 = vmul.f32 %v2858, %v2865
        %v2882 = vmul.f32 %v2859, %v2865
        %v2883 = vld [vmem:[%s8] sm:$0x1]
        %v2885 = vlaneseq
        %v2886 = vshrl.u32 %v2885, 7
        %v2887 = vsub.s32 0, %v2886
        %v2888 = vrot.slane %v2883, %v2887
        %v2890 = vadd.f32 %v2867, %v2888
        %v2891 = vadd.f32 %v2868, %v2888
        %v2892 = vadd.f32 %v2869, %v2888
        %v2893 = vadd.f32 %v2870, %v2888
        %v2894 = vadd.f32 %v2871, %v2888
        %v2895 = vadd.f32 %v2872, %v2888
        %v2896 = vadd.f32 %v2873, %v2888
        %v2897 = vadd.f32 %v2874, %v2888
        %v2898 = vadd.f32 %v2875, %v2888
        %v2899 = vadd.f32 %v2876, %v2888
        %v2900 = vadd.f32 %v2877, %v2888
        %v2901 = vadd.f32 %v2878, %v2888
        %v2902 = vadd.f32 %v2879, %v2888
        %v2903 = vadd.f32 %v2880, %v2888
        %v2904 = vadd.f32 %v2881, %v2888
        %v2905 = vadd.f32 %v2882, %v2888
        %v2906 = vld [vmem:[#allocation7] sm:$0xff]
        %v2907 = vld [vmem:[#allocation7 + $0x8] sm:$0xff]
        %v2908 = vld [vmem:[#allocation7 + $0x10] sm:$0xff]
        %v2909 = vld [vmem:[#allocation7 + $0x18] sm:$0xff]
        %vm2910 = vcmask 261120
        %v2912 = vsel %vm2910, %v2890, 0
        %v2915 = vsel %vm2910, %v2891, 0
        %v2918 = vsel %vm2910, %v2892, 0
        %v2921 = vsel %vm2910, %v2893, 0
        %v2924 = vsel %vm2910, %v2894, 0
        %v2927 = vsel %vm2910, %v2895, 0
        %v2930 = vsel %vm2910, %v2896, 0
        %v2933 = vsel %vm2910, %v2897, 0
        %v2936 = vsel %vm2910, %v2898, 0
        %v2939 = vsel %vm2910, %v2899, 0
        %v2942 = vsel %vm2910, %v2900, 0
        %v2945 = vsel %vm2910, %v2901, 0
        %v2948 = vsel %vm2910, %v2902, 0
        %v2951 = vsel %vm2910, %v2903, 0
        %v2954 = vsel %vm2910, %v2904, 0
        %v2957 = vsel %vm2910, %v2905, 0
        %2959 = vmatprep.subr.mxu0 0.0
        %v2960 = vand.u32 %v2906, 4294901760
        %2961 = vmatpush1.msra.mxu0 %v2960
        %2962 = vmatprep.subr.mxu0 0.0
        %v2963 = vand.u32 %v2907, 4294901760
        %2964 = vmatpush1.msra.mxu0 %v2963
        %2965 = vmatprep.subr.mxu0 0.0
        %v2966 = vand.u32 %v2908, 4294901760
        %2967 = vmatpush1.msra.mxu0 %v2966
        %2968 = vmatprep.subr.mxu0 0.0
        %v2969 = vand.u32 %v2909, 4294901760
        %2970 = vmatpush1.msra.mxu0 %v2969
        %2971 = vmatprep.subr.mxu0 0.0
        %2972 = vmatpush1.msra.mxu0 0.0
        %2973 = vmatprep.subr.mxu0 0.0
        %2974 = vmatpush1.msra.mxu0 0.0
        %2975 = vmatprep.subr.mxu0 0.0
        %2976 = vmatpush1.msra.mxu0 0.0
        %2977 = vmatprep.subr.mxu0 0.0
        %2978 = vmatpush1.msra.mxu0 0.0
        %2979 = vmatprep.subr.mxu0 0.0
        %2980 = vmatpush1.msra.mxu0 0.0
        %2981 = vmatprep.subr.mxu0 0.0
        %2982 = vmatpush1.msra.mxu0 0.0
        %2983 = vmatprep.subr.mxu0 0.0
        %2984 = vmatpush1.msra.mxu0 0.0
        %2985 = vmatprep.subr.mxu0 0.0
        %2986 = vmatpush1.msra.mxu0 0.0
        %2987 = vmatprep.subr.mxu0 0.0
        %2988 = vmatpush1.msra.mxu0 0.0
        %2989 = vmatprep.subr.mxu0 0.0
        %2990 = vmatpush1.msra.mxu0 0.0
        %2991 = vmatprep.subr.mxu0 0.0
        %2992 = vmatpush1.msra.mxu0 0.0
        %2993 = vmatprep.subr.mxu0 0.0
        %2994 = vmatpush1.msra.mxu0 0.0
        %2995 = vmatprep.subr.mxu0 0.0
        %2996 = vmatpush1.msra.mxu0 0.0
        %2997 = vmatprep.subr.mxu0 0.0
        %2998 = vmatpush1.msra.mxu0 0.0
        %2999 = vmatprep.subr.mxu0 0.0
        %3000 = vmatpush1.msra.mxu0 0.0
        %3001 = vmatprep.subr.mxu0 0.0
        %3002 = vmatpush1.msra.mxu0 0.0
        %3003 = vmatprep.subr.mxu0 0.0
        %3004 = vmatpush1.msra.mxu0 0.0
        %3005 = vmatprep.subr.mxu0 0.0
        %3006 = vmatpush1.msra.mxu0 0.0
        %3007 = vmatprep.subr.mxu0 0.0
        %3008 = vmatpush1.msra.mxu0 0.0
        %3009 = vmatprep.subr.mxu0 0.0
        %3010 = vmatpush1.msra.mxu0 0.0
        %3011 = vmatprep.subr.mxu0 0.0
        %3012 = vmatpush1.msra.mxu0 0.0
        %3013 = vmatprep.subr.mxu0 0.0
        %3014 = vmatpush1.msra.mxu0 0.0
        %3015 = vmatprep.subr.mxu0 0.0
        %3016 = vmatpush1.msra.mxu0 0.0
        %3017 = vmatprep.subr.mxu0 0.0
        %3018 = vmatpush1.msra.mxu0 0.0
        %3019 = vmatprep.subr.mxu0 0.0
        %3020 = vmatpush1.msra.mxu0 0.0
        %3021 = vmatprep.subr.mxu0 0.0
        %3022 = vmatpush1.msra.mxu0 0.0
        %3023 = vmatprep.subr.mxu0 0.0
        %3024 = vmatpush1.msra.mxu0 0.0
        %3025 = vmatprep.subr.mxu0 0.0
        %3026 = vmatpush1.msra.mxu0 0.0
        %3027 = vmatprep.mubr.f32.mxu0 0.0
        %v3028 = vand.u32 %v2912, 4294901760
        %v3029 = vsub.f32 %v2912, %v3028
        %v3030 = vand.u32 %v3029, 4294901760
        %v3031 = vsub.f32 %v3029, %v3030
        %v3032 = vand.u32 %v3031, 4294901760
        %3033 = vmatmul.mubr.f32.gmra.mrb[0].mxu0 %v3032
        %v3034 = vpop.f32.mrb[0].mxu0
        %v3035 = vadd.f32 0.0, %v3034
        %v3036 = vpop.f32.mrb[0].mxu0
        %3037 = vmatprep.mubr.f32.mxu0 0.0
        %v3038 = vand.u32 %v2915, 4294901760
        %v3039 = vsub.f32 %v2915, %v3038
        %v3040 = vand.u32 %v3039, 4294901760
        %v3041 = vsub.f32 %v3039, %v3040
        %v3042 = vand.u32 %v3041, 4294901760
        %3043 = vmatmul.mubr.f32.gmra.mrb[0].mxu0 %v3042
        %v3044 = vpop.f32.mrb[0].mxu0
        %v3045 = vadd.f32 0.0, %v3044
        %v3046 = vpop.f32.mrb[0].mxu0
        %3047 = vmatprep.mubr.f32.mxu0 0.0
        %v3048 = vand.u32 %v2918, 4294901760
        %v3049 = vsub.f32 %v2918, %v3048
        %v3050 = vand.u32 %v3049, 4294901760
        %v3051 = vsub.f32 %v3049, %v3050
        %v3052 = vand.u32 %v3051, 4294901760
        %3053 = vmatmul.mubr.f32.gmra.mrb[0].mxu0 %v3052
        %v3054 = vpop.f32.mrb[0].mxu0
        %v3055 = vadd.f32 0.0, %v3054
        %v3056 = vpop.f32.mrb[0].mxu0
        %3057 = vmatprep.mubr.f32.mxu0 0.0
        %v3058 = vand.u32 %v2921, 4294901760
        %v3059 = vsub.f32 %v2921, %v3058
        %v3060 = vand.u32 %v3059, 4294901760
        %v3061 = vsub.f32 %v3059, %v3060
        %v3062 = vand.u32 %v3061, 4294901760
        %3063 = vmatmul.mubr.f32.gmra.mrb[0].mxu0 %v3062
        %v3064 = vpop.f32.mrb[0].mxu0
        %v3065 = vadd.f32 0.0, %v3064
        %v3066 = vpop.f32.mrb[0].mxu0
        %3067 = vmatprep.mubr.f32.mxu0 0.0
        %v3068 = vand.u32 %v2924, 4294901760
        %v3069 = vsub.f32 %v2924, %v3068
        %v3070 = vand.u32 %v3069, 4294901760
        %v3071 = vsub.f32 %v3069, %v3070
        %v3072 = vand.u32 %v3071, 4294901760
        %3073 = vmatmul.mubr.f32.gmra.mrb[0].mxu0 %v3072
        %v3074 = vpop.f32.mrb[0].mxu0
        %v3075 = vadd.f32 0.0, %v3074
        %v3076 = vpop.f32.mrb[0].mxu0
        %3077 = vmatprep.mubr.f32.mxu0 0.0
        %v3078 = vand.u32 %v2927, 4294901760
        %v3079 = vsub.f32 %v2927, %v3078
        %v3080 = vand.u32 %v3079, 4294901760
        %v3081 = vsub.f32 %v3079, %v3080
        %v3082 = vand.u32 %v3081, 4294901760
        %3083 = vmatmul.mubr.f32.gmra.mrb[0].mxu0 %v3082
        %v3084 = vpop.f32.mrb[0].mxu0
        %v3085 = vadd.f32 0.0, %v3084
        %v3086 = vpop.f32.mrb[0].mxu0
        %3087 = vmatprep.mubr.f32.mxu0 0.0
        %v3088 = vand.u32 %v2930, 4294901760
        %v3089 = vsub.f32 %v2930, %v3088
        %v3090 = vand.u32 %v3089, 4294901760
        %v3091 = vsub.f32 %v3089, %v3090
        %v3092 = vand.u32 %v3091, 4294901760
        %3093 = vmatmul.mubr.f32.gmra.mrb[0].mxu0 %v3092
        %v3094 = vpop.f32.mrb[0].mxu0
        %v3095 = vadd.f32 0.0, %v3094
        %v3096 = vpop.f32.mrb[0].mxu0
        %3097 = vmatprep.mubr.f32.mxu0 0.0
        %v3098 = vand.u32 %v2933, 4294901760
        %v3099 = vsub.f32 %v2933, %v3098
        %v3100 = vand.u32 %v3099, 4294901760
        %v3101 = vsub.f32 %v3099, %v3100
        %v3102 = vand.u32 %v3101, 4294901760
        %3103 = vmatmul.mubr.f32.gmra.mrb[0].mxu0 %v3102
        %v3104 = vpop.f32.mrb[0].mxu0
        %v3105 = vadd.f32 0.0, %v3104
        %v3106 = vpop.f32.mrb[0].mxu0
        %3107 = vmatprep.mubr.f32.mxu0 0.0
        %v3108 = vand.u32 %v2936, 4294901760
        %v3109 = vsub.f32 %v2936, %v3108
        %v3110 = vand.u32 %v3109, 4294901760
        %v3111 = vsub.f32 %v3109, %v3110
        %v3112 = vand.u32 %v3111, 4294901760
        %3113 = vmatmul.mubr.f32.gmra.mrb[0].mxu0 %v3112
        %v3114 = vpop.f32.mrb[0].mxu0
        %v3115 = vadd.f32 0.0, %v3114
        %v3116 = vpop.f32.mrb[0].mxu0
        %3117 = vmatprep.mubr.f32.mxu0 0.0
        %v3118 = vand.u32 %v2939, 4294901760
        %v3119 = vsub.f32 %v2939, %v3118
        %v3120 = vand.u32 %v3119, 4294901760
        %v3121 = vsub.f32 %v3119, %v3120
        %v3122 = vand.u32 %v3121, 4294901760
        %3123 = vmatmul.mubr.f32.gmra.mrb[0].mxu0 %v3122
        %v3124 = vpop.f32.mrb[0].mxu0
        %v3125 = vadd.f32 0.0, %v3124
        %v3126 = vpop.f32.mrb[0].mxu0
        %3127 = vmatprep.mubr.f32.mxu0 0.0
        %v3128 = vand.u32 %v2942, 4294901760
        %v3129 = vsub.f32 %v2942, %v3128
        %v3130 = vand.u32 %v3129, 4294901760
        %v3131 = vsub.f32 %v3129, %v3130
        %v3132 = vand.u32 %v3131, 4294901760
        %3133 = vmatmul.mubr.f32.gmra.mrb[0].mxu0 %v3132
        %v3134 = vpop.f32.mrb[0].mxu0
        %v3135 = vadd.f32 0.0, %v3134
        %v3136 = vpop.f32.mrb[0].mxu0
        %3137 = vmatprep.mubr.f32.mxu0 0.0
        %v3138 = vand.u32 %v2945, 4294901760
        %v3139 = vsub.f32 %v2945, %v3138
        %v3140 = vand.u32 %v3139, 4294901760
        %v3141 = vsub.f32 %v3139, %v3140
        %v3142 = vand.u32 %v3141, 4294901760
        %3143 = vmatmul.mubr.f32.gmra.mrb[0].mxu0 %v3142
        %v3144 = vpop.f32.mrb[0].mxu0
        %v3145 = vadd.f32 0.0, %v3144
        %v3146 = vpop.f32.mrb[0].mxu0
        %3147 = vmatprep.mubr.f32.mxu0 0.0
        %v3148 = vand.u32 %v2948, 4294901760
        %v3149 = vsub.f32 %v2948, %v3148
        %v3150 = vand.u32 %v3149, 4294901760
        %v3151 = vsub.f32 %v3149, %v3150
        %v3152 = vand.u32 %v3151, 4294901760
        %3153 = vmatmul.mubr.f32.gmra.mrb[0].mxu0 %v3152
        %v3154 = vpop.f32.mrb[0].mxu0
        %v3155 = vadd.f32 0.0, %v3154
        %v3156 = vpop.f32.mrb[0].mxu0
        %3157 = vmatprep.mubr.f32.mxu0 0.0
        %v3158 = vand.u32 %v2951, 4294901760
        %v3159 = vsub.f32 %v2951, %v3158
        %v3160 = vand.u32 %v3159, 4294901760
        %v3161 = vsub.f32 %v3159, %v3160
        %v3162 = vand.u32 %v3161, 4294901760
        %3163 = vmatmul.mubr.f32.gmra.mrb[0].mxu0 %v3162
        %v3164 = vpop.f32.mrb[0].mxu0
        %v3165 = vadd.f32 0.0, %v3164
        %v3166 = vpop.f32.mrb[0].mxu0
        %3167 = vmatprep.mubr.f32.mxu0 0.0
        %v3168 = vand.u32 %v2954, 4294901760
        %v3169 = vsub.f32 %v2954, %v3168
        %v3170 = vand.u32 %v3169, 4294901760
        %v3171 = vsub.f32 %v3169, %v3170
        %v3172 = vand.u32 %v3171, 4294901760
        %3173 = vmatmul.mubr.f32.gmra.mrb[0].mxu0 %v3172
        %v3174 = vpop.f32.mrb[0].mxu0
        %v3175 = vadd.f32 0.0, %v3174
        %v3176 = vpop.f32.mrb[0].mxu0
        %3177 = vmatprep.mubr.f32.mxu0 0.0
        %v3178 = vand.u32 %v2957, 4294901760
        %v3179 = vsub.f32 %v2957, %v3178
        %v3180 = vand.u32 %v3179, 4294901760
        %v3181 = vsub.f32 %v3179, %v3180
        %v3182 = vand.u32 %v3181, 4294901760
        %3183 = vmatmul.mubr.f32.gmra.mrb[0].mxu0 %v3182
        %v3184 = vpop.f32.mrb[0].mxu0
        %v3185 = vadd.f32 0.0, %v3184
        %v3186 = vpop.f32.mrb[0].mxu0
        %3187 = vdwg.mxu0
        %3188 = vmatprep.subr.mxu0 0.0
        %v3189 = vand.u32 %v2906, 4294901760
        %v3190 = vsub.f32 %v2906, %v3189
        %v3191 = vand.u32 %v3190, 4294901760
        %v3192 = vsub.f32 %v3190, %v3191
        %v3193 = vand.u32 %v3192, 4294901760
        %3194 = vmatpush1.msra.mxu0 %v3193
        %3195 = vmatprep.subr.mxu0 0.0
        %v3196 = vand.u32 %v2907, 4294901760
        %v3197 = vsub.f32 %v2907, %v3196
        %v3198 = vand.u32 %v3197, 4294901760
        %v3199 = vsub.f32 %v3197, %v3198
        %v3200 = vand.u32 %v3199, 4294901760
        %3201 = vmatpush1.msra.mxu0 %v3200
        %3202 = vmatprep.subr.mxu0 0.0
        %v3203 = vand.u32 %v2908, 4294901760
        %v3204 = vsub.f32 %v2908, %v3203
        %v3205 = vand.u32 %v3204, 4294901760
        %v3206 = vsub.f32 %v3204, %v3205
        %v3207 = vand.u32 %v3206, 4294901760
        %3208 = vmatpush1.msra.mxu0 %v3207
        %3209 = vmatprep.subr.mxu0 0.0
        %v3210 = vand.u32 %v2909, 4294901760
        %v3211 = vsub.f32 %v2909, %v3210
        %v3212 = vand.u32 %v3211, 4294901760
        %v3213 = vsub.f32 %v3211, %v3212
        %v3214 = vand.u32 %v3213, 4294901760
        %3215 = vmatpush1.msra.mxu0 %v3214
        %3216 = vmatprep.subr.mxu0 0.0
        %3217 = vmatpush1.msra.mxu0 0.0
        %3218 = vmatprep.subr.mxu0 0.0
        %3219 = vmatpush1.msra.mxu0 0.0
        %3220 = vmatprep.subr.mxu0 0.0
        %3221 = vmatpush1.msra.mxu0 0.0
        %3222 = vmatprep.subr.mxu0 0.0
        %3223 = vmatpush1.msra.mxu0 0.0
        %3224 = vmatprep.subr.mxu0 0.0
        %3225 = vmatpush1.msra.mxu0 0.0
        %3226 = vmatprep.subr.mxu0 0.0
        %3227 = vmatpush1.msra.mxu0 0.0
        %3228 = vmatprep.subr.mxu0 0.0
        %3229 = vmatpush1.msra.mxu0 0.0
        %3230 = vmatprep.subr.mxu0 0.0
        %3231 = vmatpush1.msra.mxu0 0.0
        %3232 = vmatprep.subr.mxu0 0.0
        %3233 = vmatpush1.msra.mxu0 0.0
        %3234 = vmatprep.subr.mxu0 0.0
        %3235 = vmatpush1.msra.mxu0 0.0
        %3236 = vmatprep.subr.mxu0 0.0
        %3237 = vmatpush1.msra.mxu0 0.0
        %3238 = vmatprep.subr.mxu0 0.0
        %3239 = vmatpush1.msra.mxu0 0.0
        %3240 = vmatprep.subr.mxu0 0.0
        %3241 = vmatpush1.msra.mxu0 0.0
        %3242 = vmatprep.subr.mxu0 0.0
        %3243 = vmatpush1.msra.mxu0 0.0
        %3244 = vmatprep.subr.mxu0 0.0
        %3245 = vmatpush1.msra.mxu0 0.0
        %3246 = vmatprep.subr.mxu0 0.0
        %3247 = vmatpush1.msra.mxu0 0.0
        %3248 = vmatprep.subr.mxu0 0.0
        %3249 = vmatpush1.msra.mxu0 0.0
        %3250 = vmatprep.subr.mxu0 0.0
        %3251 = vmatpush1.msra.mxu0 0.0
        %3252 = vmatprep.subr.mxu0 0.0
        %3253 = vmatpush1.msra.mxu0 0.0
        %3254 = vmatprep.subr.mxu0 0.0
        %3255 = vmatpush1.msra.mxu0 0.0
        %3256 = vmatprep.subr.mxu0 0.0
        %3257 = vmatpush1.msra.mxu0 0.0
        %3258 = vmatprep.subr.mxu0 0.0
        %3259 = vmatpush1.msra.mxu0 0.0
        %3260 = vmatprep.subr.mxu0 0.0
        %3261 = vmatpush1.msra.mxu0 0.0
        %3262 = vmatprep.subr.mxu0 0.0
        %3263 = vmatpush1.msra.mxu0 0.0
        %3264 = vmatprep.subr.mxu0 0.0
        %3265 = vmatpush1.msra.mxu0 0.0
        %3266 = vmatprep.subr.mxu0 0.0
        %3267 = vmatpush1.msra.mxu0 0.0
        %3268 = vmatprep.subr.mxu0 0.0
        %3269 = vmatpush1.msra.mxu0 0.0
        %3270 = vmatprep.subr.mxu0 0.0
        %3271 = vmatpush1.msra.mxu0 0.0
        %3272 = vmatprep.mubr.f32.mxu0 0.0
        %v3273 = vand.u32 %v2912, 4294901760
        %3274 = vmatmul.mubr.f32.gmra.mrb[0].mxu0 %v3273
        %v3275 = vpop.f32.mrb[0].mxu0
        %v3276 = vadd.f32 %v3035, %v3275
        %v3277 = vpop.f32.mrb[0].mxu0
        %3278 = vmatprep.mubr.f32.mxu0 0.0
        %v3279 = vand.u32 %v2915, 4294901760
        %3280 = vmatmul.mubr.f32.gmra.mrb[0].mxu0 %v3279
        %v3281 = vpop.f32.mrb[0].mxu0
        %v3282 = vadd.f32 %v3045, %v3281
        %v3283 = vpop.f32.mrb[0].mxu0
        %3284 = vmatprep.mubr.f32.mxu0 0.0
        %v3285 = vand.u32 %v2918, 4294901760
        %3286 = vmatmul.mubr.f32.gmra.mrb[0].mxu0 %v3285
        %v3287 = vpop.f32.mrb[0].mxu0
        %v3288 = vadd.f32 %v3055, %v3287
        %v3289 = vpop.f32.mrb[0].mxu0
        %3290 = vmatprep.mubr.f32.mxu0 0.0
        %v3291 = vand.u32 %v2921, 4294901760
        %3292 = vmatmul.mubr.f32.gmra.mrb[0].mxu0 %v3291
        %v3293 = vpop.f32.mrb[0].mxu0
        %v3294 = vadd.f32 %v3065, %v3293
        %v3295 = vpop.f32.mrb[0].mxu0
        %3296 = vmatprep.mubr.f32.mxu0 0.0
        %v3297 = vand.u32 %v2924, 4294901760
        %3298 = vmatmul.mubr.f32.gmra.mrb[0].mxu0 %v3297
        %v3299 = vpop.f32.mrb[0].mxu0
        %v3300 = vadd.f32 %v3075, %v3299
        %v3301 = vpop.f32.mrb[0].mxu0
        %3302 = vmatprep.mubr.f32.mxu0 0.0
        %v3303 = vand.u32 %v2927, 4294901760
        %3304 = vmatmul.mubr.f32.gmra.mrb[0].mxu0 %v3303
        %v3305 = vpop.f32.mrb[0].mxu0
        %v3306 = vadd.f32 %v3085, %v3305
        %v3307 = vpop.f32.mrb[0].mxu0
        %3308 = vmatprep.mubr.f32.mxu0 0.0
        %v3309 = vand.u32 %v2930, 4294901760
        %3310 = vmatmul.mubr.f32.gmra.mrb[0].mxu0 %v3309
        %v3311 = vpop.f32.mrb[0].mxu0
        %v3312 = vadd.f32 %v3095, %v3311
        %v3313 = vpop.f32.mrb[0].mxu0
        %3314 = vmatprep.mubr.f32.mxu0 0.0
        %v3315 = vand.u32 %v2933, 4294901760
        %3316 = vmatmul.mubr.f32.gmra.mrb[0].mxu0 %v3315
        %v3317 = vpop.f32.mrb[0].mxu0
        %v3318 = vadd.f32 %v3105, %v3317
        %v3319 = vpop.f32.mrb[0].mxu0
        %3320 = vmatprep.mubr.f32.mxu0 0.0
        %v3321 = vand.u32 %v2936, 4294901760
        %3322 = vmatmul.mubr.f32.gmra.mrb[0].mxu0 %v3321
        %v3323 = vpop.f32.mrb[0].mxu0
        %v3324 = vadd.f32 %v3115, %v3323
        %v3325 = vpop.f32.mrb[0].mxu0
        %3326 = vmatprep.mubr.f32.mxu0 0.0
        %v3327 = vand.u32 %v2939, 4294901760
        %3328 = vmatmul.mubr.f32.gmra.mrb[0].mxu0 %v3327
        %v3329 = vpop.f32.mrb[0].mxu0
        %v3330 = vadd.f32 %v3125, %v3329
        %v3331 = vpop.f32.mrb[0].mxu0
        %3332 = vmatprep.mubr.f32.mxu0 0.0
        %v3333 = vand.u32 %v2942, 4294901760
        %3334 = vmatmul.mubr.f32.gmra.mrb[0].mxu0 %v3333
        %v3335 = vpop.f32.mrb[0].mxu0
        %v3336 = vadd.f32 %v3135, %v3335
        %v3337 = vpop.f32.mrb[0].mxu0
        %3338 = vmatprep.mubr.f32.mxu0 0.0
        %v3339 = vand.u32 %v2945, 4294901760
        %3340 = vmatmul.mubr.f32.gmra.mrb[0].mxu0 %v3339
        %v3341 = vpop.f32.mrb[0].mxu0
        %v3342 = vadd.f32 %v3145, %v3341
        %v3343 = vpop.f32.mrb[0].mxu0
        %3344 = vmatprep.mubr.f32.mxu0 0.0
        %v3345 = vand.u32 %v2948, 4294901760
        %3346 = vmatmul.mubr.f32.gmra.mrb[0].mxu0 %v3345
        %v3347 = vpop.f32.mrb[0].mxu0
        %v3348 = vadd.f32 %v3155, %v3347
        %v3349 = vpop.f32.mrb[0].mxu0
        %3350 = vmatprep.mubr.f32.mxu0 0.0
        %v3351 = vand.u32 %v2951, 4294901760
        %3352 = vmatmul.mubr.f32.gmra.mrb[0].mxu0 %v3351
        %v3353 = vpop.f32.mrb[0].mxu0
        %v3354 = vadd.f32 %v3165, %v3353
        %v3355 = vpop.f32.mrb[0].mxu0
        %3356 = vmatprep.mubr.f32.mxu0 0.0
        %v3357 = vand.u32 %v2954, 4294901760
        %3358 = vmatmul.mubr.f32.gmra.mrb[0].mxu0 %v3357
        %v3359 = vpop.f32.mrb[0].mxu0
        %v3360 = vadd.f32 %v3175, %v3359
        %v3361 = vpop.f32.mrb[0].mxu0
        %3362 = vmatprep.mubr.f32.mxu0 0.0
        %v3363 = vand.u32 %v2957, 4294901760
        %3364 = vmatmul.mubr.f32.gmra.mrb[0].mxu0 %v3363
        %v3365 = vpop.f32.mrb[0].mxu0
        %v3366 = vadd.f32 %v3185, %v3365
        %v3367 = vpop.f32.mrb[0].mxu0
        %3368 = vdwg.mxu0
        %3369 = vmatprep.subr.mxu0 0.0
        %v3370 = vand.u32 %v2906, 4294901760
        %v3371 = vsub.f32 %v2906, %v3370
        %3372 = vmatpush1.msra.mxu0 %v3371
        %3373 = vmatprep.subr.mxu0 0.0
        %v3374 = vand.u32 %v2907, 4294901760
        %v3375 = vsub.f32 %v2907, %v3374
        %3376 = vmatpush1.msra.mxu0 %v3375
        %3377 = vmatprep.subr.mxu0 0.0
        %v3378 = vand.u32 %v2908, 4294901760
        %v3379 = vsub.f32 %v2908, %v3378
        %3380 = vmatpush1.msra.mxu0 %v3379
        %3381 = vmatprep.subr.mxu0 0.0
        %v3382 = vand.u32 %v2909, 4294901760
        %v3383 = vsub.f32 %v2909, %v3382
        %3384 = vmatpush1.msra.mxu0 %v3383
        %3385 = vmatprep.subr.mxu0 0.0
        %3386 = vmatpush1.msra.mxu0 0.0
        %3387 = vmatprep.subr.mxu0 0.0
        %3388 = vmatpush1.msra.mxu0 0.0
        %3389 = vmatprep.subr.mxu0 0.0
        %3390 = vmatpush1.msra.mxu0 0.0
        %3391 = vmatprep.subr.mxu0 0.0
        %3392 = vmatpush1.msra.mxu0 0.0
        %3393 = vmatprep.subr.mxu0 0.0
        %3394 = vmatpush1.msra.mxu0 0.0
        %3395 = vmatprep.subr.mxu0 0.0
        %3396 = vmatpush1.msra.mxu0 0.0
        %3397 = vmatprep.subr.mxu0 0.0
        %3398 = vmatpush1.msra.mxu0 0.0
        %3399 = vmatprep.subr.mxu0 0.0
        %3400 = vmatpush1.msra.mxu0 0.0
        %3401 = vmatprep.subr.mxu0 0.0
        %3402 = vmatpush1.msra.mxu0 0.0
        %3403 = vmatprep.subr.mxu0 0.0
        %3404 = vmatpush1.msra.mxu0 0.0
        %3405 = vmatprep.subr.mxu0 0.0
        %3406 = vmatpush1.msra.mxu0 0.0
        %3407 = vmatprep.subr.mxu0 0.0
        %3408 = vmatpush1.msra.mxu0 0.0
        %3409 = vmatprep.subr.mxu0 0.0
        %3410 = vmatpush1.msra.mxu0 0.0
        %3411 = vmatprep.subr.mxu0 0.0
        %3412 = vmatpush1.msra.mxu0 0.0
        %3413 = vmatprep.subr.mxu0 0.0
        %3414 = vmatpush1.msra.mxu0 0.0
        %3415 = vmatprep.subr.mxu0 0.0
        %3416 = vmatpush1.msra.mxu0 0.0
        %3417 = vmatprep.subr.mxu0 0.0
        %3418 = vmatpush1.msra.mxu0 0.0
        %3419 = vmatprep.subr.mxu0 0.0
        %3420 = vmatpush1.msra.mxu0 0.0
        %3421 = vmatprep.subr.mxu0 0.0
        %3422 = vmatpush1.msra.mxu0 0.0
        %3423 = vmatprep.subr.mxu0 0.0
        %3424 = vmatpush1.msra.mxu0 0.0
        %3425 = vmatprep.subr.mxu0 0.0
        %3426 = vmatpush1.msra.mxu0 0.0
        %3427 = vmatprep.subr.mxu0 0.0
        %3428 = vmatpush1.msra.mxu0 0.0
        %3429 = vmatprep.subr.mxu0 0.0
        %3430 = vmatpush1.msra.mxu0 0.0
        %3431 = vmatprep.subr.mxu0 0.0
        %3432 = vmatpush1.msra.mxu0 0.0
        %3433 = vmatprep.subr.mxu0 0.0
        %3434 = vmatpush1.msra.mxu0 0.0
        %3435 = vmatprep.subr.mxu0 0.0
        %3436 = vmatpush1.msra.mxu0 0.0
        %3437 = vmatprep.subr.mxu0 0.0
        %3438 = vmatpush1.msra.mxu0 0.0
        %3439 = vmatprep.subr.mxu0 0.0
        %3440 = vmatpush1.msra.mxu0 0.0
        %3441 = vmatprep.mubr.f32.mxu0 0.0
        %v3442 = vand.u32 %v2912, 4294901760
        %v3443 = vsub.f32 %v2912, %v3442
        %3444 = vmatmul.mubr.f32.gmra.mrb[0].mxu0 %v3443
        %v3445 = vpop.f32.mrb[0].mxu0
        %v3446 = vadd.f32 %v3276, %v3445
        %v3447 = vpop.f32.mrb[0].mxu0
        %3448 = vmatprep.mubr.f32.mxu0 0.0
        %v3449 = vand.u32 %v2915, 4294901760
        %v3450 = vsub.f32 %v2915, %v3449
        %3451 = vmatmul.mubr.f32.gmra.mrb[0].mxu0 %v3450
        %v3452 = vpop.f32.mrb[0].mxu0
        %v3453 = vadd.f32 %v3282, %v3452
        %v3454 = vpop.f32.mrb[0].mxu0
        %3455 = vmatprep.mubr.f32.mxu0 0.0
        %v3456 = vand.u32 %v2918, 4294901760
        %v3457 = vsub.f32 %v2918, %v3456
        %3458 = vmatmul.mubr.f32.gmra.mrb[0].mxu0 %v3457
        %v3459 = vpop.f32.mrb[0].mxu0
        %v3460 = vadd.f32 %v3288, %v3459
        %v3461 = vpop.f32.mrb[0].mxu0
        %3462 = vmatprep.mubr.f32.mxu0 0.0
        %v3463 = vand.u32 %v2921, 4294901760
        %v3464 = vsub.f32 %v2921, %v3463
        %3465 = vmatmul.mubr.f32.gmra.mrb[0].mxu0 %v3464
        %v3466 = vpop.f32.mrb[0].mxu0
        %v3467 = vadd.f32 %v3294, %v3466
        %v3468 = vpop.f32.mrb[0].mxu0
        %3469 = vmatprep.mubr.f32.mxu0 0.0
        %v3470 = vand.u32 %v2924, 4294901760
        %v3471 = vsub.f32 %v2924, %v3470
        %3472 = vmatmul.mubr.f32.gmra.mrb[0].mxu0 %v3471
        %v3473 = vpop.f32.mrb[0].mxu0
        %v3474 = vadd.f32 %v3300, %v3473
        %v3475 = vpop.f32.mrb[0].mxu0
        %3476 = vmatprep.mubr.f32.mxu0 0.0
        %v3477 = vand.u32 %v2927, 4294901760
        %v3478 = vsub.f32 %v2927, %v3477
        %3479 = vmatmul.mubr.f32.gmra.mrb[0].mxu0 %v3478
        %v3480 = vpop.f32.mrb[0].mxu0
        %v3481 = vadd.f32 %v3306, %v3480
        %v3482 = vpop.f32.mrb[0].mxu0
        %3483 = vmatprep.mubr.f32.mxu0 0.0
        %v3484 = vand.u32 %v2930, 4294901760
        %v3485 = vsub.f32 %v2930, %v3484
        %3486 = vmatmul.mubr.f32.gmra.mrb[0].mxu0 %v3485
        %v3487 = vpop.f32.mrb[0].mxu0
        %v3488 = vadd.f32 %v3312, %v3487
        %v3489 = vpop.f32.mrb[0].mxu0
        %3490 = vmatprep.mubr.f32.mxu0 0.0
        %v3491 = vand.u32 %v2933, 4294901760
        %v3492 = vsub.f32 %v2933, %v3491
        %3493 = vmatmul.mubr.f32.gmra.mrb[0].mxu0 %v3492
        %v3494 = vpop.f32.mrb[0].mxu0
        %v3495 = vadd.f32 %v3318, %v3494
        %v3496 = vpop.f32.mrb[0].mxu0
        %3497 = vmatprep.mubr.f32.mxu0 0.0
        %v3498 = vand.u32 %v2936, 4294901760
        %v3499 = vsub.f32 %v2936, %v3498
        %3500 = vmatmul.mubr.f32.gmra.mrb[0].mxu0 %v3499
        %v3501 = vpop.f32.mrb[0].mxu0
        %v3502 = vadd.f32 %v3324, %v3501
        %v3503 = vpop.f32.mrb[0].mxu0
        %3504 = vmatprep.mubr.f32.mxu0 0.0
        %v3505 = vand.u32 %v2939, 4294901760
        %v3506 = vsub.f32 %v2939, %v3505
        %3507 = vmatmul.mubr.f32.gmra.mrb[0].mxu0 %v3506
        %v3508 = vpop.f32.mrb[0].mxu0
        %v3509 = vadd.f32 %v3330, %v3508
        %v3510 = vpop.f32.mrb[0].mxu0
        %3511 = vmatprep.mubr.f32.mxu0 0.0
        %v3512 = vand.u32 %v2942, 4294901760
        %v3513 = vsub.f32 %v2942, %v3512
        %3514 = vmatmul.mubr.f32.gmra.mrb[0].mxu0 %v3513
        %v3515 = vpop.f32.mrb[0].mxu0
        %v3516 = vadd.f32 %v3336, %v3515
        %v3517 = vpop.f32.mrb[0].mxu0
        %3518 = vmatprep.mubr.f32.mxu0 0.0
        %v3519 = vand.u32 %v2945, 4294901760
        %v3520 = vsub.f32 %v2945, %v3519
        %3521 = vmatmul.mubr.f32.gmra.mrb[0].mxu0 %v3520
        %v3522 = vpop.f32.mrb[0].mxu0
        %v3523 = vadd.f32 %v3342, %v3522
        %v3524 = vpop.f32.mrb[0].mxu0
        %3525 = vmatprep.mubr.f32.mxu0 0.0
        %v3526 = vand.u32 %v2948, 4294901760
        %v3527 = vsub.f32 %v2948, %v3526
        %3528 = vmatmul.mubr.f32.gmra.mrb[0].mxu0 %v3527
        %v3529 = vpop.f32.mrb[0].mxu0
        %v3530 = vadd.f32 %v3348, %v3529
        %v3531 = vpop.f32.mrb[0].mxu0
        %3532 = vmatprep.mubr.f32.mxu0 0.0
        %v3533 = vand.u32 %v2951, 4294901760
        %v3534 = vsub.f32 %v2951, %v3533
        %3535 = vmatmul.mubr.f32.gmra.mrb[0].mxu0 %v3534
        %v3536 = vpop.f32.mrb[0].mxu0
        %v3537 = vadd.f32 %v3354, %v3536
        %v3538 = vpop.f32.mrb[0].mxu0
        %3539 = vmatprep.mubr.f32.mxu0 0.0
        %v3540 = vand.u32 %v2954, 4294901760
        %v3541 = vsub.f32 %v2954, %v3540
        %3542 = vmatmul.mubr.f32.gmra.mrb[0].mxu0 %v3541
        %v3543 = vpop.f32.mrb[0].mxu0
        %v3544 = vadd.f32 %v3360, %v3543
        %v3545 = vpop.f32.mrb[0].mxu0
        %3546 = vmatprep.mubr.f32.mxu0 0.0
        %v3547 = vand.u32 %v2957, 4294901760
        %v3548 = vsub.f32 %v2957, %v3547
        %3549 = vmatmul.mubr.f32.gmra.mrb[0].mxu0 %v3548
        %v3550 = vpop.f32.mrb[0].mxu0
        %v3551 = vadd.f32 %v3366, %v3550
        %v3552 = vpop.f32.mrb[0].mxu0
        %3553 = vdwg.mxu0
        %3554 = vmatprep.subr.mxu0 0.0
        %v3555 = vand.u32 %v2906, 4294901760
        %3556 = vmatpush1.msra.mxu0 %v3555
        %3557 = vmatprep.subr.mxu0 0.0
        %v3558 = vand.u32 %v2907, 4294901760
        %3559 = vmatpush1.msra.mxu0 %v3558
        %3560 = vmatprep.subr.mxu0 0.0
        %v3561 = vand.u32 %v2908, 4294901760
        %3562 = vmatpush1.msra.mxu0 %v3561
        %3563 = vmatprep.subr.mxu0 0.0
        %v3564 = vand.u32 %v2909, 4294901760
        %3565 = vmatpush1.msra.mxu0 %v3564
        %3566 = vmatprep.subr.mxu0 0.0
        %3567 = vmatpush1.msra.mxu0 0.0
        %3568 = vmatprep.subr.mxu0 0.0
        %3569 = vmatpush1.msra.mxu0 0.0
        %3570 = vmatprep.subr.mxu0 0.0
        %3571 = vmatpush1.msra.mxu0 0.0
        %3572 = vmatprep.subr.mxu0 0.0
        %3573 = vmatpush1.msra.mxu0 0.0
        %3574 = vmatprep.subr.mxu0 0.0
        %3575 = vmatpush1.msra.mxu0 0.0
        %3576 = vmatprep.subr.mxu0 0.0
        %3577 = vmatpush1.msra.mxu0 0.0
        %3578 = vmatprep.subr.mxu0 0.0
        %3579 = vmatpush1.msra.mxu0 0.0
        %3580 = vmatprep.subr.mxu0 0.0
        %3581 = vmatpush1.msra.mxu0 0.0
        %3582 = vmatprep.subr.mxu0 0.0
        %3583 = vmatpush1.msra.mxu0 0.0
        %3584 = vmatprep.subr.mxu0 0.0
        %3585 = vmatpush1.msra.mxu0 0.0
        %3586 = vmatprep.subr.mxu0 0.0
        %3587 = vmatpush1.msra.mxu0 0.0
        %3588 = vmatprep.subr.mxu0 0.0
        %3589 = vmatpush1.msra.mxu0 0.0
        %3590 = vmatprep.subr.mxu0 0.0
        %3591 = vmatpush1.msra.mxu0 0.0
        %3592 = vmatprep.subr.mxu0 0.0
        %3593 = vmatpush1.msra.mxu0 0.0
        %3594 = vmatprep.subr.mxu0 0.0
        %3595 = vmatpush1.msra.mxu0 0.0
        %3596 = vmatprep.subr.mxu0 0.0
        %3597 = vmatpush1.msra.mxu0 0.0
        %3598 = vmatprep.subr.mxu0 0.0
        %3599 = vmatpush1.msra.mxu0 0.0
        %3600 = vmatprep.subr.mxu0 0.0
        %3601 = vmatpush1.msra.mxu0 0.0
        %3602 = vmatprep.subr.mxu0 0.0
        %3603 = vmatpush1.msra.mxu0 0.0
        %3604 = vmatprep.subr.mxu0 0.0
        %3605 = vmatpush1.msra.mxu0 0.0
        %3606 = vmatprep.subr.mxu0 0.0
        %3607 = vmatpush1.msra.mxu0 0.0
        %3608 = vmatprep.subr.mxu0 0.0
        %3609 = vmatpush1.msra.mxu0 0.0
        %3610 = vmatprep.subr.mxu0 0.0
        %3611 = vmatpush1.msra.mxu0 0.0
        %3612 = vmatprep.subr.mxu0 0.0
        %3613 = vmatpush1.msra.mxu0 0.0
        %3614 = vmatprep.subr.mxu0 0.0
        %3615 = vmatpush1.msra.mxu0 0.0
        %3616 = vmatprep.subr.mxu0 0.0
        %3617 = vmatpush1.msra.mxu0 0.0
        %3618 = vmatprep.subr.mxu0 0.0
        %3619 = vmatpush1.msra.mxu0 0.0
        %3620 = vmatprep.subr.mxu0 0.0
        %3621 = vmatpush1.msra.mxu0 0.0
        %3622 = vmatprep.mubr.f32.mxu0 0.0
        %v3623 = vand.u32 %v2912, 4294901760
        %v3624 = vsub.f32 %v2912, %v3623
        %v3625 = vand.u32 %v3624, 4294901760
        %3626 = vmatmul.mubr.f32.gmra.mrb[0].mxu0 %v3625
        %v3627 = vpop.f32.mrb[0].mxu0
        %v3628 = vadd.f32 %v3446, %v3627
        %v3629 = vpop.f32.mrb[0].mxu0
        %3630 = vmatprep.mubr.f32.mxu0 0.0
        %v3631 = vand.u32 %v2915, 4294901760
        %v3632 = vsub.f32 %v2915, %v3631
        %v3633 = vand.u32 %v3632, 4294901760
        %3634 = vmatmul.mubr.f32.gmra.mrb[0].mxu0 %v3633
        %v3635 = vpop.f32.mrb[0].mxu0
        %v3636 = vadd.f32 %v3453, %v3635
        %v3637 = vpop.f32.mrb[0].mxu0
        %3638 = vmatprep.mubr.f32.mxu0 0.0
        %v3639 = vand.u32 %v2918, 4294901760
        %v3640 = vsub.f32 %v2918, %v3639
        %v3641 = vand.u32 %v3640, 4294901760
        %3642 = vmatmul.mubr.f32.gmra.mrb[0].mxu0 %v3641
        %v3643 = vpop.f32.mrb[0].mxu0
        %v3644 = vadd.f32 %v3460, %v3643
        %v3645 = vpop.f32.mrb[0].mxu0
        %3646 = vmatprep.mubr.f32.mxu0 0.0
        %v3647 = vand.u32 %v2921, 4294901760
        %v3648 = vsub.f32 %v2921, %v3647
        %v3649 = vand.u32 %v3648, 4294901760
        %3650 = vmatmul.mubr.f32.gmra.mrb[0].mxu0 %v3649
        %v3651 = vpop.f32.mrb[0].mxu0
        %v3652 = vadd.f32 %v3467, %v3651
        %v3653 = vpop.f32.mrb[0].mxu0
        %3654 = vmatprep.mubr.f32.mxu0 0.0
        %v3655 = vand.u32 %v2924, 4294901760
        %v3656 = vsub.f32 %v2924, %v3655
        %v3657 = vand.u32 %v3656, 4294901760
        %3658 = vmatmul.mubr.f32.gmra.mrb[0].mxu0 %v3657
        %v3659 = vpop.f32.mrb[0].mxu0
        %v3660 = vadd.f32 %v3474, %v3659
        %v3661 = vpop.f32.mrb[0].mxu0
        %3662 = vmatprep.mubr.f32.mxu0 0.0
        %v3663 = vand.u32 %v2927, 4294901760
        %v3664 = vsub.f32 %v2927, %v3663
        %v3665 = vand.u32 %v3664, 4294901760
        %3666 = vmatmul.mubr.f32.gmra.mrb[0].mxu0 %v3665
        %v3667 = vpop.f32.mrb[0].mxu0
        %v3668 = vadd.f32 %v3481, %v3667
        %v3669 = vpop.f32.mrb[0].mxu0
        %3670 = vmatprep.mubr.f32.mxu0 0.0
        %v3671 = vand.u32 %v2930, 4294901760
        %v3672 = vsub.f32 %v2930, %v3671
        %v3673 = vand.u32 %v3672, 4294901760
        %3674 = vmatmul.mubr.f32.gmra.mrb[0].mxu0 %v3673
        %v3675 = vpop.f32.mrb[0].mxu0
        %v3676 = vadd.f32 %v3488, %v3675
        %v3677 = vpop.f32.mrb[0].mxu0
        %3678 = vmatprep.mubr.f32.mxu0 0.0
        %v3679 = vand.u32 %v2933, 4294901760
        %v3680 = vsub.f32 %v2933, %v3679
        %v3681 = vand.u32 %v3680, 4294901760
        %3682 = vmatmul.mubr.f32.gmra.mrb[0].mxu0 %v3681
        %v3683 = vpop.f32.mrb[0].mxu0
        %v3684 = vadd.f32 %v3495, %v3683
        %v3685 = vpop.f32.mrb[0].mxu0
        %3686 = vmatprep.mubr.f32.mxu0 0.0
        %v3687 = vand.u32 %v2936, 4294901760
        %v3688 = vsub.f32 %v2936, %v3687
        %v3689 = vand.u32 %v3688, 4294901760
        %3690 = vmatmul.mubr.f32.gmra.mrb[0].mxu0 %v3689
        %v3691 = vpop.f32.mrb[0].mxu0
        %v3692 = vadd.f32 %v3502, %v3691
        %v3693 = vpop.f32.mrb[0].mxu0
        %3694 = vmatprep.mubr.f32.mxu0 0.0
        %v3695 = vand.u32 %v2939, 4294901760
        %v3696 = vsub.f32 %v2939, %v3695
        %v3697 = vand.u32 %v3696, 4294901760
        %3698 = vmatmul.mubr.f32.gmra.mrb[0].mxu0 %v3697
        %v3699 = vpop.f32.mrb[0].mxu0
        %v3700 = vadd.f32 %v3509, %v3699
        %v3701 = vpop.f32.mrb[0].mxu0
        %3702 = vmatprep.mubr.f32.mxu0 0.0
        %v3703 = vand.u32 %v2942, 4294901760
        %v3704 = vsub.f32 %v2942, %v3703
        %v3705 = vand.u32 %v3704, 4294901760
        %3706 = vmatmul.mubr.f32.gmra.mrb[0].mxu0 %v3705
        %v3707 = vpop.f32.mrb[0].mxu0
        %v3708 = vadd.f32 %v3516, %v3707
        %v3709 = vpop.f32.mrb[0].mxu0
        %3710 = vmatprep.mubr.f32.mxu0 0.0
        %v3711 = vand.u32 %v2945, 4294901760
        %v3712 = vsub.f32 %v2945, %v3711
        %v3713 = vand.u32 %v3712, 4294901760
        %3714 = vmatmul.mubr.f32.gmra.mrb[0].mxu0 %v3713
        %v3715 = vpop.f32.mrb[0].mxu0
        %v3716 = vadd.f32 %v3523, %v3715
        %v3717 = vpop.f32.mrb[0].mxu0
        %3718 = vmatprep.mubr.f32.mxu0 0.0
        %v3719 = vand.u32 %v2948, 4294901760
        %v3720 = vsub.f32 %v2948, %v3719
        %v3721 = vand.u32 %v3720, 4294901760
        %3722 = vmatmul.mubr.f32.gmra.mrb[0].mxu0 %v3721
        %v3723 = vpop.f32.mrb[0].mxu0
        %v3724 = vadd.f32 %v3530, %v3723
        %v3725 = vpop.f32.mrb[0].mxu0
        %3726 = vmatprep.mubr.f32.mxu0 0.0
        %v3727 = vand.u32 %v2951, 4294901760
        %v3728 = vsub.f32 %v2951, %v3727
        %v3729 = vand.u32 %v3728, 4294901760
        %3730 = vmatmul.mubr.f32.gmra.mrb[0].mxu0 %v3729
        %v3731 = vpop.f32.mrb[0].mxu0
        %v3732 = vadd.f32 %v3537, %v3731
        %v3733 = vpop.f32.mrb[0].mxu0
        %3734 = vmatprep.mubr.f32.mxu0 0.0
        %v3735 = vand.u32 %v2954, 4294901760
        %v3736 = vsub.f32 %v2954, %v3735
        %v3737 = vand.u32 %v3736, 4294901760
        %3738 = vmatmul.mubr.f32.gmra.mrb[0].mxu0 %v3737
        %v3739 = vpop.f32.mrb[0].mxu0
        %v3740 = vadd.f32 %v3544, %v3739
        %v3741 = vpop.f32.mrb[0].mxu0
        %3742 = vmatprep.mubr.f32.mxu0 0.0
        %v3743 = vand.u32 %v2957, 4294901760
        %v3744 = vsub.f32 %v2957, %v3743
        %v3745 = vand.u32 %v3744, 4294901760
        %3746 = vmatmul.mubr.f32.gmra.mrb[0].mxu0 %v3745
        %v3747 = vpop.f32.mrb[0].mxu0
        %v3748 = vadd.f32 %v3551, %v3747
        %v3749 = vpop.f32.mrb[0].mxu0
        %3750 = vdwg.mxu0
        %3751 = vmatprep.subr.mxu0 0.0
        %v3752 = vand.u32 %v2906, 4294901760
        %v3753 = vsub.f32 %v2906, %v3752
        %v3754 = vand.u32 %v3753, 4294901760
        %3755 = vmatpush1.msra.mxu0 %v3754
        %3756 = vmatprep.subr.mxu0 0.0
        %v3757 = vand.u32 %v2907, 4294901760
        %v3758 = vsub.f32 %v2907, %v3757
        %v3759 = vand.u32 %v3758, 4294901760
        %3760 = vmatpush1.msra.mxu0 %v3759
        %3761 = vmatprep.subr.mxu0 0.0
        %v3762 = vand.u32 %v2908, 4294901760
        %v3763 = vsub.f32 %v2908, %v3762
        %v3764 = vand.u32 %v3763, 4294901760
        %3765 = vmatpush1.msra.mxu0 %v3764
        %3766 = vmatprep.subr.mxu0 0.0
        %v3767 = vand.u32 %v2909, 4294901760
        %v3768 = vsub.f32 %v2909, %v3767
        %v3769 = vand.u32 %v3768, 4294901760
        %3770 = vmatpush1.msra.mxu0 %v3769
        %3771 = vmatprep.subr.mxu0 0.0
        %3772 = vmatpush1.msra.mxu0 0.0
        %3773 = vmatprep.subr.mxu0 0.0
        %3774 = vmatpush1.msra.mxu0 0.0
        %3775 = vmatprep.subr.mxu0 0.0
        %3776 = vmatpush1.msra.mxu0 0.0
        %3777 = vmatprep.subr.mxu0 0.0
        %3778 = vmatpush1.msra.mxu0 0.0
        %3779 = vmatprep.subr.mxu0 0.0
        %3780 = vmatpush1.msra.mxu0 0.0
        %3781 = vmatprep.subr.mxu0 0.0
        %3782 = vmatpush1.msra.mxu0 0.0
        %3783 = vmatprep.subr.mxu0 0.0
        %3784 = vmatpush1.msra.mxu0 0.0
        %3785 = vmatprep.subr.mxu0 0.0
        %3786 = vmatpush1.msra.mxu0 0.0
        %3787 = vmatprep.subr.mxu0 0.0
        %3788 = vmatpush1.msra.mxu0 0.0
        %3789 = vmatprep.subr.mxu0 0.0
        %3790 = vmatpush1.msra.mxu0 0.0
        %3791 = vmatprep.subr.mxu0 0.0
        %3792 = vmatpush1.msra.mxu0 0.0
        %3793 = vmatprep.subr.mxu0 0.0
        %3794 = vmatpush1.msra.mxu0 0.0
        %3795 = vmatprep.subr.mxu0 0.0
        %3796 = vmatpush1.msra.mxu0 0.0
        %3797 = vmatprep.subr.mxu0 0.0
        %3798 = vmatpush1.msra.mxu0 0.0
        %3799 = vmatprep.subr.mxu0 0.0
        %3800 = vmatpush1.msra.mxu0 0.0
        %3801 = vmatprep.subr.mxu0 0.0
        %3802 = vmatpush1.msra.mxu0 0.0
        %3803 = vmatprep.subr.mxu0 0.0
        %3804 = vmatpush1.msra.mxu0 0.0
        %3805 = vmatprep.subr.mxu0 0.0
        %3806 = vmatpush1.msra.mxu0 0.0
        %3807 = vmatprep.subr.mxu0 0.0
        %3808 = vmatpush1.msra.mxu0 0.0
        %3809 = vmatprep.subr.mxu0 0.0
        %3810 = vmatpush1.msra.mxu0 0.0
        %3811 = vmatprep.subr.mxu0 0.0
        %3812 = vmatpush1.msra.mxu0 0.0
        %3813 = vmatprep.subr.mxu0 0.0
        %3814 = vmatpush1.msra.mxu0 0.0
        %3815 = vmatprep.subr.mxu0 0.0
        %3816 = vmatpush1.msra.mxu0 0.0
        %3817 = vmatprep.subr.mxu0 0.0
        %3818 = vmatpush1.msra.mxu0 0.0
        %3819 = vmatprep.subr.mxu0 0.0
        %3820 = vmatpush1.msra.mxu0 0.0
        %3821 = vmatprep.subr.mxu0 0.0
        %3822 = vmatpush1.msra.mxu0 0.0
        %3823 = vmatprep.subr.mxu0 0.0
        %3824 = vmatpush1.msra.mxu0 0.0
        %3825 = vmatprep.subr.mxu0 0.0
        %3826 = vmatpush1.msra.mxu0 0.0
        %3827 = vmatprep.mubr.f32.mxu0 0.0
        %v3828 = vand.u32 %v2912, 4294901760
        %3829 = vmatmul.mubr.f32.gmra.mrb[0].mxu0 %v3828
        %v3830 = vpop.f32.mrb[0].mxu0
        %v3831 = vadd.f32 %v3628, %v3830
        %v3832 = vpop.f32.mrb[0].mxu0
        %3833 = vmatprep.mubr.f32.mxu0 0.0
        %v3834 = vand.u32 %v2915, 4294901760
        %3835 = vmatmul.mubr.f32.gmra.mrb[0].mxu0 %v3834
        %v3836 = vpop.f32.mrb[0].mxu0
        %v3837 = vadd.f32 %v3636, %v3836
        %v3838 = vpop.f32.mrb[0].mxu0
        %3839 = vmatprep.mubr.f32.mxu0 0.0
        %v3840 = vand.u32 %v2918, 4294901760
        %3841 = vmatmul.mubr.f32.gmra.mrb[0].mxu0 %v3840
        %v3842 = vpop.f32.mrb[0].mxu0
        %v3843 = vadd.f32 %v3644, %v3842
        %v3844 = vpop.f32.mrb[0].mxu0
        %3845 = vmatprep.mubr.f32.mxu0 0.0
        %v3846 = vand.u32 %v2921, 4294901760
        %3847 = vmatmul.mubr.f32.gmra.mrb[0].mxu0 %v3846
        %v3848 = vpop.f32.mrb[0].mxu0
        %v3849 = vadd.f32 %v3652, %v3848
        %v3850 = vpop.f32.mrb[0].mxu0
        %3851 = vmatprep.mubr.f32.mxu0 0.0
        %v3852 = vand.u32 %v2924, 4294901760
        %3853 = vmatmul.mubr.f32.gmra.mrb[0].mxu0 %v3852
        %v3854 = vpop.f32.mrb[0].mxu0
        %v3855 = vadd.f32 %v3660, %v3854
        %v3856 = vpop.f32.mrb[0].mxu0
        %3857 = vmatprep.mubr.f32.mxu0 0.0
        %v3858 = vand.u32 %v2927, 4294901760
        %3859 = vmatmul.mubr.f32.gmra.mrb[0].mxu0 %v3858
        %v3860 = vpop.f32.mrb[0].mxu0
        %v3861 = vadd.f32 %v3668, %v3860
        %v3862 = vpop.f32.mrb[0].mxu0
        %3863 = vmatprep.mubr.f32.mxu0 0.0
        %v3864 = vand.u32 %v2930, 4294901760
        %3865 = vmatmul.mubr.f32.gmra.mrb[0].mxu0 %v3864
        %v3866 = vpop.f32.mrb[0].mxu0
        %v3867 = vadd.f32 %v3676, %v3866
        %v3868 = vpop.f32.mrb[0].mxu0
        %3869 = vmatprep.mubr.f32.mxu0 0.0
        %v3870 = vand.u32 %v2933, 4294901760
        %3871 = vmatmul.mubr.f32.gmra.mrb[0].mxu0 %v3870
        %v3872 = vpop.f32.mrb[0].mxu0
        %v3873 = vadd.f32 %v3684, %v3872
        %v3874 = vpop.f32.mrb[0].mxu0
        %3875 = vmatprep.mubr.f32.mxu0 0.0
        %v3876 = vand.u32 %v2936, 4294901760
        %3877 = vmatmul.mubr.f32.gmra.mrb[0].mxu0 %v3876
        %v3878 = vpop.f32.mrb[0].mxu0
        %v3879 = vadd.f32 %v3692, %v3878
        %v3880 = vpop.f32.mrb[0].mxu0
        %3881 = vmatprep.mubr.f32.mxu0 0.0
        %v3882 = vand.u32 %v2939, 4294901760
        %3883 = vmatmul.mubr.f32.gmra.mrb[0].mxu0 %v3882
        %v3884 = vpop.f32.mrb[0].mxu0
        %v3885 = vadd.f32 %v3700, %v3884
        %v3886 = vpop.f32.mrb[0].mxu0
        %3887 = vmatprep.mubr.f32.mxu0 0.0
        %v3888 = vand.u32 %v2942, 4294901760
        %3889 = vmatmul.mubr.f32.gmra.mrb[0].mxu0 %v3888
        %v3890 = vpop.f32.mrb[0].mxu0
        %v3891 = vadd.f32 %v3708, %v3890
        %v3892 = vpop.f32.mrb[0].mxu0
        %3893 = vmatprep.mubr.f32.mxu0 0.0
        %v3894 = vand.u32 %v2945, 4294901760
        %3895 = vmatmul.mubr.f32.gmra.mrb[0].mxu0 %v3894
        %v3896 = vpop.f32.mrb[0].mxu0
        %v3897 = vadd.f32 %v3716, %v3896
        %v3898 = vpop.f32.mrb[0].mxu0
        %3899 = vmatprep.mubr.f32.mxu0 0.0
        %v3900 = vand.u32 %v2948, 4294901760
        %3901 = vmatmul.mubr.f32.gmra.mrb[0].mxu0 %v3900
        %v3902 = vpop.f32.mrb[0].mxu0
        %v3903 = vadd.f32 %v3724, %v3902
        %v3904 = vpop.f32.mrb[0].mxu0
        %3905 = vmatprep.mubr.f32.mxu0 0.0
        %v3906 = vand.u32 %v2951, 4294901760
        %3907 = vmatmul.mubr.f32.gmra.mrb[0].mxu0 %v3906
        %v3908 = vpop.f32.mrb[0].mxu0
        %v3909 = vadd.f32 %v3732, %v3908
        %v3910 = vpop.f32.mrb[0].mxu0
        %3911 = vmatprep.mubr.f32.mxu0 0.0
        %v3912 = vand.u32 %v2954, 4294901760
        %3913 = vmatmul.mubr.f32.gmra.mrb[0].mxu0 %v3912
        %v3914 = vpop.f32.mrb[0].mxu0
        %v3915 = vadd.f32 %v3740, %v3914
        %v3916 = vpop.f32.mrb[0].mxu0
        %3917 = vmatprep.mubr.f32.mxu0 0.0
        %v3918 = vand.u32 %v2957, 4294901760
        %3919 = vmatmul.mubr.f32.gmra.mrb[0].mxu0 %v3918
        %v3920 = vpop.f32.mrb[0].mxu0
        %v3921 = vadd.f32 %v3748, %v3920
        %v3922 = vpop.f32.mrb[0].mxu0
        %3923 = vdwg.mxu0
        %3924 = vmatprep.subr.mxu0 0.0
        %v3925 = vand.u32 %v2906, 4294901760
        %3926 = vmatpush1.msra.mxu0 %v3925
        %3927 = vmatprep.subr.mxu0 0.0
        %v3928 = vand.u32 %v2907, 4294901760
        %3929 = vmatpush1.msra.mxu0 %v3928
        %3930 = vmatprep.subr.mxu0 0.0
        %v3931 = vand.u32 %v2908, 4294901760
        %3932 = vmatpush1.msra.mxu0 %v3931
        %3933 = vmatprep.subr.mxu0 0.0
        %v3934 = vand.u32 %v2909, 4294901760
        %3935 = vmatpush1.msra.mxu0 %v3934
        %3936 = vmatprep.subr.mxu0 0.0
        %3937 = vmatpush1.msra.mxu0 0.0
        %3938 = vmatprep.subr.mxu0 0.0
        %3939 = vmatpush1.msra.mxu0 0.0
        %3940 = vmatprep.subr.mxu0 0.0
        %3941 = vmatpush1.msra.mxu0 0.0
        %3942 = vmatprep.subr.mxu0 0.0
        %3943 = vmatpush1.msra.mxu0 0.0
        %3944 = vmatprep.subr.mxu0 0.0
        %3945 = vmatpush1.msra.mxu0 0.0
        %3946 = vmatprep.subr.mxu0 0.0
        %3947 = vmatpush1.msra.mxu0 0.0
        %3948 = vmatprep.subr.mxu0 0.0
        %3949 = vmatpush1.msra.mxu0 0.0
        %3950 = vmatprep.subr.mxu0 0.0
        %3951 = vmatpush1.msra.mxu0 0.0
        %3952 = vmatprep.subr.mxu0 0.0
        %3953 = vmatpush1.msra.mxu0 0.0
        %3954 = vmatprep.subr.mxu0 0.0
        %3955 = vmatpush1.msra.mxu0 0.0
        %3956 = vmatprep.subr.mxu0 0.0
        %3957 = vmatpush1.msra.mxu0 0.0
        %3958 = vmatprep.subr.mxu0 0.0
        %3959 = vmatpush1.msra.mxu0 0.0
        %3960 = vmatprep.subr.mxu0 0.0
        %3961 = vmatpush1.msra.mxu0 0.0
        %3962 = vmatprep.subr.mxu0 0.0
        %3963 = vmatpush1.msra.mxu0 0.0
        %3964 = vmatprep.subr.mxu0 0.0
        %3965 = vmatpush1.msra.mxu0 0.0
        %3966 = vmatprep.subr.mxu0 0.0
        %3967 = vmatpush1.msra.mxu0 0.0
        %3968 = vmatprep.subr.mxu0 0.0
        %3969 = vmatpush1.msra.mxu0 0.0
        %3970 = vmatprep.subr.mxu0 0.0
        %3971 = vmatpush1.msra.mxu0 0.0
        %3972 = vmatprep.subr.mxu0 0.0
        %3973 = vmatpush1.msra.mxu0 0.0
        %3974 = vmatprep.subr.mxu0 0.0
        %3975 = vmatpush1.msra.mxu0 0.0
        %3976 = vmatprep.subr.mxu0 0.0
        %3977 = vmatpush1.msra.mxu0 0.0
        %3978 = vmatprep.subr.mxu0 0.0
        %3979 = vmatpush1.msra.mxu0 0.0
        %3980 = vmatprep.subr.mxu0 0.0
        %3981 = vmatpush1.msra.mxu0 0.0
        %3982 = vmatprep.subr.mxu0 0.0
        %3983 = vmatpush1.msra.mxu0 0.0
        %3984 = vmatprep.subr.mxu0 0.0
        %3985 = vmatpush1.msra.mxu0 0.0
        %3986 = vmatprep.subr.mxu0 0.0
        %3987 = vmatpush1.msra.mxu0 0.0
        %3988 = vmatprep.subr.mxu0 0.0
        %3989 = vmatpush1.msra.mxu0 0.0
        %3990 = vmatprep.subr.mxu0 0.0
        %3991 = vmatpush1.msra.mxu0 0.0
        %3992 = vmatprep.mubr.f32.mxu0 0.0
        %v3993 = vand.u32 %v2912, 4294901760
        %3994 = vmatmul.mubr.f32.gmra.mrb[0].mxu0 %v3993
        %v3995 = vpop.f32.mrb[0].mxu0
        %v3996 = vadd.f32 %v3831, %v3995
        %v3997 = vpop.f32.mrb[0].mxu0
        %3998 = vmatprep.mubr.f32.mxu0 0.0
        %v3999 = vand.u32 %v2915, 4294901760
        %4000 = vmatmul.mubr.f32.gmra.mrb[0].mxu0 %v3999
        %v4001 = vpop.f32.mrb[0].mxu0
        %v4002 = vadd.f32 %v3837, %v4001
        %v4003 = vpop.f32.mrb[0].mxu0
        %4004 = vmatprep.mubr.f32.mxu0 0.0
        %v4005 = vand.u32 %v2918, 4294901760
        %4006 = vmatmul.mubr.f32.gmra.mrb[0].mxu0 %v4005
        %v4007 = vpop.f32.mrb[0].mxu0
        %v4008 = vadd.f32 %v3843, %v4007
        %v4009 = vpop.f32.mrb[0].mxu0
        %4010 = vmatprep.mubr.f32.mxu0 0.0
        %v4011 = vand.u32 %v2921, 4294901760
        %4012 = vmatmul.mubr.f32.gmra.mrb[0].mxu0 %v4011
        %v4013 = vpop.f32.mrb[0].mxu0
        %v4014 = vadd.f32 %v3849, %v4013
        %v4015 = vpop.f32.mrb[0].mxu0
        %4016 = vmatprep.mubr.f32.mxu0 0.0
        %v4017 = vand.u32 %v2924, 4294901760
        %4018 = vmatmul.mubr.f32.gmra.mrb[0].mxu0 %v4017
        %v4019 = vpop.f32.mrb[0].mxu0
        %v4020 = vadd.f32 %v3855, %v4019
        %v4021 = vpop.f32.mrb[0].mxu0
        %4022 = vmatprep.mubr.f32.mxu0 0.0
        %v4023 = vand.u32 %v2927, 4294901760
        %4024 = vmatmul.mubr.f32.gmra.mrb[0].mxu0 %v4023
        %v4025 = vpop.f32.mrb[0].mxu0
        %v4026 = vadd.f32 %v3861, %v4025
        %v4027 = vpop.f32.mrb[0].mxu0
        %4028 = vmatprep.mubr.f32.mxu0 0.0
        %v4029 = vand.u32 %v2930, 4294901760
        %4030 = vmatmul.mubr.f32.gmra.mrb[0].mxu0 %v4029
        %v4031 = vpop.f32.mrb[0].mxu0
        %v4032 = vadd.f32 %v3867, %v4031
        %v4033 = vpop.f32.mrb[0].mxu0
        %4034 = vmatprep.mubr.f32.mxu0 0.0
        %v4035 = vand.u32 %v2933, 4294901760
        %4036 = vmatmul.mubr.f32.gmra.mrb[0].mxu0 %v4035
        %v4037 = vpop.f32.mrb[0].mxu0
        %v4038 = vadd.f32 %v3873, %v4037
        %v4039 = vpop.f32.mrb[0].mxu0
        %4040 = vmatprep.mubr.f32.mxu0 0.0
        %v4041 = vand.u32 %v2936, 4294901760
        %4042 = vmatmul.mubr.f32.gmra.mrb[0].mxu0 %v4041
        %v4043 = vpop.f32.mrb[0].mxu0
        %v4044 = vadd.f32 %v3879, %v4043
        %v4045 = vpop.f32.mrb[0].mxu0
        %4046 = vmatprep.mubr.f32.mxu0 0.0
        %v4047 = vand.u32 %v2939, 4294901760
        %4048 = vmatmul.mubr.f32.gmra.mrb[0].mxu0 %v4047
        %v4049 = vpop.f32.mrb[0].mxu0
        %v4050 = vadd.f32 %v3885, %v4049
        %v4051 = vpop.f32.mrb[0].mxu0
        %4052 = vmatprep.mubr.f32.mxu0 0.0
        %v4053 = vand.u32 %v2942, 4294901760
        %4054 = vmatmul.mubr.f32.gmra.mrb[0].mxu0 %v4053
        %v4055 = vpop.f32.mrb[0].mxu0
        %v4056 = vadd.f32 %v3891, %v4055
        %v4057 = vpop.f32.mrb[0].mxu0
        %4058 = vmatprep.mubr.f32.mxu0 0.0
        %v4059 = vand.u32 %v2945, 4294901760
        %4060 = vmatmul.mubr.f32.gmra.mrb[0].mxu0 %v4059
        %v4061 = vpop.f32.mrb[0].mxu0
        %v4062 = vadd.f32 %v3897, %v4061
        %v4063 = vpop.f32.mrb[0].mxu0
        %4064 = vmatprep.mubr.f32.mxu0 0.0
        %v4065 = vand.u32 %v2948, 4294901760
        %4066 = vmatmul.mubr.f32.gmra.mrb[0].mxu0 %v4065
        %v4067 = vpop.f32.mrb[0].mxu0
        %v4068 = vadd.f32 %v3903, %v4067
        %v4069 = vpop.f32.mrb[0].mxu0
        %4070 = vmatprep.mubr.f32.mxu0 0.0
        %v4071 = vand.u32 %v2951, 4294901760
        %4072 = vmatmul.mubr.f32.gmra.mrb[0].mxu0 %v4071
        %v4073 = vpop.f32.mrb[0].mxu0
        %v4074 = vadd.f32 %v3909, %v4073
        %v4075 = vpop.f32.mrb[0].mxu0
        %4076 = vmatprep.mubr.f32.mxu0 0.0
        %v4077 = vand.u32 %v2954, 4294901760
        %4078 = vmatmul.mubr.f32.gmra.mrb[0].mxu0 %v4077
        %v4079 = vpop.f32.mrb[0].mxu0
        %v4080 = vadd.f32 %v3915, %v4079
        %v4081 = vpop.f32.mrb[0].mxu0
        %4082 = vmatprep.mubr.f32.mxu0 0.0
        %v4083 = vand.u32 %v2957, 4294901760
        %4084 = vmatmul.mubr.f32.gmra.mrb[0].mxu0 %v4083
        %v4085 = vpop.f32.mrb[0].mxu0
        %v4086 = vadd.f32 %v3921, %v4085
        %v4087 = vpop.f32.mrb[0].mxu0
        %4088 = vdwg.mxu0
        %v4089 = vld [vmem:[%s10] sm:$0x1]
        %v4091 = vlaneseq
        %v4092 = vshrl.u32 %v4091, 7
        %v4093 = vsub.s32 0, %v4092
        %v4094 = vrot.slane %v4089, %v4093
        %v4096 = vmul.f32 %v3996, %v4094
        %v4097 = vmul.f32 %v4002, %v4094
        %v4098 = vmul.f32 %v4008, %v4094
        %v4099 = vmul.f32 %v4014, %v4094
        %v4100 = vmul.f32 %v4020, %v4094
        %v4101 = vmul.f32 %v4026, %v4094
        %v4102 = vmul.f32 %v4032, %v4094
        %v4103 = vmul.f32 %v4038, %v4094
        %v4104 = vmul.f32 %v4044, %v4094
        %v4105 = vmul.f32 %v4050, %v4094
        %v4106 = vmul.f32 %v4056, %v4094
        %v4107 = vmul.f32 %v4062, %v4094
        %v4108 = vmul.f32 %v4068, %v4094
        %v4109 = vmul.f32 %v4074, %v4094
        %v4110 = vmul.f32 %v4080, %v4094
        %v4111 = vmul.f32 %v4086, %v4094
        %v4112 = vld [vmem:[#allocation9] sm:$0x1]
        %v4114 = vlaneseq
        %v4115 = vshrl.u32 %v4114, 7
        %v4116 = vsub.s32 0, %v4115
        %v4117 = vrot.slane %v4112, %v4116
        %v4119 = vadd.f32 %v4096, %v4117
        %v4120 = vadd.f32 %v4097, %v4117
        %v4121 = vadd.f32 %v4098, %v4117
        %v4122 = vadd.f32 %v4099, %v4117
        %v4123 = vadd.f32 %v4100, %v4117
        %v4124 = vadd.f32 %v4101, %v4117
        %v4125 = vadd.f32 %v4102, %v4117
        %v4126 = vadd.f32 %v4103, %v4117
        %v4127 = vadd.f32 %v4104, %v4117
        %v4128 = vadd.f32 %v4105, %v4117
        %v4129 = vadd.f32 %v4106, %v4117
        %v4130 = vadd.f32 %v4107, %v4117
        %v4131 = vadd.f32 %v4108, %v4117
        %v4132 = vadd.f32 %v4109, %v4117
        %v4133 = vadd.f32 %v4110, %v4117
        %v4134 = vadd.f32 %v4111, %v4117
        %v4135 = vmax.f32 %v4119, 0.0
        %v4136 = vmax.f32 %v4120, 0.0
        %v4137 = vmax.f32 %v4121, 0.0
        %v4138 = vmax.f32 %v4122, 0.0
        %v4139 = vmax.f32 %v4123, 0.0
        %v4140 = vmax.f32 %v4124, 0.0
        %v4141 = vmax.f32 %v4125, 0.0
        %v4142 = vmax.f32 %v4126, 0.0
        %v4143 = vmax.f32 %v4127, 0.0
        %v4144 = vmax.f32 %v4128, 0.0
        %v4145 = vmax.f32 %v4129, 0.0
        %v4146 = vmax.f32 %v4130, 0.0
        %v4147 = vmax.f32 %v4131, 0.0
        %v4148 = vmax.f32 %v4132, 0.0
        %v4149 = vmax.f32 %v4133, 0.0
        %v4150 = vmax.f32 %v4134, 0.0
        %4167 = vrot.lane.b32.xlu0 %v4135, 32
        %v4168 = vpop.permute.xlu0 %4167
        %4169 = vrot.lane.b32.xlu0 %v4136, 32
        %v4170 = vpop.permute.xlu0 %4169
        %4171 = vrot.lane.b32.xlu0 %v4137, 32
        %v4172 = vpop.permute.xlu0 %4171
        %4173 = vrot.lane.b32.xlu0 %v4138, 32
        %v4174 = vpop.permute.xlu0 %4173
        %4175 = vrot.lane.b32.xlu0 %v4139, 32
        %v4176 = vpop.permute.xlu0 %4175
        %4177 = vrot.lane.b32.xlu0 %v4140, 32
        %v4178 = vpop.permute.xlu0 %4177
        %4179 = vrot.lane.b32.xlu0 %v4141, 32
        %v4180 = vpop.permute.xlu0 %4179
        %4181 = vrot.lane.b32.xlu0 %v4142, 32
        %v4182 = vpop.permute.xlu0 %4181
        %4183 = vrot.lane.b32.xlu0 %v4143, 32
        %v4184 = vpop.permute.xlu0 %4183
        %4185 = vrot.lane.b32.xlu0 %v4144, 32
        %v4186 = vpop.permute.xlu0 %4185
        %4187 = vrot.lane.b32.xlu0 %v4145, 32
        %v4188 = vpop.permute.xlu0 %4187
        %4189 = vrot.lane.b32.xlu0 %v4146, 32
        %v4190 = vpop.permute.xlu0 %4189
        %4191 = vrot.lane.b32.xlu0 %v4147, 32
        %v4192 = vpop.permute.xlu0 %4191
        %4193 = vrot.lane.b32.xlu0 %v4148, 32
        %v4194 = vpop.permute.xlu0 %4193
        %4195 = vrot.lane.b32.xlu0 %v4149, 32
        %v4196 = vpop.permute.xlu0 %4195
        %4197 = vrot.lane.b32.xlu0 %v4150, 32
        %v4198 = vpop.permute.xlu0 %4197
        %v4215 = vsel %vm2910, %v553, %v4168
        %v4216 = vsel %vm2910, %v554, %v4170
        %v4217 = vsel %vm2910, %v555, %v4172
        %v4218 = vsel %vm2910, %v556, %v4174
        %v4219 = vsel %vm2910, %v557, %v4176
        %v4220 = vsel %vm2910, %v558, %v4178
        %v4221 = vsel %vm2910, %v559, %v4180
        %v4222 = vsel %vm2910, %v560, %v4182
        %v4223 = vsel %vm2910, %v561, %v4184
        %v4224 = vsel %vm2910, %v562, %v4186
        %v4225 = vsel %vm2910, %v563, %v4188
        %v4226 = vsel %vm2910, %v564, %v4190
        %v4227 = vsel %vm2910, %v565, %v4192
        %v4228 = vsel %vm2910, %v566, %v4194
        %v4229 = vsel %vm2910, %v567, %v4196
        %v4230 = vsel %vm2910, %v568, %v4198
        %4231 = vst.msk [vmem:[%s538] sm:$0xff] %vm621, %v4215
        %4232 = vst.msk [vmem:[%s538 + $0x8] sm:$0xff] %vm621, %v4216
        %4233 = vst.msk [vmem:[%s538 + $0x10] sm:$0xff] %vm621, %v4217
        %4234 = vst.msk [vmem:[%s538 + $0x18] sm:$0xff] %vm621, %v4218
        %4235 = vst.msk [vmem:[%s538 + $0x20] sm:$0xff] %vm621, %v4219
        %4236 = vst.msk [vmem:[%s538 + $0x28] sm:$0xff] %vm621, %v4220
        %4237 = vst.msk [vmem:[%s538 + $0x30] sm:$0xff] %vm621, %v4221
        %4238 = vst.msk [vmem:[%s538 + $0x38] sm:$0xff] %vm621, %v4222
        %4239 = vst.msk [vmem:[%s538 + $0x40] sm:$0xff] %vm621, %v4223
        %4240 = vst.msk [vmem:[%s538 + $0x48] sm:$0xff] %vm621, %v4224
        %4241 = vst.msk [vmem:[%s538 + $0x50] sm:$0xff] %vm621, %v4225
        %4242 = vst.msk [vmem:[%s538 + $0x58] sm:$0xff] %vm621, %v4226
        %4243 = vst.msk [vmem:[%s538 + $0x60] sm:$0xff] %vm621, %v4227
        %4244 = vst.msk [vmem:[%s538 + $0x68] sm:$0xff] %vm621, %v4228
        %4245 = vst.msk [vmem:[%s538 + $0x70] sm:$0xff] %vm621, %v4229
        %4246 = vst.msk [vmem:[%s538 + $0x78] sm:$0xff] %vm621, %v4230
        %s4247 = smul.u32 8, %s35
        %p4248 = scmp.lt.s32.totalorder %s34, 1
        %s4249 = scalar_select %p4248, %s34, 1
        %p4250 = scmp.lt.s32.totalorder %s4247, 15
        %s4251 = scalar_select %p4250, %s4247, 15
        %s4252 = smul.addr %s4251, 2
        %s4253 = smul.addr %s4249, 32
        %s4254 = sadd.s32 %s4252, %s4253
        %s4255 = smul.addr %s4254, 8
        %s4256 = scalar_lea.vmem %s12, %s4255
        // Predicated region
        $region89: #{inverted_residual_k_forward.1} parent=67 // pred_check
          %p4257 = pneg %p324
        $region90: #{inverted_residual_k_forward.1} parent=67 // pred_check_branch
          %4259 = sbr.rel (%p4257) target = $region92
        $region91: #{inverted_residual_k_forward.1} parent=67 // pred_region
          %s4260 = smul.u32 8, %s35
        $region92: #{inverted_residual_k_forward.1} parent=67 // pred_fallthru
          _
      $region68: #{inverted_residual_k_forward.1} parent=5 // pred_fallthru
        _
      %p4261 = scmp.le.s32.totalorder 2, %s25
      // Predicated region
      $region93: #{inverted_residual_k_forward.1} parent=5 // pred_check
        %p4262 = pneg %p4261
      $region94: #{inverted_residual_k_forward.1} parent=5 // pred_check_branch
        %4264 = sbr.rel (%p4262) target = $region96
      $region95: #{inverted_residual_k_forward.1} parent=5 // pred_region
        %s4265 = ssub.s32 %s25, 2
        // Predicated region
        $region97: #{inverted_residual_k_forward.1} parent=95 // pred_check
          %p4266 = pneg %p330
        $region98: #{inverted_residual_k_forward.1} parent=95 // pred_check_branch
          %4268 = sbr.rel (%p4266) target = $region100
        $region99: #{inverted_residual_k_forward.1} parent=95 // pred_region
          %s4269 = smul.u32 8, %s37
          %p4270 = scmp.lt.s32.totalorder %s36, 1
          %s4271 = scalar_select %p4270, %s36, 1
          %p4272 = scmp.lt.s32.totalorder %s4269, 15
          %s4273 = scalar_select %p4272, %s4269, 15
          %s4274 = smul.addr %s4273, 2
          %s4275 = smul.addr %s4271, 32
          %s4276 = sadd.s32 %s4274, %s4275
          %s4277 = smul.addr %s4276, 8
          %s4278 = scalar_lea.vmem %s12, %s4277
        $region100: #{inverted_residual_k_forward.1} parent=95 // pred_fallthru
          _
      $region96: #{inverted_residual_k_forward.1} parent=5 // pred_fallthru
        _
    $region6: #{inverted_residual_k_forward.1} parent=1 // loop_footer
      %s29 = sadd.s32 1, %s25
    $region7: #{inverted_residual_k_forward.1} parent=1 // loop_footer_branch
      %24 = sbr.rel target = $region3
    $region8: #{inverted_residual_k_forward.1} parent=1 // loop_exit
      _
    %4279 = vsyncpa [#allocation3], 1
    %s4280 = scalar_lea.sflag [#allocation3], 1
    %4281 = vsyncpa %s4280, 1
    %4282 = vsyncpa [#allocation5], 1
    %s4283 = scalar_lea.sflag [#allocation5], 1
    %4284 = vsyncpa %s4283, 1
    %4285 = vsyncpa [#allocation8], 1

</llo_original>
